<compile_context>
chip_gen: v7x
topology: tpu7x:2x2x1
jax: 0.10.0
libtpu: 0.0.40
codegen_flags: <defaults>
</compile_context>

<pallas_src>
import jax
import jax.numpy as jnp
from jax import lax
from jax.experimental import pallas as pl
from jax.experimental.pallas import tpu as pltpu


# --------------------------------------------------------------------------------------
# Fused kernel: conv(im2col) + ReLU + maxpool(2) + BiLSTM + global-max + MLP head
# --------------------------------------------------------------------------------------
def cnnblstm_fused_kernel(pe_ref, po_ref, wconv_ref, bconv_ref,
                          wih_f_ref, wih_b_ref, whh_ref, bl_ref,
                          w1_ref, b1_ref, w2_ref, b2_ref, o_ref):
    # pe_ref/po_ref: (1, T_half*Bt, KCp) bf16, rows are time-major within the batch tile
    # wconv_ref: (KCp, Cf) bf16          bconv_ref: (1, Cf) f32
    # wih_f/wih_b: (Cf, 8H) bf16         whh_ref: (2H, 8H) bf16   bl_ref: (1, 8H) f32
    # w1_ref: (2H, 50) f32  b1_ref: (1, 50)  w2_ref: (50, 128) f32  b2_ref: (1, 128)
    # o_ref: (Bt, 128) f32
    bt = o_ref.shape[0]
    rows = pe_ref.shape[1]
    t_half = rows // bt
    two_h = whh_ref.shape[0]            # 2H  (fwd | bwd concatenated)
    eight_h = whh_ref.shape[1]          # 8H  (4 gates x 2 directions)
    three_2h = 3 * two_h

    # ---------------- net1: Conv1d (im2col matmul) + ReLU, fused MaxPool1d(2) ----------
    wconv = wconv_ref[...]
    bconv = bconv_ref[...]
    conv_e = jnp.maximum(
        jnp.dot(pe_ref[0], wconv, preferred_element_type=jnp.float32) + bconv, 0.0)
    conv_o = jnp.maximum(
        jnp.dot(po_ref[0], wconv, preferred_element_type=jnp.float32) + bconv, 0.0)
    pooled = jnp.maximum(conv_e, conv_o).astype(jnp.bfloat16)     # (T_half*Bt, Cf)

    # ------------- hoisted input projection: all steps, gates, directions -------------
    # Row r = t*Bt + b.  Forward reads block t, backward reads block T_half-1-t.
    # Combined LSTM bias (b_ih + b_hh, both dirs) folded in once via xp_f.
    xp_f = jnp.dot(pooled, wih_f_ref[...], preferred_element_type=jnp.float32) + bl_ref[...]
    xp_b = jnp.dot(pooled, wih_b_ref[...], preferred_element_type=jnp.float32)

    whh = whh_ref[...]                                            # (2H, 8H) bf16

    # ---------------- BiLSTM recurrence: ONE matmul per step, both directions ---------
    h = jnp.zeros((bt, two_h), jnp.float32)                       # [h_fwd | h_bwd]
    c = jnp.zeros((bt, two_h), jnp.float32)
    hmax = jnp.full((bt, two_h), -jnp.inf, jnp.float32)

    for t in range(t_half):   # fully unrolled; static sublane-aligned slices
        fwd = xp_f[t * bt:(t + 1) * bt, :]
        bwd = xp_b[(t_half - 1 - t) * bt:(t_half - t) * bt, :]
        pre = fwd + bwd + jnp.dot(h.astype(jnp.bfloat16), whh,
                                  preferred_element_type=jnp.float32)   # (Bt, 8H)
        # hard-sigmoid gates (i, f, o) for both directions in one lane-dense op
        sig = jnp.clip(0.2 * pre[:, :three_2h] + 0.5, 0.0, 1.0)          # (Bt, 6H)
        i_g = sig[:, 0:two_h]
        f_g = sig[:, two_h:2 * two_h]
        o_g = sig[:, 2 * two_h:three_2h]
        g_g = jnp.tanh(pre[:, three_2h:eight_h])                          # (Bt, 2H)
        c = f_g * c + i_g * g_g
        h = o_g * jnp.tanh(c)
        hmax = jnp.maximum(hmax, h)   # fused F.max_pool1d over the full time axis

    # ---------------- net3 head: Linear -> ReLU -> Linear -> Softmax ------------------
    z1 = jnp.maximum(
        jnp.dot(hmax, w1_ref[...], preferred_element_type=jnp.float32) + b1_ref[...], 0.0)
    z2 = jnp.dot(z1, w2_ref[...], preferred_element_type=jnp.float32) + b2_ref[...]
    z2 = z2 - jnp.max(z2, axis=1, keepdims=True)     # pad columns carry -1e30 bias
    e = jnp.exp(z2)
    o_ref[...] = e / jnp.sum(e, axis=1, keepdims=True)


def cnnblstm_fused(p_even, p_odd, wconv, bconv, wih_f, wih_b, whh, b_all,
                   w1, b1, w2p, b2p, *, bt):
    n_tiles, rows, kcp = p_even.shape
    n_out_pad = w2p.shape[1]
    out = pl.pallas_call(
        cnnblstm_fused_kernel,
        out_shape=jax.ShapeDtypeStruct((n_tiles * bt, n_out_pad), jnp.float32),
        grid=(n_tiles,),
        in_specs=[
            pl.BlockSpec((1, rows, kcp), lambda i: (i, 0, 0)),
            pl.BlockSpec((1, rows, kcp), lambda i: (i, 0, 0)),
            pl.BlockSpec(wconv.shape, lambda i: (0, 0)),
            pl.BlockSpec(bconv.shape, lambda i: (0, 0)),
            pl.BlockSpec(wih_f.shape, lambda i: (0, 0)),
            pl.BlockSpec(wih_b.shape, lambda i: (0, 0)),
            pl.BlockSpec(whh.shape, lambda i: (0, 0)),
            pl.BlockSpec(b_all.shape, lambda i: (0, 0)),
            pl.BlockSpec(w1.shape, lambda i: (0, 0)),
            pl.BlockSpec(b1.shape, lambda i: (0, 0)),
            pl.BlockSpec(w2p.shape, lambda i: (0, 0)),
            pl.BlockSpec(b2p.shape, lambda i: (0, 0)),
        ],
        out_specs=pl.BlockSpec((bt, n_out_pad), lambda i: (i, 0)),
        # batch tiles are independent -> "parallel" lets v7x shard them across its 2 TCs
        compiler_params=pltpu.CompilerParams(dimension_semantics=("parallel",)),
    )(p_even, p_odd, wconv, bconv, wih_f, wih_b, whh, b_all, w1, b1, w2p, b2p)
    return out


# --------------------------------------------------------------------------------------
# Wrapper: layout conversion, im2col, even/odd split, weight packing (done once)
# --------------------------------------------------------------------------------------
def cnnblstm_forward(x_ncw, params, block_b=8):
    # x_ncw: (B, C_in, T) like PyTorch NCW; convert to channels-last (B, T, C_in)
    x = jnp.transpose(x_ncw, (0, 2, 1)).astype(jnp.float32)
    B, T, c_in = x.shape
    w_conv = params["w_conv"]                        # (K, Cin, Cf)
    K, _, cf = w_conv.shape
    T_out = T - K + 1
    T_half = T_out // 2

    # --- im2col patches; contraction dim zero-padded to a full 128-lane tile ---
    patches = jnp.stack([x[:, k:k + T_out, :] for k in range(K)], axis=2)  # (B,T_out,K,Cin)
    patches = patches.reshape(B, T_out, K * c_in)
    kcp = ((K * c_in + 127) // 128) * 128
    patches = jnp.pad(patches, ((0, 0), (0, 0), (0, kcp - K * c_in)))
    wconv_flat = jnp.pad(w_conv.reshape(K * c_in, cf),
                         ((0, kcp - K * c_in), (0, 0))).astype(jnp.bfloat16)

    # --- split MaxPool1d(2) pairs into even/odd time, pad batch, time-major per tile ---
    bt = block_b
    B_pad = ((B + bt - 1) // bt) * bt
    n_tiles = B_pad // bt

    def tile_layout(p):                               # (B, T_half, kcp) -> time-major tiles
        p = jnp.pad(p, ((0, B_pad - B), (0, 0), (0, 0)))
        p = p.reshape(n_tiles, bt, T_half, kcp).transpose(0, 2, 1, 3)
        return p.reshape(n_tiles, T_half * bt, kcp).astype(jnp.bfloat16)

    p_even = tile_layout(patches[:, 0:2 * T_half:2, :])
    p_odd = tile_layout(patches[:, 1:2 * T_half:2, :])

    # --- pack BiLSTM weights into the fused layout ---
    # kernel gate order is (i, f, o, g); stored params use PyTorch order (i, f, g, o).
    # columns: gate-major blocks of width 2H, direction-minor [fwd H | bwd H].
    H = params["w_hh"].shape[-1]
    two_h = 2 * H
    gate_order = (0, 1, 3, 2)                         # i, f, o, g  <-  i, f, g, o
    wih_f = jnp.zeros((cf, 4 * two_h), jnp.float32)   # forward-direction x-projection
    wih_b = jnp.zeros((cf, 4 * two_h), jnp.float32)   # backward-direction x-projection
    whh = jnp.zeros((two_h, 4 * two_h), jnp.float32)  # block-diagonal recurrent weight
    b_all = jnp.zeros((1, 4 * two_h), jnp.float32)    # b_ih + b_hh (both dirs, all gates)
    for gi_new, gi_src in enumerate(gate_order):
        cfwd = gi_new * two_h
        cbwd = cfwd + H
        wih_f = wih_f.at[:, cfwd:cfwd + H].set(params["w_ih"][0, gi_src])
        wih_b = wih_b.at[:, cbwd:cbwd + H].set(params["w_ih"][1, gi_src])
        whh = whh.at[:H, cfwd:cfwd + H].set(params["w_hh"][0, gi_src])
        whh = whh.at[H:, cbwd:cbwd + H].set(params["w_hh"][1, gi_src])
        b_all = b_all.at[:, cfwd:cfwd + H].set(params["b_l"][0, gi_src])
        b_all = b_all.at[:, cbwd:cbwd + H].set(params["b_l"][1, gi_src])
    wih_f = wih_f.astype(jnp.bfloat16)
    wih_b = wih_b.astype(jnp.bfloat16)
    whh = whh.astype(jnp.bfloat16)

    # --- head: pad the logit width to a full 128-lane tile (pad bias = -1e30) ---
    n_out = params["w2"].shape[1]
    n_out_pad = ((n_out + 127) // 128) * 128
    w2p = jnp.pad(params["w2"], ((0, 0), (0, n_out_pad - n_out)))
    b2p = jnp.pad(params["b2"], ((0, 0), (0, n_out_pad - n_out)), constant_values=-1e30)

    out = cnnblstm_fused(p_even, p_odd, wconv_flat, params["b_conv"],
                         wih_f, wih_b, whh, b_all,
                         params["w1"], params["b1"], w2p, b2p, bt=bt)
    return out[:B, :n_out]


# --------------------------------------------------------------------------------------
# Pure-JAX f32 reference (same semantics) used to verify the fused kernel numerically
# --------------------------------------------------------------------------------------
def reference_forward(x_ncw, params):
    x = jnp.transpose(x_ncw, (0, 2, 1)).astype(jnp.float32)
    B, T, _ = x.shape
    K, _, cf = params["w_conv"].shape
    T_out = T - K + 1
    conv = jnp.zeros((B, T_out, cf), jnp.float32)
    for k in range(K):
        conv = conv + jnp.einsum("btc,cf->btf", x[:, k:k + T_out, :], params["w_conv"][k])
    conv = jnp.maximum(conv + params["b_conv"], 0.0)
    T_half = T_out // 2
    pooled = jnp.max(conv[:, :2 * T_half].reshape(B, T_half, 2, cf), axis=2)
    H = params["w_hh"].shape[-1]

    def hs(v):
        return jnp.clip(0.2 * v + 0.5, 0.0, 1.0)

    def run_dir(xs, d):
        def step(carry, xt):
            h, c = carry
            gates = [jnp.dot(xt, params["w_ih"][d, gi]) + jnp.dot(h, params["w_hh"][d, gi])
                     + params["b_l"][d, gi] for gi in range(4)]   # order i, f, g, o
            i_g, f_g, g_g, o_g = hs(gates[0]), hs(gates[1]), jnp.tanh(gates[2]), hs(gates[3])
            c = f_g * c + i_g * g_g
            h = o_g * jnp.tanh(c)
            return (h, c), h
        h0 = jnp.zeros((B, H), jnp.float32)
        c0 = jnp.zeros((B, H), jnp.float32)
        _, h_seq = lax.scan(step, (h0, c0), jnp.swapaxes(xs, 0, 1))
        return h_seq                                      # (T_half, B, H)

    h_fwd = run_dir(pooled, 0)
    h_bwd = run_dir(pooled[:, ::-1], 1)
    feat = jnp.concatenate([jnp.max(h_fwd, axis=0), jnp.max(h_bwd, axis=0)], axis=-1)
    z1 = jnp.maximum(feat @ params["w1"] + params["b1"], 0.0)
    z2 = z1 @ params["w2"] + params["b2"]
    return jax.nn.softmax(z2, axis=1)


# --------------------------------------------------------------------------------------
def make_params(key, c_in, n_filters, kernel_size, n_hidden, n_outputs):
    ks = jax.random.split(key, 8)
    s = 0.1
    return {
        "w_conv": s * jax.random.normal(ks[0], (kernel_size, c_in, n_filters), jnp.float32),
        "b_conv": s * jax.random.normal(ks[1], (1, n_filters), jnp.float32),
        # per-direction, per-gate (PyTorch gate order i, f, g, o); b_l = b_ih + b_hh
        "w_ih":   s * jax.random.normal(ks[2], (2, 4, n_filters, n_hidden), jnp.float32),
        "w_hh":   s * jax.random.normal(ks[3], (2, 4, n_hidden, n_hidden), jnp.float32),
        "b_l":    s * jax.random.normal(ks[4], (2, 4, n_hidden), jnp.float32),
        "w1":     s * jax.random.normal(ks[5], (2 * n_hidden, 50), jnp.float32),
        "b1":     jnp.zeros((1, 50), jnp.float32),
        "w2":     s * jax.random.normal(ks[6], (50, n_outputs), jnp.float32),
        "b2":     jnp.zeros((1, n_outputs), jnp.float32),
    }


if __name__ == "__main__":
    # Small shapes consistent with the module structure:
    #   batch=16 (2 batch tiles of 8 -> 2 parallel grid steps), n_features=3,
    #   time_steps=46 -> conv len 32 -> pooled len 16,
    #   n_filters=128, n_hidden=64 (bidirectional -> 128 features), n_outputs=10
    B, C_IN, T = 16, 3, 46
    N_FILTERS, KSIZE, N_HIDDEN, N_OUT = 128, 15, 64, 10

    key = jax.random.PRNGKey(0)
    k_x, k_p = jax.random.split(key)
    x = jax.random.normal(k_x, (B, C_IN, T), jnp.float32)   # PyTorch NCW layout
    params = make_params(k_p, C_IN, N_FILTERS, KSIZE, N_HIDDEN, N_OUT)

    out = jax.jit(cnnblstm_forward)(x, params)
    out = jax.block_until_ready(out)

    ref = jax.block_until_ready(reference_forward(x, params))

    assert out.shape == (B, N_OUT)
    assert bool(jnp.all(jnp.isfinite(out)))
    assert bool(jnp.allclose(jnp.sum(out, axis=1), 1.0, atol=1e-5))   # softmax rows sum to 1
    # bf16 matmuls in the kernel vs f32 reference -> looser tolerance
    assert bool(jnp.allclose(out, ref, atol=2e-2, rtol=2e-2))
    print("KERNEL_OK")
</pallas_src>

<mosaic_0001>
module attributes {stable_mosaic.version = 11 : i64} {
  func.func @cnnblstm_fused_kernel(%arg0: i32, %arg1: memref<1x128x128xbf16, #tpu.memory_space<vmem>>, %arg2: memref<1x128x128xbf16, #tpu.memory_space<vmem>>, %arg3: memref<128x128xbf16, #tpu.memory_space<vmem>>, %arg4: memref<1x128xf32, #tpu.memory_space<vmem>>, %arg5: memref<128x512xbf16, #tpu.memory_space<vmem>>, %arg6: memref<128x512xbf16, #tpu.memory_space<vmem>>, %arg7: memref<128x512xbf16, #tpu.memory_space<vmem>>, %arg8: memref<1x512xf32, #tpu.memory_space<vmem>>, %arg9: memref<128x50xf32, #tpu.memory_space<vmem>>, %arg10: memref<1x50xf32, #tpu.memory_space<vmem>>, %arg11: memref<50x128xf32, #tpu.memory_space<vmem>>, %arg12: memref<1x128xf32, #tpu.memory_space<vmem>>, %arg13: memref<8x128xf32, #tpu.memory_space<vmem>>) attributes {dimension_semantics = [#tpu.dimension_semantics<parallel>], iteration_bounds = array<i64: 2>, scalar_prefetch = 0 : i64, scratch_operands = 0 : i64, tpu.core_type = #tpu.core_type<tc>, window_params = [{transform_indices = @transform_0, window_bounds = array<i64: 1, 128, 128>}, {transform_indices = @transform_1, window_bounds = array<i64: 1, 128, 128>}, {pipeline_mode = #tpu.pipeline_mode<synchronous>, transform_indices = @transform_2, window_bounds = array<i64: 128, 128>}, {pipeline_mode = #tpu.pipeline_mode<synchronous>, transform_indices = @transform_3, window_bounds = array<i64: 1, 128>}, {pipeline_mode = #tpu.pipeline_mode<synchronous>, transform_indices = @transform_4, window_bounds = array<i64: 128, 512>}, {pipeline_mode = #tpu.pipeline_mode<synchronous>, transform_indices = @transform_5, window_bounds = array<i64: 128, 512>}, {pipeline_mode = #tpu.pipeline_mode<synchronous>, transform_indices = @transform_6, window_bounds = array<i64: 128, 512>}, {pipeline_mode = #tpu.pipeline_mode<synchronous>, transform_indices = @transform_7, window_bounds = array<i64: 1, 512>}, {pipeline_mode = #tpu.pipeline_mode<synchronous>, transform_indices = @transform_8, window_bounds = array<i64: 128, 50>}, {pipeline_mode = #tpu.pipeline_mode<synchronous>, transform_indices = @transform_9, window_bounds = array<i64: 1, 50>}, {pipeline_mode = #tpu.pipeline_mode<synchronous>, transform_indices = @transform_10, window_bounds = array<i64: 50, 128>}, {pipeline_mode = #tpu.pipeline_mode<synchronous>, transform_indices = @transform_11, window_bounds = array<i64: 1, 128>}, {transform_indices = @transform_12, window_bounds = array<i64: 8, 128>}]} {
    %c0 = arith.constant 0 : index
    %c0_0 = arith.constant 0 : index
    %0 = vector.load %arg3[%c0, %c0_0] : memref<128x128xbf16, #tpu.memory_space<vmem>>, vector<128x128xbf16>
    %c0_1 = arith.constant 0 : index
    %c0_2 = arith.constant 0 : index
    %1 = vector.load %arg4[%c0_1, %c0_2] : memref<1x128xf32, #tpu.memory_space<vmem>>, vector<1x128xf32>
    %c0_3 = arith.constant 0 : index
    %c0_4 = arith.constant 0 : index
    %c0_5 = arith.constant 0 : index
    %2 = vector.load %arg1[%c0_3, %c0_4, %c0_5] : memref<1x128x128xbf16, #tpu.memory_space<vmem>>, vector<1x128x128xbf16>
    %3 = vector.shape_cast %2 : vector<1x128x128xbf16> to vector<128x128xbf16>
    %cst = arith.constant dense<0.000000e+00> : vector<128x128xf32>
    %4 = tpu.matmul %3, %0, %cst {dimension_numbers = #tpu.dot_dimension_numbers<[1], [0], [0], [1], [0, 0, 1, 1], [], []>} : vector<128x128xbf16>, vector<128x128xbf16>, vector<128x128xf32> -> vector<128x128xf32>
    %5 = vector.broadcast %1 : vector<1x128xf32> to vector<128x128xf32>
    %6 = arith.addf %4, %5 : vector<128x128xf32>
    %cst_6 = arith.constant 0.000000e+00 : f32
    %7 = vector.broadcast %cst_6 : f32 to vector<128x128xf32>
    %8 = arith.maximumf %6, %7 : vector<128x128xf32>
    %c0_7 = arith.constant 0 : index
    %c0_8 = arith.constant 0 : index
    %c0_9 = arith.constant 0 : index
    %9 = vector.load %arg2[%c0_7, %c0_8, %c0_9] : memref<1x128x128xbf16, #tpu.memory_space<vmem>>, vector<1x128x128xbf16>
    %10 = vector.shape_cast %9 : vector<1x128x128xbf16> to vector<128x128xbf16>
    %cst_10 = arith.constant dense<0.000000e+00> : vector<128x128xf32>
    %11 = tpu.matmul %10, %0, %cst_10 {dimension_numbers = #tpu.dot_dimension_numbers<[1], [0], [0], [1], [0, 0, 1, 1], [], []>} : vector<128x128xbf16>, vector<128x128xbf16>, vector<128x128xf32> -> vector<128x128xf32>
    %12 = vector.broadcast %1 : vector<1x128xf32> to vector<128x128xf32>
    %13 = arith.addf %11, %12 : vector<128x128xf32>
    %cst_11 = arith.constant 0.000000e+00 : f32
    %14 = vector.broadcast %cst_11 : f32 to vector<128x128xf32>
    %15 = arith.maximumf %13, %14 : vector<128x128xf32>
    %16 = arith.maximumf %8, %15 : vector<128x128xf32>
    %17 = arith.truncf %16 : vector<128x128xf32> to vector<128x128xbf16>
    %c0_12 = arith.constant 0 : index
    %c0_13 = arith.constant 0 : index
    %18 = vector.load %arg5[%c0_12, %c0_13] : memref<128x512xbf16, #tpu.memory_space<vmem>>, vector<128x512xbf16>
    %cst_14 = arith.constant dense<0.000000e+00> : vector<128x512xf32>
    %19 = tpu.matmul %17, %18, %cst_14 {dimension_numbers = #tpu.dot_dimension_numbers<[1], [0], [0], [1], [0, 0, 1, 1], [], []>} : vector<128x128xbf16>, vector<128x512xbf16>, vector<128x512xf32> -> vector<128x512xf32>
    %c0_15 = arith.constant 0 : index
    %c0_16 = arith.constant 0 : index
    %20 = vector.load %arg8[%c0_15, %c0_16] : memref<1x512xf32, #tpu.memory_space<vmem>>, vector<1x512xf32>
    %21 = vector.broadcast %20 : vector<1x512xf32> to vector<128x512xf32>
    %22 = arith.addf %19, %21 : vector<128x512xf32>
    %c0_17 = arith.constant 0 : index
    %c0_18 = arith.constant 0 : index
    %23 = vector.load %arg6[%c0_17, %c0_18] : memref<128x512xbf16, #tpu.memory_space<vmem>>, vector<128x512xbf16>
    %cst_19 = arith.constant dense<0.000000e+00> : vector<128x512xf32>
    %24 = tpu.matmul %17, %23, %cst_19 {dimension_numbers = #tpu.dot_dimension_numbers<[1], [0], [0], [1], [0, 0, 1, 1], [], []>} : vector<128x128xbf16>, vector<128x512xbf16>, vector<128x512xf32> -> vector<128x512xf32>
    %c0_20 = arith.constant 0 : index
    %c0_21 = arith.constant 0 : index
    %25 = vector.load %arg7[%c0_20, %c0_21] : memref<128x512xbf16, #tpu.memory_space<vmem>>, vector<128x512xbf16>
    %cst_22 = arith.constant 0.000000e+00 : f32
    %26 = vector.broadcast %cst_22 : f32 to vector<8x128xf32>
    %cst_23 = arith.constant 0.000000e+00 : f32
    %27 = vector.broadcast %cst_23 : f32 to vector<8x128xf32>
    %cst_24 = arith.constant 0xFF800000 : f32
    %28 = vector.broadcast %cst_24 : f32 to vector<8x128xf32>
    %29 = vector.extract_strided_slice %22 {offsets = [0, 0], sizes = [8, 512], strides = [1, 1]} : vector<128x512xf32> to vector<8x512xf32>
    %30 = vector.extract_strided_slice %24 {offsets = [120, 0], sizes = [8, 512], strides = [1, 1]} : vector<128x512xf32> to vector<8x512xf32>
    %31 = arith.addf %29, %30 : vector<8x512xf32>
    %32 = arith.truncf %26 : vector<8x128xf32> to vector<8x128xbf16>
    %cst_25 = arith.constant dense<0.000000e+00> : vector<8x512xf32>
    %33 = tpu.matmul %32, %25, %cst_25 {dimension_numbers = #tpu.dot_dimension_numbers<[1], [0], [0], [1], [0, 0, 1, 1], [], []>} : vector<8x128xbf16>, vector<128x512xbf16>, vector<8x512xf32> -> vector<8x512xf32>
    %34 = arith.addf %31, %33 : vector<8x512xf32>
    %35 = vector.extract_strided_slice %34 {offsets = [0, 0], sizes = [8, 384], strides = [1, 1]} : vector<8x512xf32> to vector<8x384xf32>
    %cst_26 = arith.constant 2.000000e-01 : f32
    %36 = vector.broadcast %cst_26 : f32 to vector<8x384xf32>
    %37 = arith.mulf %36, %35 : vector<8x384xf32>
    %cst_27 = arith.constant 5.000000e-01 : f32
    %38 = vector.broadcast %cst_27 : f32 to vector<8x384xf32>
    %39 = arith.addf %37, %38 : vector<8x384xf32>
    %cst_28 = arith.constant 0.000000e+00 : f32
    %cst_29 = arith.constant 1.000000e+00 : f32
    %40 = vector.broadcast %cst_28 : f32 to vector<8x384xf32>
    %41 = arith.maximumf %40, %39 : vector<8x384xf32>
    %42 = vector.broadcast %cst_29 : f32 to vector<8x384xf32>
    %43 = arith.minimumf %42, %41 : vector<8x384xf32>
    %44 = vector.extract_strided_slice %43 {offsets = [0, 0], sizes = [8, 128], strides = [1, 1]} : vector<8x384xf32> to vector<8x128xf32>
    %45 = vector.extract_strided_slice %43 {offsets = [0, 128], sizes = [8, 128], strides = [1, 1]} : vector<8x384xf32> to vector<8x128xf32>
    %46 = vector.extract_strided_slice %43 {offsets = [0, 256], sizes = [8, 128], strides = [1, 1]} : vector<8x384xf32> to vector<8x128xf32>
    %47 = vector.extract_strided_slice %34 {offsets = [0, 384], sizes = [8, 128], strides = [1, 1]} : vector<8x512xf32> to vector<8x128xf32>
    %48 = math.tanh %47 : vector<8x128xf32>
    %49 = arith.mulf %45, %27 : vector<8x128xf32>
    %50 = arith.mulf %44, %48 : vector<8x128xf32>
    %51 = arith.addf %49, %50 : vector<8x128xf32>
    %52 = math.tanh %51 : vector<8x128xf32>
    %53 = arith.mulf %46, %52 : vector<8x128xf32>
    %54 = arith.maximumf %28, %53 : vector<8x128xf32>
    %55 = vector.extract_strided_slice %22 {offsets = [8, 0], sizes = [8, 512], strides = [1, 1]} : vector<128x512xf32> to vector<8x512xf32>
    %56 = vector.extract_strided_slice %24 {offsets = [112, 0], sizes = [8, 512], strides = [1, 1]} : vector<128x512xf32> to vector<8x512xf32>
    %57 = arith.addf %55, %56 : vector<8x512xf32>
    %58 = arith.truncf %53 : vector<8x128xf32> to vector<8x128xbf16>
    %cst_30 = arith.constant dense<0.000000e+00> : vector<8x512xf32>
    %59 = tpu.matmul %58, %25, %cst_30 {dimension_numbers = #tpu.dot_dimension_numbers<[1], [0], [0], [1], [0, 0, 1, 1], [], []>} : vector<8x128xbf16>, vector<128x512xbf16>, vector<8x512xf32> -> vector<8x512xf32>
    %60 = arith.addf %57, %59 : vector<8x512xf32>
    %61 = vector.extract_strided_slice %60 {offsets = [0, 0], sizes = [8, 384], strides = [1, 1]} : vector<8x512xf32> to vector<8x384xf32>
    %cst_31 = arith.constant 2.000000e-01 : f32
    %62 = vector.broadcast %cst_31 : f32 to vector<8x384xf32>
    %63 = arith.mulf %62, %61 : vector<8x384xf32>
    %cst_32 = arith.constant 5.000000e-01 : f32
    %64 = vector.broadcast %cst_32 : f32 to vector<8x384xf32>
    %65 = arith.addf %63, %64 : vector<8x384xf32>
    %cst_33 = arith.constant 0.000000e+00 : f32
    %cst_34 = arith.constant 1.000000e+00 : f32
    %66 = vector.broadcast %cst_33 : f32 to vector<8x384xf32>
    %67 = arith.maximumf %66, %65 : vector<8x384xf32>
    %68 = vector.broadcast %cst_34 : f32 to vector<8x384xf32>
    %69 = arith.minimumf %68, %67 : vector<8x384xf32>
    %70 = vector.extract_strided_slice %69 {offsets = [0, 0], sizes = [8, 128], strides = [1, 1]} : vector<8x384xf32> to vector<8x128xf32>
    %71 = vector.extract_strided_slice %69 {offsets = [0, 128], sizes = [8, 128], strides = [1, 1]} : vector<8x384xf32> to vector<8x128xf32>
    %72 = vector.extract_strided_slice %69 {offsets = [0, 256], sizes = [8, 128], strides = [1, 1]} : vector<8x384xf32> to vector<8x128xf32>
    %73 = vector.extract_strided_slice %60 {offsets = [0, 384], sizes = [8, 128], strides = [1, 1]} : vector<8x512xf32> to vector<8x128xf32>
    %74 = math.tanh %73 : vector<8x128xf32>
    %75 = arith.mulf %71, %51 : vector<8x128xf32>
    %76 = arith.mulf %70, %74 : vector<8x128xf32>
    %77 = arith.addf %75, %76 : vector<8x128xf32>
    %78 = math.tanh %77 : vector<8x128xf32>
    %79 = arith.mulf %72, %78 : vector<8x128xf32>
    %80 = arith.maximumf %54, %79 : vector<8x128xf32>
    %81 = vector.extract_strided_slice %22 {offsets = [16, 0], sizes = [8, 512], strides = [1, 1]} : vector<128x512xf32> to vector<8x512xf32>
    %82 = vector.extract_strided_slice %24 {offsets = [104, 0], sizes = [8, 512], strides = [1, 1]} : vector<128x512xf32> to vector<8x512xf32>
    %83 = arith.addf %81, %82 : vector<8x512xf32>
    %84 = arith.truncf %79 : vector<8x128xf32> to vector<8x128xbf16>
    %cst_35 = arith.constant dense<0.000000e+00> : vector<8x512xf32>
    %85 = tpu.matmul %84, %25, %cst_35 {dimension_numbers = #tpu.dot_dimension_numbers<[1], [0], [0], [1], [0, 0, 1, 1], [], []>} : vector<8x128xbf16>, vector<128x512xbf16>, vector<8x512xf32> -> vector<8x512xf32>
    %86 = arith.addf %83, %85 : vector<8x512xf32>
    %87 = vector.extract_strided_slice %86 {offsets = [0, 0], sizes = [8, 384], strides = [1, 1]} : vector<8x512xf32> to vector<8x384xf32>
    %cst_36 = arith.constant 2.000000e-01 : f32
    %88 = vector.broadcast %cst_36 : f32 to vector<8x384xf32>
    %89 = arith.mulf %88, %87 : vector<8x384xf32>
    %cst_37 = arith.constant 5.000000e-01 : f32
    %90 = vector.broadcast %cst_37 : f32 to vector<8x384xf32>
    %91 = arith.addf %89, %90 : vector<8x384xf32>
    %cst_38 = arith.constant 0.000000e+00 : f32
    %cst_39 = arith.constant 1.000000e+00 : f32
    %92 = vector.broadcast %cst_38 : f32 to vector<8x384xf32>
    %93 = arith.maximumf %92, %91 : vector<8x384xf32>
    %94 = vector.broadcast %cst_39 : f32 to vector<8x384xf32>
    %95 = arith.minimumf %94, %93 : vector<8x384xf32>
    %96 = vector.extract_strided_slice %95 {offsets = [0, 0], sizes = [8, 128], strides = [1, 1]} : vector<8x384xf32> to vector<8x128xf32>
    %97 = vector.extract_strided_slice %95 {offsets = [0, 128], sizes = [8, 128], strides = [1, 1]} : vector<8x384xf32> to vector<8x128xf32>
    %98 = vector.extract_strided_slice %95 {offsets = [0, 256], sizes = [8, 128], strides = [1, 1]} : vector<8x384xf32> to vector<8x128xf32>
    %99 = vector.extract_strided_slice %86 {offsets = [0, 384], sizes = [8, 128], strides = [1, 1]} : vector<8x512xf32> to vector<8x128xf32>
    %100 = math.tanh %99 : vector<8x128xf32>
    %101 = arith.mulf %97, %77 : vector<8x128xf32>
    %102 = arith.mulf %96, %100 : vector<8x128xf32>
    %103 = arith.addf %101, %102 : vector<8x128xf32>
    %104 = math.tanh %103 : vector<8x128xf32>
    %105 = arith.mulf %98, %104 : vector<8x128xf32>
    %106 = arith.maximumf %80, %105 : vector<8x128xf32>
    %107 = vector.extract_strided_slice %22 {offsets = [24, 0], sizes = [8, 512], strides = [1, 1]} : vector<128x512xf32> to vector<8x512xf32>
    %108 = vector.extract_strided_slice %24 {offsets = [96, 0], sizes = [8, 512], strides = [1, 1]} : vector<128x512xf32> to vector<8x512xf32>
    %109 = arith.addf %107, %108 : vector<8x512xf32>
    %110 = arith.truncf %105 : vector<8x128xf32> to vector<8x128xbf16>
    %cst_40 = arith.constant dense<0.000000e+00> : vector<8x512xf32>
    %111 = tpu.matmul %110, %25, %cst_40 {dimension_numbers = #tpu.dot_dimension_numbers<[1], [0], [0], [1], [0, 0, 1, 1], [], []>} : vector<8x128xbf16>, vector<128x512xbf16>, vector<8x512xf32> -> vector<8x512xf32>
    %112 = arith.addf %109, %111 : vector<8x512xf32>
    %113 = vector.extract_strided_slice %112 {offsets = [0, 0], sizes = [8, 384], strides = [1, 1]} : vector<8x512xf32> to vector<8x384xf32>
    %cst_41 = arith.constant 2.000000e-01 : f32
    %114 = vector.broadcast %cst_41 : f32 to vector<8x384xf32>
    %115 = arith.mulf %114, %113 : vector<8x384xf32>
    %cst_42 = arith.constant 5.000000e-01 : f32
    %116 = vector.broadcast %cst_42 : f32 to vector<8x384xf32>
    %117 = arith.addf %115, %116 : vector<8x384xf32>
    %cst_43 = arith.constant 0.000000e+00 : f32
    %cst_44 = arith.constant 1.000000e+00 : f32
    %118 = vector.broadcast %cst_43 : f32 to vector<8x384xf32>
    %119 = arith.maximumf %118, %117 : vector<8x384xf32>
    %120 = vector.broadcast %cst_44 : f32 to vector<8x384xf32>
    %121 = arith.minimumf %120, %119 : vector<8x384xf32>
    %122 = vector.extract_strided_slice %121 {offsets = [0, 0], sizes = [8, 128], strides = [1, 1]} : vector<8x384xf32> to vector<8x128xf32>
    %123 = vector.extract_strided_slice %121 {offsets = [0, 128], sizes = [8, 128], strides = [1, 1]} : vector<8x384xf32> to vector<8x128xf32>
    %124 = vector.extract_strided_slice %121 {offsets = [0, 256], sizes = [8, 128], strides = [1, 1]} : vector<8x384xf32> to vector<8x128xf32>
    %125 = vector.extract_strided_slice %112 {offsets = [0, 384], sizes = [8, 128], strides = [1, 1]} : vector<8x512xf32> to vector<8x128xf32>
    %126 = math.tanh %125 : vector<8x128xf32>
    %127 = arith.mulf %123, %103 : vector<8x128xf32>
    %128 = arith.mulf %122, %126 : vector<8x128xf32>
    %129 = arith.addf %127, %128 : vector<8x128xf32>
    %130 = math.tanh %129 : vector<8x128xf32>
    %131 = arith.mulf %124, %130 : vector<8x128xf32>
    %132 = arith.maximumf %106, %131 : vector<8x128xf32>
    %133 = vector.extract_strided_slice %22 {offsets = [32, 0], sizes = [8, 512], strides = [1, 1]} : vector<128x512xf32> to vector<8x512xf32>
    %134 = vector.extract_strided_slice %24 {offsets = [88, 0], sizes = [8, 512], strides = [1, 1]} : vector<128x512xf32> to vector<8x512xf32>
    %135 = arith.addf %133, %134 : vector<8x512xf32>
    %136 = arith.truncf %131 : vector<8x128xf32> to vector<8x128xbf16>
    %cst_45 = arith.constant dense<0.000000e+00> : vector<8x512xf32>
    %137 = tpu.matmul %136, %25, %cst_45 {dimension_numbers = #tpu.dot_dimension_numbers<[1], [0], [0], [1], [0, 0, 1, 1], [], []>} : vector<8x128xbf16>, vector<128x512xbf16>, vector<8x512xf32> -> vector<8x512xf32>
    %138 = arith.addf %135, %137 : vector<8x512xf32>
    %139 = vector.extract_strided_slice %138 {offsets = [0, 0], sizes = [8, 384], strides = [1, 1]} : vector<8x512xf32> to vector<8x384xf32>
    %cst_46 = arith.constant 2.000000e-01 : f32
    %140 = vector.broadcast %cst_46 : f32 to vector<8x384xf32>
    %141 = arith.mulf %140, %139 : vector<8x384xf32>
    %cst_47 = arith.constant 5.000000e-01 : f32
    %142 = vector.broadcast %cst_47 : f32 to vector<8x384xf32>
    %143 = arith.addf %141, %142 : vector<8x384xf32>
    %cst_48 = arith.constant 0.000000e+00 : f32
    %cst_49 = arith.constant 1.000000e+00 : f32
    %144 = vector.broadcast %cst_48 : f32 to vector<8x384xf32>
    %145 = arith.maximumf %144, %143 : vector<8x384xf32>
    %146 = vector.broadcast %cst_49 : f32 to vector<8x384xf32>
    %147 = arith.minimumf %146, %145 : vector<8x384xf32>
    %148 = vector.extract_strided_slice %147 {offsets = [0, 0], sizes = [8, 128], strides = [1, 1]} : vector<8x384xf32> to vector<8x128xf32>
    %149 = vector.extract_strided_slice %147 {offsets = [0, 128], sizes = [8, 128], strides = [1, 1]} : vector<8x384xf32> to vector<8x128xf32>
    %150 = vector.extract_strided_slice %147 {offsets = [0, 256], sizes = [8, 128], strides = [1, 1]} : vector<8x384xf32> to vector<8x128xf32>
    %151 = vector.extract_strided_slice %138 {offsets = [0, 384], sizes = [8, 128], strides = [1, 1]} : vector<8x512xf32> to vector<8x128xf32>
    %152 = math.tanh %151 : vector<8x128xf32>
    %153 = arith.mulf %149, %129 : vector<8x128xf32>
    %154 = arith.mulf %148, %152 : vector<8x128xf32>
    %155 = arith.addf %153, %154 : vector<8x128xf32>
    %156 = math.tanh %155 : vector<8x128xf32>
    %157 = arith.mulf %150, %156 : vector<8x128xf32>
    %158 = arith.maximumf %132, %157 : vector<8x128xf32>
    %159 = vector.extract_strided_slice %22 {offsets = [40, 0], sizes = [8, 512], strides = [1, 1]} : vector<128x512xf32> to vector<8x512xf32>
    %160 = vector.extract_strided_slice %24 {offsets = [80, 0], sizes = [8, 512], strides = [1, 1]} : vector<128x512xf32> to vector<8x512xf32>
    %161 = arith.addf %159, %160 : vector<8x512xf32>
    %162 = arith.truncf %157 : vector<8x128xf32> to vector<8x128xbf16>
    %cst_50 = arith.constant dense<0.000000e+00> : vector<8x512xf32>
    %163 = tpu.matmul %162, %25, %cst_50 {dimension_numbers = #tpu.dot_dimension_numbers<[1], [0], [0], [1], [0, 0, 1, 1], [], []>} : vector<8x128xbf16>, vector<128x512xbf16>, vector<8x512xf32> -> vector<8x512xf32>
    %164 = arith.addf %161, %163 : vector<8x512xf32>
    %165 = vector.extract_strided_slice %164 {offsets = [0, 0], sizes = [8, 384], strides = [1, 1]} : vector<8x512xf32> to vector<8x384xf32>
    %cst_51 = arith.constant 2.000000e-01 : f32
    %166 = vector.broadcast %cst_51 : f32 to vector<8x384xf32>
    %167 = arith.mulf %166, %165 : vector<8x384xf32>
    %cst_52 = arith.constant 5.000000e-01 : f32
    %168 = vector.broadcast %cst_52 : f32 to vector<8x384xf32>
    %169 = arith.addf %167, %168 : vector<8x384xf32>
    %cst_53 = arith.constant 0.000000e+00 : f32
    %cst_54 = arith.constant 1.000000e+00 : f32
    %170 = vector.broadcast %cst_53 : f32 to vector<8x384xf32>
    %171 = arith.maximumf %170, %169 : vector<8x384xf32>
    %172 = vector.broadcast %cst_54 : f32 to vector<8x384xf32>
    %173 = arith.minimumf %172, %171 : vector<8x384xf32>
    %174 = vector.extract_strided_slice %173 {offsets = [0, 0], sizes = [8, 128], strides = [1, 1]} : vector<8x384xf32> to vector<8x128xf32>
    %175 = vector.extract_strided_slice %173 {offsets = [0, 128], sizes = [8, 128], strides = [1, 1]} : vector<8x384xf32> to vector<8x128xf32>
    %176 = vector.extract_strided_slice %173 {offsets = [0, 256], sizes = [8, 128], strides = [1, 1]} : vector<8x384xf32> to vector<8x128xf32>
    %177 = vector.extract_strided_slice %164 {offsets = [0, 384], sizes = [8, 128], strides = [1, 1]} : vector<8x512xf32> to vector<8x128xf32>
    %178 = math.tanh %177 : vector<8x128xf32>
    %179 = arith.mulf %175, %155 : vector<8x128xf32>
    %180 = arith.mulf %174, %178 : vector<8x128xf32>
    %181 = arith.addf %179, %180 : vector<8x128xf32>
    %182 = math.tanh %181 : vector<8x128xf32>
    %183 = arith.mulf %176, %182 : vector<8x128xf32>
    %184 = arith.maximumf %158, %183 : vector<8x128xf32>
    %185 = vector.extract_strided_slice %22 {offsets = [48, 0], sizes = [8, 512], strides = [1, 1]} : vector<128x512xf32> to vector<8x512xf32>
    %186 = vector.extract_strided_slice %24 {offsets = [72, 0], sizes = [8, 512], strides = [1, 1]} : vector<128x512xf32> to vector<8x512xf32>
    %187 = arith.addf %185, %186 : vector<8x512xf32>
    %188 = arith.truncf %183 : vector<8x128xf32> to vector<8x128xbf16>
    %cst_55 = arith.constant dense<0.000000e+00> : vector<8x512xf32>
    %189 = tpu.matmul %188, %25, %cst_55 {dimension_numbers = #tpu.dot_dimension_numbers<[1], [0], [0], [1], [0, 0, 1, 1], [], []>} : vector<8x128xbf16>, vector<128x512xbf16>, vector<8x512xf32> -> vector<8x512xf32>
    %190 = arith.addf %187, %189 : vector<8x512xf32>
    %191 = vector.extract_strided_slice %190 {offsets = [0, 0], sizes = [8, 384], strides = [1, 1]} : vector<8x512xf32> to vector<8x384xf32>
    %cst_56 = arith.constant 2.000000e-01 : f32
    %192 = vector.broadcast %cst_56 : f32 to vector<8x384xf32>
    %193 = arith.mulf %192, %191 : vector<8x384xf32>
    %cst_57 = arith.constant 5.000000e-01 : f32
    %194 = vector.broadcast %cst_57 : f32 to vector<8x384xf32>
    %195 = arith.addf %193, %194 : vector<8x384xf32>
    %cst_58 = arith.constant 0.000000e+00 : f32
    %cst_59 = arith.constant 1.000000e+00 : f32
    %196 = vector.broadcast %cst_58 : f32 to vector<8x384xf32>
    %197 = arith.maximumf %196, %195 : vector<8x384xf32>
    %198 = vector.broadcast %cst_59 : f32 to vector<8x384xf32>
    %199 = arith.minimumf %198, %197 : vector<8x384xf32>
    %200 = vector.extract_strided_slice %199 {offsets = [0, 0], sizes = [8, 128], strides = [1, 1]} : vector<8x384xf32> to vector<8x128xf32>
    %201 = vector.extract_strided_slice %199 {offsets = [0, 128], sizes = [8, 128], strides = [1, 1]} : vector<8x384xf32> to vector<8x128xf32>
    %202 = vector.extract_strided_slice %199 {offsets = [0, 256], sizes = [8, 128], strides = [1, 1]} : vector<8x384xf32> to vector<8x128xf32>
    %203 = vector.extract_strided_slice %190 {offsets = [0, 384], sizes = [8, 128], strides = [1, 1]} : vector<8x512xf32> to vector<8x128xf32>
    %204 = math.tanh %203 : vector<8x128xf32>
    %205 = arith.mulf %201, %181 : vector<8x128xf32>
    %206 = arith.mulf %200, %204 : vector<8x128xf32>
    %207 = arith.addf %205, %206 : vector<8x128xf32>
    %208 = math.tanh %207 : vector<8x128xf32>
    %209 = arith.mulf %202, %208 : vector<8x128xf32>
    %210 = arith.maximumf %184, %209 : vector<8x128xf32>
    %211 = vector.extract_strided_slice %22 {offsets = [56, 0], sizes = [8, 512], strides = [1, 1]} : vector<128x512xf32> to vector<8x512xf32>
    %212 = vector.extract_strided_slice %24 {offsets = [64, 0], sizes = [8, 512], strides = [1, 1]} : vector<128x512xf32> to vector<8x512xf32>
    %213 = arith.addf %211, %212 : vector<8x512xf32>
    %214 = arith.truncf %209 : vector<8x128xf32> to vector<8x128xbf16>
    %cst_60 = arith.constant dense<0.000000e+00> : vector<8x512xf32>
    %215 = tpu.matmul %214, %25, %cst_60 {dimension_numbers = #tpu.dot_dimension_numbers<[1], [0], [0], [1], [0, 0, 1, 1], [], []>} : vector<8x128xbf16>, vector<128x512xbf16>, vector<8x512xf32> -> vector<8x512xf32>
    %216 = arith.addf %213, %215 : vector<8x512xf32>
    %217 = vector.extract_strided_slice %216 {offsets = [0, 0], sizes = [8, 384], strides = [1, 1]} : vector<8x512xf32> to vector<8x384xf32>
    %cst_61 = arith.constant 2.000000e-01 : f32
    %218 = vector.broadcast %cst_61 : f32 to vector<8x384xf32>
    %219 = arith.mulf %218, %217 : vector<8x384xf32>
    %cst_62 = arith.constant 5.000000e-01 : f32
    %220 = vector.broadcast %cst_62 : f32 to vector<8x384xf32>
    %221 = arith.addf %219, %220 : vector<8x384xf32>
    %cst_63 = arith.constant 0.000000e+00 : f32
    %cst_64 = arith.constant 1.000000e+00 : f32
    %222 = vector.broadcast %cst_63 : f32 to vector<8x384xf32>
    %223 = arith.maximumf %222, %221 : vector<8x384xf32>
    %224 = vector.broadcast %cst_64 : f32 to vector<8x384xf32>
    %225 = arith.minimumf %224, %223 : vector<8x384xf32>
    %226 = vector.extract_strided_slice %225 {offsets = [0, 0], sizes = [8, 128], strides = [1, 1]} : vector<8x384xf32> to vector<8x128xf32>
    %227 = vector.extract_strided_slice %225 {offsets = [0, 128], sizes = [8, 128], strides = [1, 1]} : vector<8x384xf32> to vector<8x128xf32>
    %228 = vector.extract_strided_slice %225 {offsets = [0, 256], sizes = [8, 128], strides = [1, 1]} : vector<8x384xf32> to vector<8x128xf32>
    %229 = vector.extract_strided_slice %216 {offsets = [0, 384], sizes = [8, 128], strides = [1, 1]} : vector<8x512xf32> to vector<8x128xf32>
    %230 = math.tanh %229 : vector<8x128xf32>
    %231 = arith.mulf %227, %207 : vector<8x128xf32>
    %232 = arith.mulf %226, %230 : vector<8x128xf32>
    %233 = arith.addf %231, %232 : vector<8x128xf32>
    %234 = math.tanh %233 : vector<8x128xf32>
    %235 = arith.mulf %228, %234 : vector<8x128xf32>
    %236 = arith.maximumf %210, %235 : vector<8x128xf32>
    %237 = vector.extract_strided_slice %22 {offsets = [64, 0], sizes = [8, 512], strides = [1, 1]} : vector<128x512xf32> to vector<8x512xf32>
    %238 = vector.extract_strided_slice %24 {offsets = [56, 0], sizes = [8, 512], strides = [1, 1]} : vector<128x512xf32> to vector<8x512xf32>
    %239 = arith.addf %237, %238 : vector<8x512xf32>
    %240 = arith.truncf %235 : vector<8x128xf32> to vector<8x128xbf16>
    %cst_65 = arith.constant dense<0.000000e+00> : vector<8x512xf32>
    %241 = tpu.matmul %240, %25, %cst_65 {dimension_numbers = #tpu.dot_dimension_numbers<[1], [0], [0], [1], [0, 0, 1, 1], [], []>} : vector<8x128xbf16>, vector<128x512xbf16>, vector<8x512xf32> -> vector<8x512xf32>
    %242 = arith.addf %239, %241 : vector<8x512xf32>
    %243 = vector.extract_strided_slice %242 {offsets = [0, 0], sizes = [8, 384], strides = [1, 1]} : vector<8x512xf32> to vector<8x384xf32>
    %cst_66 = arith.constant 2.000000e-01 : f32
    %244 = vector.broadcast %cst_66 : f32 to vector<8x384xf32>
    %245 = arith.mulf %244, %243 : vector<8x384xf32>
    %cst_67 = arith.constant 5.000000e-01 : f32
    %246 = vector.broadcast %cst_67 : f32 to vector<8x384xf32>
    %247 = arith.addf %245, %246 : vector<8x384xf32>
    %cst_68 = arith.constant 0.000000e+00 : f32
    %cst_69 = arith.constant 1.000000e+00 : f32
    %248 = vector.broadcast %cst_68 : f32 to vector<8x384xf32>
    %249 = arith.maximumf %248, %247 : vector<8x384xf32>
    %250 = vector.broadcast %cst_69 : f32 to vector<8x384xf32>
    %251 = arith.minimumf %250, %249 : vector<8x384xf32>
    %252 = vector.extract_strided_slice %251 {offsets = [0, 0], sizes = [8, 128], strides = [1, 1]} : vector<8x384xf32> to vector<8x128xf32>
    %253 = vector.extract_strided_slice %251 {offsets = [0, 128], sizes = [8, 128], strides = [1, 1]} : vector<8x384xf32> to vector<8x128xf32>
    %254 = vector.extract_strided_slice %251 {offsets = [0, 256], sizes = [8, 128], strides = [1, 1]} : vector<8x384xf32> to vector<8x128xf32>
    %255 = vector.extract_strided_slice %242 {offsets = [0, 384], sizes = [8, 128], strides = [1, 1]} : vector<8x512xf32> to vector<8x128xf32>
    %256 = math.tanh %255 : vector<8x128xf32>
    %257 = arith.mulf %253, %233 : vector<8x128xf32>
    %258 = arith.mulf %252, %256 : vector<8x128xf32>
    %259 = arith.addf %257, %258 : vector<8x128xf32>
    %260 = math.tanh %259 : vector<8x128xf32>
    %261 = arith.mulf %254, %260 : vector<8x128xf32>
    %262 = arith.maximumf %236, %261 : vector<8x128xf32>
    %263 = vector.extract_strided_slice %22 {offsets = [72, 0], sizes = [8, 512], strides = [1, 1]} : vector<128x512xf32> to vector<8x512xf32>
    %264 = vector.extract_strided_slice %24 {offsets = [48, 0], sizes = [8, 512], strides = [1, 1]} : vector<128x512xf32> to vector<8x512xf32>
    %265 = arith.addf %263, %264 : vector<8x512xf32>
    %266 = arith.truncf %261 : vector<8x128xf32> to vector<8x128xbf16>
    %cst_70 = arith.constant dense<0.000000e+00> : vector<8x512xf32>
    %267 = tpu.matmul %266, %25, %cst_70 {dimension_numbers = #tpu.dot_dimension_numbers<[1], [0], [0], [1], [0, 0, 1, 1], [], []>} : vector<8x128xbf16>, vector<128x512xbf16>, vector<8x512xf32> -> vector<8x512xf32>
    %268 = arith.addf %265, %267 : vector<8x512xf32>
    %269 = vector.extract_strided_slice %268 {offsets = [0, 0], sizes = [8, 384], strides = [1, 1]} : vector<8x512xf32> to vector<8x384xf32>
    %cst_71 = arith.constant 2.000000e-01 : f32
    %270 = vector.broadcast %cst_71 : f32 to vector<8x384xf32>
    %271 = arith.mulf %270, %269 : vector<8x384xf32>
    %cst_72 = arith.constant 5.000000e-01 : f32
    %272 = vector.broadcast %cst_72 : f32 to vector<8x384xf32>
    %273 = arith.addf %271, %272 : vector<8x384xf32>
    %cst_73 = arith.constant 0.000000e+00 : f32
    %cst_74 = arith.constant 1.000000e+00 : f32
    %274 = vector.broadcast %cst_73 : f32 to vector<8x384xf32>
    %275 = arith.maximumf %274, %273 : vector<8x384xf32>
    %276 = vector.broadcast %cst_74 : f32 to vector<8x384xf32>
    %277 = arith.minimumf %276, %275 : vector<8x384xf32>
    %278 = vector.extract_strided_slice %277 {offsets = [0, 0], sizes = [8, 128], strides = [1, 1]} : vector<8x384xf32> to vector<8x128xf32>
    %279 = vector.extract_strided_slice %277 {offsets = [0, 128], sizes = [8, 128], strides = [1, 1]} : vector<8x384xf32> to vector<8x128xf32>
    %280 = vector.extract_strided_slice %277 {offsets = [0, 256], sizes = [8, 128], strides = [1, 1]} : vector<8x384xf32> to vector<8x128xf32>
    %281 = vector.extract_strided_slice %268 {offsets = [0, 384], sizes = [8, 128], strides = [1, 1]} : vector<8x512xf32> to vector<8x128xf32>
    %282 = math.tanh %281 : vector<8x128xf32>
    %283 = arith.mulf %279, %259 : vector<8x128xf32>
    %284 = arith.mulf %278, %282 : vector<8x128xf32>
    %285 = arith.addf %283, %284 : vector<8x128xf32>
    %286 = math.tanh %285 : vector<8x128xf32>
    %287 = arith.mulf %280, %286 : vector<8x128xf32>
    %288 = arith.maximumf %262, %287 : vector<8x128xf32>
    %289 = vector.extract_strided_slice %22 {offsets = [80, 0], sizes = [8, 512], strides = [1, 1]} : vector<128x512xf32> to vector<8x512xf32>
    %290 = vector.extract_strided_slice %24 {offsets = [40, 0], sizes = [8, 512], strides = [1, 1]} : vector<128x512xf32> to vector<8x512xf32>
    %291 = arith.addf %289, %290 : vector<8x512xf32>
    %292 = arith.truncf %287 : vector<8x128xf32> to vector<8x128xbf16>
    %cst_75 = arith.constant dense<0.000000e+00> : vector<8x512xf32>
    %293 = tpu.matmul %292, %25, %cst_75 {dimension_numbers = #tpu.dot_dimension_numbers<[1], [0], [0], [1], [0, 0, 1, 1], [], []>} : vector<8x128xbf16>, vector<128x512xbf16>, vector<8x512xf32> -> vector<8x512xf32>
    %294 = arith.addf %291, %293 : vector<8x512xf32>
    %295 = vector.extract_strided_slice %294 {offsets = [0, 0], sizes = [8, 384], strides = [1, 1]} : vector<8x512xf32> to vector<8x384xf32>
    %cst_76 = arith.constant 2.000000e-01 : f32
    %296 = vector.broadcast %cst_76 : f32 to vector<8x384xf32>
    %297 = arith.mulf %296, %295 : vector<8x384xf32>
    %cst_77 = arith.constant 5.000000e-01 : f32
    %298 = vector.broadcast %cst_77 : f32 to vector<8x384xf32>
    %299 = arith.addf %297, %298 : vector<8x384xf32>
    %cst_78 = arith.constant 0.000000e+00 : f32
    %cst_79 = arith.constant 1.000000e+00 : f32
    %300 = vector.broadcast %cst_78 : f32 to vector<8x384xf32>
    %301 = arith.maximumf %300, %299 : vector<8x384xf32>
    %302 = vector.broadcast %cst_79 : f32 to vector<8x384xf32>
    %303 = arith.minimumf %302, %301 : vector<8x384xf32>
    %304 = vector.extract_strided_slice %303 {offsets = [0, 0], sizes = [8, 128], strides = [1, 1]} : vector<8x384xf32> to vector<8x128xf32>
    %305 = vector.extract_strided_slice %303 {offsets = [0, 128], sizes = [8, 128], strides = [1, 1]} : vector<8x384xf32> to vector<8x128xf32>
    %306 = vector.extract_strided_slice %303 {offsets = [0, 256], sizes = [8, 128], strides = [1, 1]} : vector<8x384xf32> to vector<8x128xf32>
    %307 = vector.extract_strided_slice %294 {offsets = [0, 384], sizes = [8, 128], strides = [1, 1]} : vector<8x512xf32> to vector<8x128xf32>
    %308 = math.tanh %307 : vector<8x128xf32>
    %309 = arith.mulf %305, %285 : vector<8x128xf32>
    %310 = arith.mulf %304, %308 : vector<8x128xf32>
    %311 = arith.addf %309, %310 : vector<8x128xf32>
    %312 = math.tanh %311 : vector<8x128xf32>
    %313 = arith.mulf %306, %312 : vector<8x128xf32>
    %314 = arith.maximumf %288, %313 : vector<8x128xf32>
    %315 = vector.extract_strided_slice %22 {offsets = [88, 0], sizes = [8, 512], strides = [1, 1]} : vector<128x512xf32> to vector<8x512xf32>
    %316 = vector.extract_strided_slice %24 {offsets = [32, 0], sizes = [8, 512], strides = [1, 1]} : vector<128x512xf32> to vector<8x512xf32>
    %317 = arith.addf %315, %316 : vector<8x512xf32>
    %318 = arith.truncf %313 : vector<8x128xf32> to vector<8x128xbf16>
    %cst_80 = arith.constant dense<0.000000e+00> : vector<8x512xf32>
    %319 = tpu.matmul %318, %25, %cst_80 {dimension_numbers = #tpu.dot_dimension_numbers<[1], [0], [0], [1], [0, 0, 1, 1], [], []>} : vector<8x128xbf16>, vector<128x512xbf16>, vector<8x512xf32> -> vector<8x512xf32>
    %320 = arith.addf %317, %319 : vector<8x512xf32>
    %321 = vector.extract_strided_slice %320 {offsets = [0, 0], sizes = [8, 384], strides = [1, 1]} : vector<8x512xf32> to vector<8x384xf32>
    %cst_81 = arith.constant 2.000000e-01 : f32
    %322 = vector.broadcast %cst_81 : f32 to vector<8x384xf32>
    %323 = arith.mulf %322, %321 : vector<8x384xf32>
    %cst_82 = arith.constant 5.000000e-01 : f32
    %324 = vector.broadcast %cst_82 : f32 to vector<8x384xf32>
    %325 = arith.addf %323, %324 : vector<8x384xf32>
    %cst_83 = arith.constant 0.000000e+00 : f32
    %cst_84 = arith.constant 1.000000e+00 : f32
    %326 = vector.broadcast %cst_83 : f32 to vector<8x384xf32>
    %327 = arith.maximumf %326, %325 : vector<8x384xf32>
    %328 = vector.broadcast %cst_84 : f32 to vector<8x384xf32>
    %329 = arith.minimumf %328, %327 : vector<8x384xf32>
    %330 = vector.extract_strided_slice %329 {offsets = [0, 0], sizes = [8, 128], strides = [1, 1]} : vector<8x384xf32> to vector<8x128xf32>
    %331 = vector.extract_strided_slice %329 {offsets = [0, 128], sizes = [8, 128], strides = [1, 1]} : vector<8x384xf32> to vector<8x128xf32>
    %332 = vector.extract_strided_slice %329 {offsets = [0, 256], sizes = [8, 128], strides = [1, 1]} : vector<8x384xf32> to vector<8x128xf32>
    %333 = vector.extract_strided_slice %320 {offsets = [0, 384], sizes = [8, 128], strides = [1, 1]} : vector<8x512xf32> to vector<8x128xf32>
    %334 = math.tanh %333 : vector<8x128xf32>
    %335 = arith.mulf %331, %311 : vector<8x128xf32>
    %336 = arith.mulf %330, %334 : vector<8x128xf32>
    %337 = arith.addf %335, %336 : vector<8x128xf32>
    %338 = math.tanh %337 : vector<8x128xf32>
    %339 = arith.mulf %332, %338 : vector<8x128xf32>
    %340 = arith.maximumf %314, %339 : vector<8x128xf32>
    %341 = vector.extract_strided_slice %22 {offsets = [96, 0], sizes = [8, 512], strides = [1, 1]} : vector<128x512xf32> to vector<8x512xf32>
    %342 = vector.extract_strided_slice %24 {offsets = [24, 0], sizes = [8, 512], strides = [1, 1]} : vector<128x512xf32> to vector<8x512xf32>
    %343 = arith.addf %341, %342 : vector<8x512xf32>
    %344 = arith.truncf %339 : vector<8x128xf32> to vector<8x128xbf16>
    %cst_85 = arith.constant dense<0.000000e+00> : vector<8x512xf32>
    %345 = tpu.matmul %344, %25, %cst_85 {dimension_numbers = #tpu.dot_dimension_numbers<[1], [0], [0], [1], [0, 0, 1, 1], [], []>} : vector<8x128xbf16>, vector<128x512xbf16>, vector<8x512xf32> -> vector<8x512xf32>
    %346 = arith.addf %343, %345 : vector<8x512xf32>
    %347 = vector.extract_strided_slice %346 {offsets = [0, 0], sizes = [8, 384], strides = [1, 1]} : vector<8x512xf32> to vector<8x384xf32>
    %cst_86 = arith.constant 2.000000e-01 : f32
    %348 = vector.broadcast %cst_86 : f32 to vector<8x384xf32>
    %349 = arith.mulf %348, %347 : vector<8x384xf32>
    %cst_87 = arith.constant 5.000000e-01 : f32
    %350 = vector.broadcast %cst_87 : f32 to vector<8x384xf32>
    %351 = arith.addf %349, %350 : vector<8x384xf32>
    %cst_88 = arith.constant 0.000000e+00 : f32
    %cst_89 = arith.constant 1.000000e+00 : f32
    %352 = vector.broadcast %cst_88 : f32 to vector<8x384xf32>
    %353 = arith.maximumf %352, %351 : vector<8x384xf32>
    %354 = vector.broadcast %cst_89 : f32 to vector<8x384xf32>
    %355 = arith.minimumf %354, %353 : vector<8x384xf32>
    %356 = vector.extract_strided_slice %355 {offsets = [0, 0], sizes = [8, 128], strides = [1, 1]} : vector<8x384xf32> to vector<8x128xf32>
    %357 = vector.extract_strided_slice %355 {offsets = [0, 128], sizes = [8, 128], strides = [1, 1]} : vector<8x384xf32> to vector<8x128xf32>
    %358 = vector.extract_strided_slice %355 {offsets = [0, 256], sizes = [8, 128], strides = [1, 1]} : vector<8x384xf32> to vector<8x128xf32>
    %359 = vector.extract_strided_slice %346 {offsets = [0, 384], sizes = [8, 128], strides = [1, 1]} : vector<8x512xf32> to vector<8x128xf32>
    %360 = math.tanh %359 : vector<8x128xf32>
    %361 = arith.mulf %357, %337 : vector<8x128xf32>
    %362 = arith.mulf %356, %360 : vector<8x128xf32>
    %363 = arith.addf %361, %362 : vector<8x128xf32>
    %364 = math.tanh %363 : vector<8x128xf32>
    %365 = arith.mulf %358, %364 : vector<8x128xf32>
    %366 = arith.maximumf %340, %365 : vector<8x128xf32>
    %367 = vector.extract_strided_slice %22 {offsets = [104, 0], sizes = [8, 512], strides = [1, 1]} : vector<128x512xf32> to vector<8x512xf32>
    %368 = vector.extract_strided_slice %24 {offsets = [16, 0], sizes = [8, 512], strides = [1, 1]} : vector<128x512xf32> to vector<8x512xf32>
    %369 = arith.addf %367, %368 : vector<8x512xf32>
    %370 = arith.truncf %365 : vector<8x128xf32> to vector<8x128xbf16>
    %cst_90 = arith.constant dense<0.000000e+00> : vector<8x512xf32>
    %371 = tpu.matmul %370, %25, %cst_90 {dimension_numbers = #tpu.dot_dimension_numbers<[1], [0], [0], [1], [0, 0, 1, 1], [], []>} : vector<8x128xbf16>, vector<128x512xbf16>, vector<8x512xf32> -> vector<8x512xf32>
    %372 = arith.addf %369, %371 : vector<8x512xf32>
    %373 = vector.extract_strided_slice %372 {offsets = [0, 0], sizes = [8, 384], strides = [1, 1]} : vector<8x512xf32> to vector<8x384xf32>
    %cst_91 = arith.constant 2.000000e-01 : f32
    %374 = vector.broadcast %cst_91 : f32 to vector<8x384xf32>
    %375 = arith.mulf %374, %373 : vector<8x384xf32>
    %cst_92 = arith.constant 5.000000e-01 : f32
    %376 = vector.broadcast %cst_92 : f32 to vector<8x384xf32>
    %377 = arith.addf %375, %376 : vector<8x384xf32>
    %cst_93 = arith.constant 0.000000e+00 : f32
    %cst_94 = arith.constant 1.000000e+00 : f32
    %378 = vector.broadcast %cst_93 : f32 to vector<8x384xf32>
    %379 = arith.maximumf %378, %377 : vector<8x384xf32>
    %380 = vector.broadcast %cst_94 : f32 to vector<8x384xf32>
    %381 = arith.minimumf %380, %379 : vector<8x384xf32>
    %382 = vector.extract_strided_slice %381 {offsets = [0, 0], sizes = [8, 128], strides = [1, 1]} : vector<8x384xf32> to vector<8x128xf32>
    %383 = vector.extract_strided_slice %381 {offsets = [0, 128], sizes = [8, 128], strides = [1, 1]} : vector<8x384xf32> to vector<8x128xf32>
    %384 = vector.extract_strided_slice %381 {offsets = [0, 256], sizes = [8, 128], strides = [1, 1]} : vector<8x384xf32> to vector<8x128xf32>
    %385 = vector.extract_strided_slice %372 {offsets = [0, 384], sizes = [8, 128], strides = [1, 1]} : vector<8x512xf32> to vector<8x128xf32>
    %386 = math.tanh %385 : vector<8x128xf32>
    %387 = arith.mulf %383, %363 : vector<8x128xf32>
    %388 = arith.mulf %382, %386 : vector<8x128xf32>
    %389 = arith.addf %387, %388 : vector<8x128xf32>
    %390 = math.tanh %389 : vector<8x128xf32>
    %391 = arith.mulf %384, %390 : vector<8x128xf32>
    %392 = arith.maximumf %366, %391 : vector<8x128xf32>
    %393 = vector.extract_strided_slice %22 {offsets = [112, 0], sizes = [8, 512], strides = [1, 1]} : vector<128x512xf32> to vector<8x512xf32>
    %394 = vector.extract_strided_slice %24 {offsets = [8, 0], sizes = [8, 512], strides = [1, 1]} : vector<128x512xf32> to vector<8x512xf32>
    %395 = arith.addf %393, %394 : vector<8x512xf32>
    %396 = arith.truncf %391 : vector<8x128xf32> to vector<8x128xbf16>
    %cst_95 = arith.constant dense<0.000000e+00> : vector<8x512xf32>
    %397 = tpu.matmul %396, %25, %cst_95 {dimension_numbers = #tpu.dot_dimension_numbers<[1], [0], [0], [1], [0, 0, 1, 1], [], []>} : vector<8x128xbf16>, vector<128x512xbf16>, vector<8x512xf32> -> vector<8x512xf32>
    %398 = arith.addf %395, %397 : vector<8x512xf32>
    %399 = vector.extract_strided_slice %398 {offsets = [0, 0], sizes = [8, 384], strides = [1, 1]} : vector<8x512xf32> to vector<8x384xf32>
    %cst_96 = arith.constant 2.000000e-01 : f32
    %400 = vector.broadcast %cst_96 : f32 to vector<8x384xf32>
    %401 = arith.mulf %400, %399 : vector<8x384xf32>
    %cst_97 = arith.constant 5.000000e-01 : f32
    %402 = vector.broadcast %cst_97 : f32 to vector<8x384xf32>
    %403 = arith.addf %401, %402 : vector<8x384xf32>
    %cst_98 = arith.constant 0.000000e+00 : f32
    %cst_99 = arith.constant 1.000000e+00 : f32
    %404 = vector.broadcast %cst_98 : f32 to vector<8x384xf32>
    %405 = arith.maximumf %404, %403 : vector<8x384xf32>
    %406 = vector.broadcast %cst_99 : f32 to vector<8x384xf32>
    %407 = arith.minimumf %406, %405 : vector<8x384xf32>
    %408 = vector.extract_strided_slice %407 {offsets = [0, 0], sizes = [8, 128], strides = [1, 1]} : vector<8x384xf32> to vector<8x128xf32>
    %409 = vector.extract_strided_slice %407 {offsets = [0, 128], sizes = [8, 128], strides = [1, 1]} : vector<8x384xf32> to vector<8x128xf32>
    %410 = vector.extract_strided_slice %407 {offsets = [0, 256], sizes = [8, 128], strides = [1, 1]} : vector<8x384xf32> to vector<8x128xf32>
    %411 = vector.extract_strided_slice %398 {offsets = [0, 384], sizes = [8, 128], strides = [1, 1]} : vector<8x512xf32> to vector<8x128xf32>
    %412 = math.tanh %411 : vector<8x128xf32>
    %413 = arith.mulf %409, %389 : vector<8x128xf32>
    %414 = arith.mulf %408, %412 : vector<8x128xf32>
    %415 = arith.addf %413, %414 : vector<8x128xf32>
    %416 = math.tanh %415 : vector<8x128xf32>
    %417 = arith.mulf %410, %416 : vector<8x128xf32>
    %418 = arith.maximumf %392, %417 : vector<8x128xf32>
    %419 = vector.extract_strided_slice %22 {offsets = [120, 0], sizes = [8, 512], strides = [1, 1]} : vector<128x512xf32> to vector<8x512xf32>
    %420 = vector.extract_strided_slice %24 {offsets = [0, 0], sizes = [8, 512], strides = [1, 1]} : vector<128x512xf32> to vector<8x512xf32>
    %421 = arith.addf %419, %420 : vector<8x512xf32>
    %422 = arith.truncf %417 : vector<8x128xf32> to vector<8x128xbf16>
    %cst_100 = arith.constant dense<0.000000e+00> : vector<8x512xf32>
    %423 = tpu.matmul %422, %25, %cst_100 {dimension_numbers = #tpu.dot_dimension_numbers<[1], [0], [0], [1], [0, 0, 1, 1], [], []>} : vector<8x128xbf16>, vector<128x512xbf16>, vector<8x512xf32> -> vector<8x512xf32>
    %424 = arith.addf %421, %423 : vector<8x512xf32>
    %425 = vector.extract_strided_slice %424 {offsets = [0, 0], sizes = [8, 384], strides = [1, 1]} : vector<8x512xf32> to vector<8x384xf32>
    %cst_101 = arith.constant 2.000000e-01 : f32
    %426 = vector.broadcast %cst_101 : f32 to vector<8x384xf32>
    %427 = arith.mulf %426, %425 : vector<8x384xf32>
    %cst_102 = arith.constant 5.000000e-01 : f32
    %428 = vector.broadcast %cst_102 : f32 to vector<8x384xf32>
    %429 = arith.addf %427, %428 : vector<8x384xf32>
    %cst_103 = arith.constant 0.000000e+00 : f32
    %cst_104 = arith.constant 1.000000e+00 : f32
    %430 = vector.broadcast %cst_103 : f32 to vector<8x384xf32>
    %431 = arith.maximumf %430, %429 : vector<8x384xf32>
    %432 = vector.broadcast %cst_104 : f32 to vector<8x384xf32>
    %433 = arith.minimumf %432, %431 : vector<8x384xf32>
    %434 = vector.extract_strided_slice %433 {offsets = [0, 0], sizes = [8, 128], strides = [1, 1]} : vector<8x384xf32> to vector<8x128xf32>
    %435 = vector.extract_strided_slice %433 {offsets = [0, 128], sizes = [8, 128], strides = [1, 1]} : vector<8x384xf32> to vector<8x128xf32>
    %436 = vector.extract_strided_slice %433 {offsets = [0, 256], sizes = [8, 128], strides = [1, 1]} : vector<8x384xf32> to vector<8x128xf32>
    %437 = vector.extract_strided_slice %424 {offsets = [0, 384], sizes = [8, 128], strides = [1, 1]} : vector<8x512xf32> to vector<8x128xf32>
    %438 = math.tanh %437 : vector<8x128xf32>
    %439 = arith.mulf %435, %415 : vector<8x128xf32>
    %440 = arith.mulf %434, %438 : vector<8x128xf32>
    %441 = arith.addf %439, %440 : vector<8x128xf32>
    %442 = math.tanh %441 : vector<8x128xf32>
    %443 = arith.mulf %436, %442 : vector<8x128xf32>
    %444 = arith.maximumf %418, %443 : vector<8x128xf32>
    %c0_105 = arith.constant 0 : index
    %c0_106 = arith.constant 0 : index
    %445 = vector.load %arg9[%c0_105, %c0_106] : memref<128x50xf32, #tpu.memory_space<vmem>>, vector<128x50xf32>
    %cst_107 = arith.constant dense<0.000000e+00> : vector<8x50xf32>
    %446 = tpu.matmul %444, %445, %cst_107 {dimension_numbers = #tpu.dot_dimension_numbers<[1], [0], [0], [1], [0, 0, 1, 1], [], []>} : vector<8x128xf32>, vector<128x50xf32>, vector<8x50xf32> -> vector<8x50xf32>
    %c0_108 = arith.constant 0 : index
    %c0_109 = arith.constant 0 : index
    %447 = vector.load %arg10[%c0_108, %c0_109] : memref<1x50xf32, #tpu.memory_space<vmem>>, vector<1x50xf32>
    %448 = vector.broadcast %447 : vector<1x50xf32> to vector<8x50xf32>
    %449 = arith.addf %446, %448 : vector<8x50xf32>
    %cst_110 = arith.constant 0.000000e+00 : f32
    %450 = vector.broadcast %cst_110 : f32 to vector<8x50xf32>
    %451 = arith.maximumf %449, %450 : vector<8x50xf32>
    %c0_111 = arith.constant 0 : index
    %c0_112 = arith.constant 0 : index
    %452 = vector.load %arg11[%c0_111, %c0_112] : memref<50x128xf32, #tpu.memory_space<vmem>>, vector<50x128xf32>
    %cst_113 = arith.constant dense<0.000000e+00> : vector<8x128xf32>
    %453 = tpu.matmul %451, %452, %cst_113 {dimension_numbers = #tpu.dot_dimension_numbers<[1], [0], [0], [1], [0, 0, 1, 1], [], []>} : vector<8x50xf32>, vector<50x128xf32>, vector<8x128xf32> -> vector<8x128xf32>
    %c0_114 = arith.constant 0 : index
    %c0_115 = arith.constant 0 : index
    %454 = vector.load %arg12[%c0_114, %c0_115] : memref<1x128xf32, #tpu.memory_space<vmem>>, vector<1x128xf32>
    %455 = vector.broadcast %454 : vector<1x128xf32> to vector<8x128xf32>
    %456 = arith.addf %453, %455 : vector<8x128xf32>
    %cst_116 = arith.constant dense<0xFF800000> : vector<8xf32>
    %457 = vector.multi_reduction <maximumf>, %456, %cst_116 [1] : vector<8x128xf32> to vector<8xf32>
    %458 = vector.shape_cast %457 : vector<8xf32> to vector<8x1xf32>
    %459 = vector.broadcast %458 : vector<8x1xf32> to vector<8x128xf32>
    %460 = arith.subf %456, %459 : vector<8x128xf32>
    %461 = math.exp %460 : vector<8x128xf32>
    %cst_117 = arith.constant dense<0.000000e+00> : vector<8xf32>
    %462 = vector.multi_reduction <add>, %461, %cst_117 [1] : vector<8x128xf32> to vector<8xf32>
    %463 = vector.shape_cast %462 : vector<8xf32> to vector<8x1xf32>
    %464 = vector.broadcast %463 : vector<8x1xf32> to vector<8x128xf32>
    %465 = arith.divf %461, %464 : vector<8x128xf32>
    %c0_118 = arith.constant 0 : index
    %c0_119 = arith.constant 0 : index
    %466 = vector.load %arg13[%c0_118, %c0_119] : memref<8x128xf32, #tpu.memory_space<vmem>>, vector<8x128xf32>
    tpu.vector_store %arg13[%c0_118, %c0_119], %465 {strides = array<i32>} : memref<8x128xf32, #tpu.memory_space<vmem>>, vector<8x128xf32>,
    return
  }
  func.func @transform_0(%arg0: i32) -> (i32, i32, i32) {
    %c0_i32 = arith.constant 0 : i32
    %c0_i32_0 = arith.constant 0 : i32
    %c0_i32_1 = arith.constant 0 : i32
    return %arg0, %c0_i32, %c0_i32_0 : i32, i32, i32
  }
  func.func @transform_1(%arg0: i32) -> (i32, i32, i32) {
    %c0_i32 = arith.constant 0 : i32
    %c0_i32_0 = arith.constant 0 : i32
    %c0_i32_1 = arith.constant 0 : i32
    return %arg0, %c0_i32, %c0_i32_0 : i32, i32, i32
  }
  func.func @transform_2(%arg0: i32) -> (i32, i32) {
    %c0_i32 = arith.constant 0 : i32
    %c0_i32_0 = arith.constant 0 : i32
    %c0_i32_1 = arith.constant 0 : i32
    return %c0_i32, %c0_i32_0 : i32, i32
  }
  func.func @transform_3(%arg0: i32) -> (i32, i32) {
    %c0_i32 = arith.constant 0 : i32
    %c0_i32_0 = arith.constant 0 : i32
    %c0_i32_1 = arith.constant 0 : i32
    return %c0_i32, %c0_i32_0 : i32, i32
  }
  func.func @transform_4(%arg0: i32) -> (i32, i32) {
    %c0_i32 = arith.constant 0 : i32
    %c0_i32_0 = arith.constant 0 : i32
    %c0_i32_1 = arith.constant 0 : i32
    return %c0_i32, %c0_i32_0 : i32, i32
  }
  func.func @transform_5(%arg0: i32) -> (i32, i32) {
    %c0_i32 = arith.constant 0 : i32
    %c0_i32_0 = arith.constant 0 : i32
    %c0_i32_1 = arith.constant 0 : i32
    return %c0_i32, %c0_i32_0 : i32, i32
  }
  func.func @transform_6(%arg0: i32) -> (i32, i32) {
    %c0_i32 = arith.constant 0 : i32
    %c0_i32_0 = arith.constant 0 : i32
    %c0_i32_1 = arith.constant 0 : i32
    return %c0_i32, %c0_i32_0 : i32, i32
  }
  func.func @transform_7(%arg0: i32) -> (i32, i32) {
    %c0_i32 = arith.constant 0 : i32
    %c0_i32_0 = arith.constant 0 : i32
    %c0_i32_1 = arith.constant 0 : i32
    return %c0_i32, %c0_i32_0 : i32, i32
  }
  func.func @transform_8(%arg0: i32) -> (i32, i32) {
    %c0_i32 = arith.constant 0 : i32
    %c0_i32_0 = arith.constant 0 : i32
    %c0_i32_1 = arith.constant 0 : i32
    return %c0_i32, %c0_i32_0 : i32, i32
  }
  func.func @transform_9(%arg0: i32) -> (i32, i32) {
    %c0_i32 = arith.constant 0 : i32
    %c0_i32_0 = arith.constant 0 : i32
    %c0_i32_1 = arith.constant 0 : i32
    return %c0_i32, %c0_i32_0 : i32, i32
  }
  func.func @transform_10(%arg0: i32) -> (i32, i32) {
    %c0_i32 = arith.constant 0 : i32
    %c0_i32_0 = arith.constant 0 : i32
    %c0_i32_1 = arith.constant 0 : i32
    return %c0_i32, %c0_i32_0 : i32, i32
  }
  func.func @transform_11(%arg0: i32) -> (i32, i32) {
    %c0_i32 = arith.constant 0 : i32
    %c0_i32_0 = arith.constant 0 : i32
    %c0_i32_1 = arith.constant 0 : i32
    return %c0_i32, %c0_i32_0 : i32, i32
  }
  func.func @transform_12(%arg0: i32) -> (i32, i32) {
    %c0_i32 = arith.constant 0 : i32
    %c0_i32_0 = arith.constant 0 : i32
    return %arg0, %c0_i32 : i32, i32
  }
}

</mosaic_0001>

<llo_original>
// kernel: cnnblstm_forward.1
$region0: #{cnnblstm_forward.1}
  #allocation0 [shape = 'u32[]', space=smem, size = 0x4, offset = 0x4, fixed_abs, tag = 'smem constant byte address 0x4 - core index']
  #allocation1 [shape = 'u32[144,128]{1,0:T(1,128)}', space=vmem, size = 0x12000, scoped, tag = 'internal scratch']
  %s0 = inlined_call_operand.vmem [shape: bf16[2,128,128], index: 0, kind: input, shape index: {}]
  %s1 = inlined_call_operand.vmem [shape: bf16[2,128,128], index: 1, kind: input, shape index: {}]
  %s2 = inlined_call_operand.vmem [shape: bf16[128,128], index: 2, kind: input, shape index: {}]
  %s3 = inlined_call_operand.vmem [shape: f32[1,128], index: 3, kind: input, shape index: {}]
  %s4 = inlined_call_operand.vmem [shape: bf16[128,512], index: 4, kind: input, shape index: {}]
  %s5 = inlined_call_operand.vmem [shape: bf16[128,512], index: 5, kind: input, shape index: {}]
  %s6 = inlined_call_operand.vmem [shape: bf16[128,512], index: 6, kind: input, shape index: {}]
  %s7 = inlined_call_operand.vmem [shape: f32[1,512], index: 7, kind: input, shape index: {}]
  %s8 = inlined_call_operand.vmem [shape: f32[128,50], index: 8, kind: input, shape index: {}]
  %s9 = inlined_call_operand.vmem [shape: f32[1,50], index: 9, kind: input, shape index: {}]
  %s10 = inlined_call_operand.vmem [shape: f32[50,128], index: 10, kind: input, shape index: {}]
  %s11 = inlined_call_operand.vmem [shape: f32[1,128], index: 11, kind: input, shape index: {}]
  %s12 = inlined_call_operand.hbm [shape: f32[16,128], index: 12, kind: output, shape index: {}]
  %s13 = sld [smem:[#allocation0]]
  $region81: #{cnnblstm_forward.1} parent=0
    _
  %s15 = ssub.s32 1, %s13
  %s16 = scalar_select 0, %s15, %s13
  $region1: #{cnnblstm_forward.1} parent=0
    #allocation2 [shape = 'u8[8192]{0}', space=vmem, size = 0x2000, scoped, tag = 'output window, operand 0']
    #allocation3 [shape = 's32[2]{0}', space=sflag, size = 0x8, scoped, tag = 'scoped memory for cnnblstm_forward.1']
    %17 = vsyncpa [#allocation3], 0
    %s18 = scalar_lea.sflag [#allocation3], 1
    %19 = vsyncpa %s18, 0
    loop: start=0, step=1, limit=4
    $region2: #{cnnblstm_forward.1} parent=1 // loop_pre_header
      _
    $region3: #{cnnblstm_forward.1} parent=1 // loop_header
      %s21 = sphi 0, %s25
      %p22 = scmp.ge.s32.totalorder %s21, 4
      %s31 = sphi 0, %s33
      %s34 = sphi 0, %s31
      %s35 = sphi 0, %s34
      %s51 = sphi 0, %s35
      %s57 = sphi 0, %s59
      %s60 = sphi 0, %s57
      %s61 = sphi 0, %s60
      %s77 = sphi 0, %s61
      %s81 = sphi 0, %s81
      %s83 = sphi 0, %s81
      %s84 = sphi 0, %s83
      %s98 = sphi 0, %s84
      %s102 = sphi 0, %s102
      %s104 = sphi 0, %s102
      %s105 = sphi 0, %s104
      %s119 = sphi 0, %s105
      %s123 = sphi 0, %s123
      %s125 = sphi 0, %s123
      %s126 = sphi 0, %s125
      %s140 = sphi 0, %s126
      %s144 = sphi 0, %s144
      %s146 = sphi 0, %s144
      %s147 = sphi 0, %s146
      %s161 = sphi 0, %s147
      %s165 = sphi 0, %s165
      %s167 = sphi 0, %s165
      %s168 = sphi 0, %s167
      %s182 = sphi 0, %s168
      %s186 = sphi 0, %s186
      %s188 = sphi 0, %s186
      %s189 = sphi 0, %s188
      %s203 = sphi 0, %s189
      %s207 = sphi 0, %s207
      %s209 = sphi 0, %s207
      %s210 = sphi 0, %s209
      %s224 = sphi 0, %s210
      %s228 = sphi 0, %s228
      %s230 = sphi 0, %s228
      %s231 = sphi 0, %s230
      %s245 = sphi 0, %s231
      %s249 = sphi 0, %s249
      %s251 = sphi 0, %s249
      %s252 = sphi 0, %s251
      %s266 = sphi 0, %s252
      %s270 = sphi 0, %s270
      %s272 = sphi 0, %s270
      %s273 = sphi 0, %s272
      %s287 = sphi 0, %s273
      %s293 = sphi 0, %s295
      %s296 = sphi 0, %s293
      %s297 = sphi 0, %s296
      %s313 = sphi 0, %s297
    $region4: #{cnnblstm_forward.1} parent=1 // loop_header_branch
      %24 = sbr.rel (%p22) target = $region8
    $region5: #{cnnblstm_forward.1} parent=1 // loop_body
      %s26 = ssub.s32 %s21, 1
      %s27 = ssub.s32 %s21, 2
      %s28 = sadd.s32 %s21, 1
      %s29 = ssub.s32 %s21, %s28
      %p30 = scmp.eq.s32.totalorder %s29, 0
      %s32 = sadd.s32 %s31, 1
      %s33 = scalar_select %p30, %s31, %s32
      %p36 = pneg %p30
      %p37 = scmp.eq.s32.totalorder %s21, 1
      %p38 = por %p36, %p37
      %p39 = scmp.ne.s32.totalorder %s31, %s34
      %p40 = scmp.eq.s32.totalorder %s21, 0
      %p41 = por %p39, %p40
      %p42 = scmp.ne.s32.totalorder %s31, %s34
      %p43 = scmp.eq.s32.totalorder %s26, 1
      %p44 = por %p42, %p43
      %p45 = scmp.ne.s32.totalorder %s34, %s35
      %p46 = scmp.eq.s32.totalorder %s26, 0
      %p47 = por %p45, %p46
      %p48 = scmp.ne.s32.totalorder %s34, %s35
      %p49 = scmp.eq.s32.totalorder %s27, 1
      %p50 = por %p48, %p49
      %p52 = scmp.ne.s32.totalorder %s35, %s51
      %p53 = scmp.eq.s32.totalorder %s27, 0
      %p54 = por %p52, %p53
      %s55 = ssub.s32 %s21, %s28
      %p56 = scmp.eq.s32.totalorder %s55, 0
      %s58 = sadd.s32 %s57, 1
      %s59 = scalar_select %p56, %s57, %s58
      %p62 = pneg %p56
      %p63 = scmp.eq.s32.totalorder %s21, 1
      %p64 = por %p62, %p63
      %p65 = scmp.ne.s32.totalorder %s57, %s60
      %p66 = scmp.eq.s32.totalorder %s21, 0
      %p67 = por %p65, %p66
      %p68 = scmp.ne.s32.totalorder %s57, %s60
      %p69 = scmp.eq.s32.totalorder %s26, 1
      %p70 = por %p68, %p69
      %p71 = scmp.ne.s32.totalorder %s60, %s61
      %p72 = scmp.eq.s32.totalorder %s26, 0
      %p73 = por %p71, %p72
      %p74 = scmp.ne.s32.totalorder %s60, %s61
      %p75 = scmp.eq.s32.totalorder %s27, 1
      %p76 = por %p74, %p75
      %p78 = scmp.ne.s32.totalorder %s61, %s77
      %p79 = scmp.eq.s32.totalorder %s27, 0
      %p80 = por %p78, %p79
      %s82 = sadd.s32 %s81, 1
      %p85 = scmp.eq.s32.totalorder %s21, 1
      %p86 = scmp.ne.s32.totalorder %s81, %s83
      %p87 = scmp.eq.s32.totalorder %s21, 0
      %p88 = por %p86, %p87
      %p89 = scmp.ne.s32.totalorder %s81, %s83
      %p90 = scmp.eq.s32.totalorder %s26, 1
      %p91 = por %p89, %p90
      %p92 = scmp.ne.s32.totalorder %s83, %s84
      %p93 = scmp.eq.s32.totalorder %s26, 0
      %p94 = por %p92, %p93
      %p95 = scmp.ne.s32.totalorder %s83, %s84
      %p96 = scmp.eq.s32.totalorder %s27, 1
      %p97 = por %p95, %p96
      %p99 = scmp.ne.s32.totalorder %s84, %s98
      %p100 = scmp.eq.s32.totalorder %s27, 0
      %p101 = por %p99, %p100
      %s103 = sadd.s32 %s102, 1
      %p106 = scmp.eq.s32.totalorder %s21, 1
      %p107 = scmp.ne.s32.totalorder %s102, %s104
      %p108 = scmp.eq.s32.totalorder %s21, 0
      %p109 = por %p107, %p108
      %p110 = scmp.ne.s32.totalorder %s102, %s104
      %p111 = scmp.eq.s32.totalorder %s26, 1
      %p112 = por %p110, %p111
      %p113 = scmp.ne.s32.totalorder %s104, %s105
      %p114 = scmp.eq.s32.totalorder %s26, 0
      %p115 = por %p113, %p114
      %p116 = scmp.ne.s32.totalorder %s104, %s105
      %p117 = scmp.eq.s32.totalorder %s27, 1
      %p118 = por %p116, %p117
      %p120 = scmp.ne.s32.totalorder %s105, %s119
      %p121 = scmp.eq.s32.totalorder %s27, 0
      %p122 = por %p120, %p121
      %s124 = sadd.s32 %s123, 1
      %p127 = scmp.eq.s32.totalorder %s21, 1
      %p128 = scmp.ne.s32.totalorder %s123, %s125
      %p129 = scmp.eq.s32.totalorder %s21, 0
      %p130 = por %p128, %p129
      %p131 = scmp.ne.s32.totalorder %s123, %s125
      %p132 = scmp.eq.s32.totalorder %s26, 1
      %p133 = por %p131, %p132
      %p134 = scmp.ne.s32.totalorder %s125, %s126
      %p135 = scmp.eq.s32.totalorder %s26, 0
      %p136 = por %p134, %p135
      %p137 = scmp.ne.s32.totalorder %s125, %s126
      %p138 = scmp.eq.s32.totalorder %s27, 1
      %p139 = por %p137, %p138
      %p141 = scmp.ne.s32.totalorder %s126, %s140
      %p142 = scmp.eq.s32.totalorder %s27, 0
      %p143 = por %p141, %p142
      %s145 = sadd.s32 %s144, 1
      %p148 = scmp.eq.s32.totalorder %s21, 1
      %p149 = scmp.ne.s32.totalorder %s144, %s146
      %p150 = scmp.eq.s32.totalorder %s21, 0
      %p151 = por %p149, %p150
      %p152 = scmp.ne.s32.totalorder %s144, %s146
      %p153 = scmp.eq.s32.totalorder %s26, 1
      %p154 = por %p152, %p153
      %p155 = scmp.ne.s32.totalorder %s146, %s147
      %p156 = scmp.eq.s32.totalorder %s26, 0
      %p157 = por %p155, %p156
      %p158 = scmp.ne.s32.totalorder %s146, %s147
      %p159 = scmp.eq.s32.totalorder %s27, 1
      %p160 = por %p158, %p159
      %p162 = scmp.ne.s32.totalorder %s147, %s161
      %p163 = scmp.eq.s32.totalorder %s27, 0
      %p164 = por %p162, %p163
      %s166 = sadd.s32 %s165, 1
      %p169 = scmp.eq.s32.totalorder %s21, 1
      %p170 = scmp.ne.s32.totalorder %s165, %s167
      %p171 = scmp.eq.s32.totalorder %s21, 0
      %p172 = por %p170, %p171
      %p173 = scmp.ne.s32.totalorder %s165, %s167
      %p174 = scmp.eq.s32.totalorder %s26, 1
      %p175 = por %p173, %p174
      %p176 = scmp.ne.s32.totalorder %s167, %s168
      %p177 = scmp.eq.s32.totalorder %s26, 0
      %p178 = por %p176, %p177
      %p179 = scmp.ne.s32.totalorder %s167, %s168
      %p180 = scmp.eq.s32.totalorder %s27, 1
      %p181 = por %p179, %p180
      %p183 = scmp.ne.s32.totalorder %s168, %s182
      %p184 = scmp.eq.s32.totalorder %s27, 0
      %p185 = por %p183, %p184
      %s187 = sadd.s32 %s186, 1
      %p190 = scmp.eq.s32.totalorder %s21, 1
      %p191 = scmp.ne.s32.totalorder %s186, %s188
      %p192 = scmp.eq.s32.totalorder %s21, 0
      %p193 = por %p191, %p192
      %p194 = scmp.ne.s32.totalorder %s186, %s188
      %p195 = scmp.eq.s32.totalorder %s26, 1
      %p196 = por %p194, %p195
      %p197 = scmp.ne.s32.totalorder %s188, %s189
      %p198 = scmp.eq.s32.totalorder %s26, 0
      %p199 = por %p197, %p198
      %p200 = scmp.ne.s32.totalorder %s188, %s189
      %p201 = scmp.eq.s32.totalorder %s27, 1
      %p202 = por %p200, %p201
      %p204 = scmp.ne.s32.totalorder %s189, %s203
      %p205 = scmp.eq.s32.totalorder %s27, 0
      %p206 = por %p204, %p205
      %s208 = sadd.s32 %s207, 1
      %p211 = scmp.eq.s32.totalorder %s21, 1
      %p212 = scmp.ne.s32.totalorder %s207, %s209
      %p213 = scmp.eq.s32.totalorder %s21, 0
      %p214 = por %p212, %p213
      %p215 = scmp.ne.s32.totalorder %s207, %s209
      %p216 = scmp.eq.s32.totalorder %s26, 1
      %p217 = por %p215, %p216
      %p218 = scmp.ne.s32.totalorder %s209, %s210
      %p219 = scmp.eq.s32.totalorder %s26, 0
      %p220 = por %p218, %p219
      %p221 = scmp.ne.s32.totalorder %s209, %s210
      %p222 = scmp.eq.s32.totalorder %s27, 1
      %p223 = por %p221, %p222
      %p225 = scmp.ne.s32.totalorder %s210, %s224
      %p226 = scmp.eq.s32.totalorder %s27, 0
      %p227 = por %p225, %p226
      %s229 = sadd.s32 %s228, 1
      %p232 = scmp.eq.s32.totalorder %s21, 1
      %p233 = scmp.ne.s32.totalorder %s228, %s230
      %p234 = scmp.eq.s32.totalorder %s21, 0
      %p235 = por %p233, %p234
      %p236 = scmp.ne.s32.totalorder %s228, %s230
      %p237 = scmp.eq.s32.totalorder %s26, 1
      %p238 = por %p236, %p237
      %p239 = scmp.ne.s32.totalorder %s230, %s231
      %p240 = scmp.eq.s32.totalorder %s26, 0
      %p241 = por %p239, %p240
      %p242 = scmp.ne.s32.totalorder %s230, %s231
      %p243 = scmp.eq.s32.totalorder %s27, 1
      %p244 = por %p242, %p243
      %p246 = scmp.ne.s32.totalorder %s231, %s245
      %p247 = scmp.eq.s32.totalorder %s27, 0
      %p248 = por %p246, %p247
      %s250 = sadd.s32 %s249, 1
      %p253 = scmp.eq.s32.totalorder %s21, 1
      %p254 = scmp.ne.s32.totalorder %s249, %s251
      %p255 = scmp.eq.s32.totalorder %s21, 0
      %p256 = por %p254, %p255
      %p257 = scmp.ne.s32.totalorder %s249, %s251
      %p258 = scmp.eq.s32.totalorder %s26, 1
      %p259 = por %p257, %p258
      %p260 = scmp.ne.s32.totalorder %s251, %s252
      %p261 = scmp.eq.s32.totalorder %s26, 0
      %p262 = por %p260, %p261
      %p263 = scmp.ne.s32.totalorder %s251, %s252
      %p264 = scmp.eq.s32.totalorder %s27, 1
      %p265 = por %p263, %p264
      %p267 = scmp.ne.s32.totalorder %s252, %s266
      %p268 = scmp.eq.s32.totalorder %s27, 0
      %p269 = por %p267, %p268
      %s271 = sadd.s32 %s270, 1
      %p274 = scmp.eq.s32.totalorder %s21, 1
      %p275 = scmp.ne.s32.totalorder %s270, %s272
      %p276 = scmp.eq.s32.totalorder %s21, 0
      %p277 = por %p275, %p276
      %p278 = scmp.ne.s32.totalorder %s270, %s272
      %p279 = scmp.eq.s32.totalorder %s26, 1
      %p280 = por %p278, %p279
      %p281 = scmp.ne.s32.totalorder %s272, %s273
      %p282 = scmp.eq.s32.totalorder %s26, 0
      %p283 = por %p281, %p282
      %p284 = scmp.ne.s32.totalorder %s272, %s273
      %p285 = scmp.eq.s32.totalorder %s27, 1
      %p286 = por %p284, %p285
      %p288 = scmp.ne.s32.totalorder %s273, %s287
      %p289 = scmp.eq.s32.totalorder %s27, 0
      %p290 = por %p288, %p289
      %s291 = ssub.s32 %s21, %s28
      %p292 = scmp.eq.s32.totalorder %s291, 0
      %s294 = sadd.s32 %s293, 1
      %s295 = scalar_select %p292, %s293, %s294
      %p298 = pneg %p292
      %p299 = scmp.eq.s32.totalorder %s21, 1
      %p300 = por %p298, %p299
      %p301 = scmp.ne.s32.totalorder %s293, %s296
      %p302 = scmp.eq.s32.totalorder %s21, 0
      %p303 = por %p301, %p302
      %p304 = scmp.ne.s32.totalorder %s293, %s296
      %p305 = scmp.eq.s32.totalorder %s26, 1
      %p306 = por %p304, %p305
      %p307 = scmp.ne.s32.totalorder %s296, %s297
      %p308 = scmp.eq.s32.totalorder %s26, 0
      %p309 = por %p307, %p308
      %p310 = scmp.ne.s32.totalorder %s296, %s297
      %p311 = scmp.eq.s32.totalorder %s27, 1
      %p312 = por %p310, %p311
      %p314 = scmp.ne.s32.totalorder %s297, %s313
      %p315 = scmp.eq.s32.totalorder %s27, 0
      %p316 = por %p314, %p315
      %p317 = scmp.le.s32.totalorder 1, %s21
      %p318 = scmp.lt.s32.totalorder %s21, 3
      %p319 = pnand %p317, %p318
      %p320 = pneg %p319
      // Predicated region
      $region9: #{cnnblstm_forward.1} parent=5 // pred_check
        _
      $region10: #{cnnblstm_forward.1} parent=5 // pred_check_branch
        %322 = sbr.rel (%p319) target = $region12
      $region11: #{cnnblstm_forward.1} parent=5 // pred_region
        %s323 = ssub.s32 %s21, 1
        // Predicated region
        $region13: #{cnnblstm_forward.1} parent=11 // pred_check
          %p324 = pneg %p94
        $region14: #{cnnblstm_forward.1} parent=11 // pred_check_branch
          %326 = sbr.rel (%p324) target = $region16
        $region15: #{cnnblstm_forward.1} parent=11 // pred_region
          _
        $region16: #{cnnblstm_forward.1} parent=11 // pred_fallthru
          _
        // Predicated region
        $region17: #{cnnblstm_forward.1} parent=11 // pred_check
          %p327 = pneg %p115
        $region18: #{cnnblstm_forward.1} parent=11 // pred_check_branch
          %329 = sbr.rel (%p327) target = $region20
        $region19: #{cnnblstm_forward.1} parent=11 // pred_region
          _
        $region20: #{cnnblstm_forward.1} parent=11 // pred_fallthru
          _
        // Predicated region
        $region21: #{cnnblstm_forward.1} parent=11 // pred_check
          %p330 = pneg %p136
        $region22: #{cnnblstm_forward.1} parent=11 // pred_check_branch
          %332 = sbr.rel (%p330) target = $region24
        $region23: #{cnnblstm_forward.1} parent=11 // pred_region
          _
        $region24: #{cnnblstm_forward.1} parent=11 // pred_fallthru
          _
        // Predicated region
        $region25: #{cnnblstm_forward.1} parent=11 // pred_check
          %p333 = pneg %p157
        $region26: #{cnnblstm_forward.1} parent=11 // pred_check_branch
          %335 = sbr.rel (%p333) target = $region28
        $region27: #{cnnblstm_forward.1} parent=11 // pred_region
          _
        $region28: #{cnnblstm_forward.1} parent=11 // pred_fallthru
          _
        // Predicated region
        $region29: #{cnnblstm_forward.1} parent=11 // pred_check
          %p336 = pneg %p178
        $region30: #{cnnblstm_forward.1} parent=11 // pred_check_branch
          %338 = sbr.rel (%p336) target = $region32
        $region31: #{cnnblstm_forward.1} parent=11 // pred_region
          _
        $region32: #{cnnblstm_forward.1} parent=11 // pred_fallthru
          _
        // Predicated region
        $region33: #{cnnblstm_forward.1} parent=11 // pred_check
          %p339 = pneg %p199
        $region34: #{cnnblstm_forward.1} parent=11 // pred_check_branch
          %341 = sbr.rel (%p339) target = $region36
        $region35: #{cnnblstm_forward.1} parent=11 // pred_region
          _
        $region36: #{cnnblstm_forward.1} parent=11 // pred_fallthru
          _
        // Predicated region
        $region37: #{cnnblstm_forward.1} parent=11 // pred_check
          %p342 = pneg %p220
        $region38: #{cnnblstm_forward.1} parent=11 // pred_check_branch
          %344 = sbr.rel (%p342) target = $region40
        $region39: #{cnnblstm_forward.1} parent=11 // pred_region
          _
        $region40: #{cnnblstm_forward.1} parent=11 // pred_fallthru
          _
        // Predicated region
        $region41: #{cnnblstm_forward.1} parent=11 // pred_check
          %p345 = pneg %p241
        $region42: #{cnnblstm_forward.1} parent=11 // pred_check_branch
          %347 = sbr.rel (%p345) target = $region44
        $region43: #{cnnblstm_forward.1} parent=11 // pred_region
          _
        $region44: #{cnnblstm_forward.1} parent=11 // pred_fallthru
          _
        // Predicated region
        $region45: #{cnnblstm_forward.1} parent=11 // pred_check
          %p348 = pneg %p262
        $region46: #{cnnblstm_forward.1} parent=11 // pred_check_branch
          %350 = sbr.rel (%p348) target = $region48
        $region47: #{cnnblstm_forward.1} parent=11 // pred_region
          _
        $region48: #{cnnblstm_forward.1} parent=11 // pred_fallthru
          _
        // Predicated region
        $region49: #{cnnblstm_forward.1} parent=11 // pred_check
          %p351 = pneg %p283
        $region50: #{cnnblstm_forward.1} parent=11 // pred_check_branch
          %353 = sbr.rel (%p351) target = $region52
        $region51: #{cnnblstm_forward.1} parent=11 // pred_region
          _
        $region52: #{cnnblstm_forward.1} parent=11 // pred_fallthru
          _
      $region12: #{cnnblstm_forward.1} parent=5 // pred_fallthru
        _
      %p354 = scmp.lt.s32.totalorder %s21, 2
      // Predicated region
      $region53: #{cnnblstm_forward.1} parent=5 // pred_check
        %p355 = pneg %p354
      $region54: #{cnnblstm_forward.1} parent=5 // pred_check_branch
        %357 = sbr.rel (%p355) target = $region56
      $region55: #{cnnblstm_forward.1} parent=5 // pred_region
        // Predicated region
        $region57: #{cnnblstm_forward.1} parent=55 // pred_check
          %p358 = pneg %p41
        $region58: #{cnnblstm_forward.1} parent=55 // pred_check_branch
          %360 = sbr.rel (%p358) target = $region60
        $region59: #{cnnblstm_forward.1} parent=55 // pred_region
          %p361 = scmp.lt.s32.totalorder %s21, 1
          %s362 = scalar_select %p361, %s21, 1
          %s363 = smul.addr %s362, 16
          %s364 = smul.addr %s363, 4
          %s365 = scalar_lea.vmem %s0, %s364
        $region60: #{cnnblstm_forward.1} parent=55 // pred_fallthru
          _
        // Predicated region
        $region61: #{cnnblstm_forward.1} parent=55 // pred_check
          %p366 = pneg %p67
        $region62: #{cnnblstm_forward.1} parent=55 // pred_check_branch
          %368 = sbr.rel (%p366) target = $region64
        $region63: #{cnnblstm_forward.1} parent=55 // pred_region
          %p369 = scmp.lt.s32.totalorder %s21, 1
          %s370 = scalar_select %p369, %s21, 1
          %s371 = smul.addr %s370, 16
          %s372 = smul.addr %s371, 4
          %s373 = scalar_lea.vmem %s1, %s372
        $region64: #{cnnblstm_forward.1} parent=55 // pred_fallthru
          _
      $region56: #{cnnblstm_forward.1} parent=5 // pred_fallthru
        _
      %p374 = scmp.le.s32.totalorder 1, %s21
      %p375 = scmp.lt.s32.totalorder %s21, 3
      %p376 = pnand %p374, %p375
      %p377 = pneg %p376
      // Predicated region
      $region65: #{cnnblstm_forward.1} parent=5 // pred_check
        _
      $region66: #{cnnblstm_forward.1} parent=5 // pred_check_branch
        %379 = sbr.rel (%p376) target = $region68
      $region67: #{cnnblstm_forward.1} parent=5 // pred_region
        %s380 = ssub.s32 %s21, 1
        %p381 = scmp.lt.s32.totalorder %s26, 1
        %s382 = scalar_select %p381, %s26, 1
        %s383 = smul.addr %s382, 16
        %s384 = smul.addr %s383, 4
        %s385 = scalar_lea.vmem %s0, %s384
        %p386 = pneg %p47
        %p387 = pneg %p44
        %p388 = scmp.lt.s32.totalorder %s26, 1
        %s389 = scalar_select %p388, %s26, 1
        %s390 = smul.addr %s389, 16
        %s391 = smul.addr %s390, 4
        %s392 = scalar_lea.vmem %s1, %s391
        %p393 = pneg %p73
        %p394 = pneg %p70
        %p395 = pneg %p94
        %p396 = pneg %p91
        %p397 = pneg %p115
        %p398 = pneg %p112
        %p399 = pneg %p136
        %p400 = pneg %p133
        %p401 = pneg %p157
        %p402 = pneg %p154
        %p403 = pneg %p178
        %p404 = pneg %p175
        %p405 = pneg %p199
        %p406 = pneg %p196
        %p407 = pneg %p220
        %p408 = pneg %p217
        %p409 = pneg %p241
        %p410 = pneg %p238
        %p411 = pneg %p262
        %p412 = pneg %p259
        %p413 = pneg %p283
        %p414 = pneg %p280
        %p415 = pneg %p309
        %p416 = pneg %p306
        %s417 = sand.u32 %s296, 1
        %s418 = scalar_lea.sflag [#allocation3], %s417
        %s419 = sand.u32 %s296, 1
        %s420 = smul.addr %s419, 8
        %s421 = scalar_lea.vmem [#allocation2], %s420
        %p422 = scmp.lt.s32.totalorder %s26, 1
        %s423 = scalar_select %p422, %s26, 1
        %s424 = smul.addr %s423, 16
        %s425 = smul.addr %s424, 4
        %s426 = scalar_lea.vmem %s0, %s425
        %p427 = scmp.lt.s32.totalorder %s26, 1
        %s428 = scalar_select %p427, %s26, 1
        %s429 = smul.addr %s428, 16
        %s430 = smul.addr %s429, 4
        %s431 = scalar_lea.vmem %s1, %s430
        %v433 = vld [vmem:[%s2] sm:$0xf]
        %v434 = vld [vmem:[%s2 + $0x4] sm:$0xf]
        %v435 = vld [vmem:[%s2 + $0x8] sm:$0xf]
        %v436 = vld [vmem:[%s2 + $0xc] sm:$0xf]
        %v437 = vld [vmem:[%s2 + $0x10] sm:$0xf]
        %v438 = vld [vmem:[%s2 + $0x14] sm:$0xf]
        %v439 = vld [vmem:[%s2 + $0x18] sm:$0xf]
        %v440 = vld [vmem:[%s2 + $0x1c] sm:$0xf]
        %v441 = vld [vmem:[%s2 + $0x20] sm:$0xf]
        %v442 = vld [vmem:[%s2 + $0x24] sm:$0xf]
        %v443 = vld [vmem:[%s2 + $0x28] sm:$0xf]
        %v444 = vld [vmem:[%s2 + $0x2c] sm:$0xf]
        %v445 = vld [vmem:[%s2 + $0x30] sm:$0xf]
        %v446 = vld [vmem:[%s2 + $0x34] sm:$0xf]
        %v447 = vld [vmem:[%s2 + $0x38] sm:$0xf]
        %v448 = vld [vmem:[%s2 + $0x3c] sm:$0xf]
        %v449 = vld [vmem:[%s3] sm:$0x1]
        %v450 = vld [vmem:[%s426] sm:$0xf]
        %v451 = vld [vmem:[%s426 + $0x4] sm:$0xf]
        %v452 = vld [vmem:[%s426 + $0x8] sm:$0xf]
        %v453 = vld [vmem:[%s426 + $0xc] sm:$0xf]
        %v454 = vld [vmem:[%s426 + $0x10] sm:$0xf]
        %v455 = vld [vmem:[%s426 + $0x14] sm:$0xf]
        %v456 = vld [vmem:[%s426 + $0x18] sm:$0xf]
        %v457 = vld [vmem:[%s426 + $0x1c] sm:$0xf]
        %v458 = vld [vmem:[%s426 + $0x20] sm:$0xf]
        %v459 = vld [vmem:[%s426 + $0x24] sm:$0xf]
        %v460 = vld [vmem:[%s426 + $0x28] sm:$0xf]
        %v461 = vld [vmem:[%s426 + $0x2c] sm:$0xf]
        %v462 = vld [vmem:[%s426 + $0x30] sm:$0xf]
        %v463 = vld [vmem:[%s426 + $0x34] sm:$0xf]
        %v464 = vld [vmem:[%s426 + $0x38] sm:$0xf]
        %v465 = vld [vmem:[%s426 + $0x3c] sm:$0xf]
        %v467 = vlaneseq
        %v468 = vshrl.u32 %v467, 7
        %v469 = vsub.s32 0, %v468
        %v470 = vrot.slane %v449, %v469
        %v488 = vunpack.c.l.b16 %v450
        %v489 = vunpack.c.l.b16 %v451
        %v490 = vunpack.c.l.b16 %v452
        %v491 = vunpack.c.l.b16 %v453
        %v492 = vunpack.c.l.b16 %v454
        %v493 = vunpack.c.l.b16 %v455
        %v494 = vunpack.c.l.b16 %v456
        %v495 = vunpack.c.l.b16 %v457
        %v496 = vunpack.c.l.b16 %v458
        %v497 = vunpack.c.l.b16 %v459
        %v498 = vunpack.c.l.b16 %v460
        %v499 = vunpack.c.l.b16 %v461
        %v500 = vunpack.c.l.b16 %v462
        %v501 = vunpack.c.l.b16 %v463
        %v502 = vunpack.c.l.b16 %v464
        %v503 = vunpack.c.l.b16 %v465
        %v504 = vpack.c.b16 %v489, %v488
        %v505 = vpack.c.b16 %v491, %v490
        %v506 = vpack.c.b16 %v493, %v492
        %v507 = vpack.c.b16 %v495, %v494
        %v508 = vpack.c.b16 %v497, %v496
        %v509 = vpack.c.b16 %v499, %v498
        %v510 = vpack.c.b16 %v501, %v500
        %v511 = vpack.c.b16 %v503, %v502
        %v536 = vunpack.c.l.b16 %v433
        %v537 = vunpack.c.l.b16 %v434
        %v538 = vunpack.c.l.b16 %v435
        %v539 = vunpack.c.l.b16 %v436
        %v540 = vunpack.c.l.b16 %v437
        %v541 = vunpack.c.l.b16 %v438
        %v542 = vunpack.c.l.b16 %v439
        %v543 = vunpack.c.l.b16 %v440
        %v544 = vunpack.c.l.b16 %v441
        %v545 = vunpack.c.l.b16 %v442
        %v546 = vunpack.c.l.b16 %v443
        %v547 = vunpack.c.l.b16 %v444
        %v548 = vunpack.c.l.b16 %v445
        %v549 = vunpack.c.l.b16 %v446
        %v550 = vunpack.c.l.b16 %v447
        %v551 = vunpack.c.l.b16 %v448
        %v552 = vpack.c.b16 %v537, %v536
        %v553 = vpack.c.b16 %v539, %v538
        %v554 = vpack.c.b16 %v541, %v540
        %v555 = vpack.c.b16 %v543, %v542
        %v556 = vpack.c.b16 %v545, %v544
        %v557 = vpack.c.b16 %v547, %v546
        %v558 = vpack.c.b16 %v549, %v548
        %v559 = vpack.c.b16 %v551, %v550
        %568 = vmatprep.subr.bf16.mxu0 0
        %569 = vmatpush1.bf16.msra.mxu0 %v552
        %570 = vmatprep.subr.bf16.mxu0 0
        %571 = vmatpush1.bf16.msra.mxu0 %v553
        %572 = vmatprep.subr.bf16.mxu0 0
        %573 = vmatpush1.bf16.msra.mxu0 %v554
        %574 = vmatprep.subr.bf16.mxu0 0
        %575 = vmatpush1.bf16.msra.mxu0 %v555
        %576 = vmatprep.subr.bf16.mxu0 0
        %577 = vmatpush1.bf16.msra.mxu0 %v556
        %578 = vmatprep.subr.bf16.mxu0 0
        %579 = vmatpush1.bf16.msra.mxu0 %v557
        %580 = vmatprep.subr.bf16.mxu0 0
        %581 = vmatpush1.bf16.msra.mxu0 %v558
        %582 = vmatprep.subr.bf16.mxu0 0
        %583 = vmatpush1.bf16.msra.mxu0 %v559
        %584 = vmatprep.subr.bf16.mxu0 0
        %585 = vmatpush1.bf16.msra.mxu0 0
        %586 = vmatprep.subr.bf16.mxu0 0
        %587 = vmatpush1.bf16.msra.mxu0 0
        %588 = vmatprep.subr.bf16.mxu0 0
        %589 = vmatpush1.bf16.msra.mxu0 0
        %590 = vmatprep.subr.bf16.mxu0 0
        %591 = vmatpush1.bf16.msra.mxu0 0
        %592 = vmatprep.subr.bf16.mxu0 0
        %593 = vmatpush1.bf16.msra.mxu0 0
        %594 = vmatprep.subr.bf16.mxu0 0
        %595 = vmatpush1.bf16.msra.mxu0 0
        %596 = vmatprep.subr.bf16.mxu0 0
        %597 = vmatpush1.bf16.msra.mxu0 0
        %598 = vmatprep.subr.bf16.mxu0 0
        %599 = vmatpush1.bf16.msra.mxu0 0
        %600 = vmatprep.mubr.bf16.mxu0 0
        %601 = vmatmul.mubr.bf16.gmra.mrb[0].mxu0 %v504
        %v602 = vpop.f32.mrb[0].mxu0
        %v603 = vadd.f32 %v470, %v602
        %v604 = vpop.f32.mrb[0].mxu0
        %v605 = vpop.f32.mrb[0].mxu0
        %v606 = vadd.f32 %v470, %v605
        %v607 = vpop.f32.mrb[0].mxu0
        %608 = vmatprep.mubr.bf16.mxu0 0
        %609 = vmatmul.mubr.bf16.gmra.mrb[0].mxu0 %v505
        %v610 = vpop.f32.mrb[0].mxu0
        %v611 = vadd.f32 %v470, %v610
        %v612 = vpop.f32.mrb[0].mxu0
        %v613 = vpop.f32.mrb[0].mxu0
        %v614 = vadd.f32 %v470, %v613
        %v615 = vpop.f32.mrb[0].mxu0
        %616 = vmatprep.mubr.bf16.mxu0 0
        %617 = vmatmul.mubr.bf16.gmra.mrb[0].mxu0 %v506
        %v618 = vpop.f32.mrb[0].mxu0
        %v619 = vadd.f32 %v470, %v618
        %v620 = vpop.f32.mrb[0].mxu0
        %v621 = vpop.f32.mrb[0].mxu0
        %v622 = vadd.f32 %v470, %v621
        %v623 = vpop.f32.mrb[0].mxu0
        %624 = vmatprep.mubr.bf16.mxu0 0
        %625 = vmatmul.mubr.bf16.gmra.mrb[0].mxu0 %v507
        %v626 = vpop.f32.mrb[0].mxu0
        %v627 = vadd.f32 %v470, %v626
        %v628 = vpop.f32.mrb[0].mxu0
        %v629 = vpop.f32.mrb[0].mxu0
        %v630 = vadd.f32 %v470, %v629
        %v631 = vpop.f32.mrb[0].mxu0
        %632 = vmatprep.mubr.bf16.mxu0 0
        %633 = vmatmul.mubr.bf16.gmra.mrb[0].mxu0 %v508
        %v634 = vpop.f32.mrb[0].mxu0
        %v635 = vadd.f32 %v470, %v634
        %v636 = vpop.f32.mrb[0].mxu0
        %v637 = vpop.f32.mrb[0].mxu0
        %v638 = vadd.f32 %v470, %v637
        %v639 = vpop.f32.mrb[0].mxu0
        %640 = vmatprep.mubr.bf16.mxu0 0
        %641 = vmatmul.mubr.bf16.gmra.mrb[0].mxu0 %v509
        %v642 = vpop.f32.mrb[0].mxu0
        %v643 = vadd.f32 %v470, %v642
        %v644 = vpop.f32.mrb[0].mxu0
        %v645 = vpop.f32.mrb[0].mxu0
        %v646 = vadd.f32 %v470, %v645
        %v647 = vpop.f32.mrb[0].mxu0
        %648 = vmatprep.mubr.bf16.mxu0 0
        %649 = vmatmul.mubr.bf16.gmra.mrb[0].mxu0 %v510
        %v650 = vpop.f32.mrb[0].mxu0
        %v651 = vadd.f32 %v470, %v650
        %v652 = vpop.f32.mrb[0].mxu0
        %v653 = vpop.f32.mrb[0].mxu0
        %v654 = vadd.f32 %v470, %v653
        %v655 = vpop.f32.mrb[0].mxu0
        %656 = vmatprep.mubr.bf16.mxu0 0
        %657 = vmatmul.mubr.bf16.gmra.mrb[0].mxu0 %v511
        %v658 = vpop.f32.mrb[0].mxu0
        %v659 = vadd.f32 %v470, %v658
        %v660 = vpop.f32.mrb[0].mxu0
        %v661 = vpop.f32.mrb[0].mxu0
        %v662 = vadd.f32 %v470, %v661
        %v663 = vpop.f32.mrb[0].mxu0
        %664 = vdwg.mxu0
        %v665 = vmax.f32 %v603, 0.0
        %v666 = vmax.f32 %v606, 0.0
        %v667 = vmax.f32 %v611, 0.0
        %v668 = vmax.f32 %v614, 0.0
        %v669 = vmax.f32 %v619, 0.0
        %v670 = vmax.f32 %v622, 0.0
        %v671 = vmax.f32 %v627, 0.0
        %v672 = vmax.f32 %v630, 0.0
        %v673 = vmax.f32 %v635, 0.0
        %v674 = vmax.f32 %v638, 0.0
        %v675 = vmax.f32 %v643, 0.0
        %v676 = vmax.f32 %v646, 0.0
        %v677 = vmax.f32 %v651, 0.0
        %v678 = vmax.f32 %v654, 0.0
        %v679 = vmax.f32 %v659, 0.0
        %v680 = vmax.f32 %v662, 0.0
        %v681 = vld [vmem:[%s431] sm:$0xf]
        %v682 = vld [vmem:[%s431 + $0x4] sm:$0xf]
        %v683 = vld [vmem:[%s431 + $0x8] sm:$0xf]
        %v684 = vld [vmem:[%s431 + $0xc] sm:$0xf]
        %v685 = vld [vmem:[%s431 + $0x10] sm:$0xf]
        %v686 = vld [vmem:[%s431 + $0x14] sm:$0xf]
        %v687 = vld [vmem:[%s431 + $0x18] sm:$0xf]
        %v688 = vld [vmem:[%s431 + $0x1c] sm:$0xf]
        %v689 = vld [vmem:[%s431 + $0x20] sm:$0xf]
        %v690 = vld [vmem:[%s431 + $0x24] sm:$0xf]
        %v691 = vld [vmem:[%s431 + $0x28] sm:$0xf]
        %v692 = vld [vmem:[%s431 + $0x2c] sm:$0xf]
        %v693 = vld [vmem:[%s431 + $0x30] sm:$0xf]
        %v694 = vld [vmem:[%s431 + $0x34] sm:$0xf]
        %v695 = vld [vmem:[%s431 + $0x38] sm:$0xf]
        %v696 = vld [vmem:[%s431 + $0x3c] sm:$0xf]
        %v713 = vunpack.c.l.b16 %v681
        %v714 = vunpack.c.l.b16 %v682
        %v715 = vunpack.c.l.b16 %v683
        %v716 = vunpack.c.l.b16 %v684
        %v717 = vunpack.c.l.b16 %v685
        %v718 = vunpack.c.l.b16 %v686
        %v719 = vunpack.c.l.b16 %v687
        %v720 = vunpack.c.l.b16 %v688
        %v721 = vunpack.c.l.b16 %v689
        %v722 = vunpack.c.l.b16 %v690
        %v723 = vunpack.c.l.b16 %v691
        %v724 = vunpack.c.l.b16 %v692
        %v725 = vunpack.c.l.b16 %v693
        %v726 = vunpack.c.l.b16 %v694
        %v727 = vunpack.c.l.b16 %v695
        %v728 = vunpack.c.l.b16 %v696
        %v729 = vpack.c.b16 %v714, %v713
        %v730 = vpack.c.b16 %v716, %v715
        %v731 = vpack.c.b16 %v718, %v717
        %v732 = vpack.c.b16 %v720, %v719
        %v733 = vpack.c.b16 %v722, %v721
        %v734 = vpack.c.b16 %v724, %v723
        %v735 = vpack.c.b16 %v726, %v725
        %v736 = vpack.c.b16 %v728, %v727
        %745 = vmatprep.subr.bf16.mxu0 0
        %746 = vmatpush1.bf16.msra.mxu0 %v552
        %747 = vmatprep.subr.bf16.mxu0 0
        %748 = vmatpush1.bf16.msra.mxu0 %v553
        %749 = vmatprep.subr.bf16.mxu0 0
        %750 = vmatpush1.bf16.msra.mxu0 %v554
        %751 = vmatprep.subr.bf16.mxu0 0
        %752 = vmatpush1.bf16.msra.mxu0 %v555
        %753 = vmatprep.subr.bf16.mxu0 0
        %754 = vmatpush1.bf16.msra.mxu0 %v556
        %755 = vmatprep.subr.bf16.mxu0 0
        %756 = vmatpush1.bf16.msra.mxu0 %v557
        %757 = vmatprep.subr.bf16.mxu0 0
        %758 = vmatpush1.bf16.msra.mxu0 %v558
        %759 = vmatprep.subr.bf16.mxu0 0
        %760 = vmatpush1.bf16.msra.mxu0 %v559
        %761 = vmatprep.subr.bf16.mxu0 0
        %762 = vmatpush1.bf16.msra.mxu0 0
        %763 = vmatprep.subr.bf16.mxu0 0
        %764 = vmatpush1.bf16.msra.mxu0 0
        %765 = vmatprep.subr.bf16.mxu0 0
        %766 = vmatpush1.bf16.msra.mxu0 0
        %767 = vmatprep.subr.bf16.mxu0 0
        %768 = vmatpush1.bf16.msra.mxu0 0
        %769 = vmatprep.subr.bf16.mxu0 0
        %770 = vmatpush1.bf16.msra.mxu0 0
        %771 = vmatprep.subr.bf16.mxu0 0
        %772 = vmatpush1.bf16.msra.mxu0 0
        %773 = vmatprep.subr.bf16.mxu0 0
        %774 = vmatpush1.bf16.msra.mxu0 0
        %775 = vmatprep.subr.bf16.mxu0 0
        %776 = vmatpush1.bf16.msra.mxu0 0
        %777 = vmatprep.mubr.bf16.mxu0 0
        %778 = vmatmul.mubr.bf16.gmra.mrb[0].mxu0 %v729
        %v779 = vpop.f32.mrb[0].mxu0
        %v780 = vadd.f32 %v470, %v779
        %v781 = vpop.f32.mrb[0].mxu0
        %v782 = vpop.f32.mrb[0].mxu0
        %v783 = vadd.f32 %v470, %v782
        %v784 = vpop.f32.mrb[0].mxu0
        %785 = vmatprep.mubr.bf16.mxu0 0
        %786 = vmatmul.mubr.bf16.gmra.mrb[0].mxu0 %v730
        %v787 = vpop.f32.mrb[0].mxu0
        %v788 = vadd.f32 %v470, %v787
        %v789 = vpop.f32.mrb[0].mxu0
        %v790 = vpop.f32.mrb[0].mxu0
        %v791 = vadd.f32 %v470, %v790
        %v792 = vpop.f32.mrb[0].mxu0
        %793 = vmatprep.mubr.bf16.mxu0 0
        %794 = vmatmul.mubr.bf16.gmra.mrb[0].mxu0 %v731
        %v795 = vpop.f32.mrb[0].mxu0
        %v796 = vadd.f32 %v470, %v795
        %v797 = vpop.f32.mrb[0].mxu0
        %v798 = vpop.f32.mrb[0].mxu0
        %v799 = vadd.f32 %v470, %v798
        %v800 = vpop.f32.mrb[0].mxu0
        %801 = vmatprep.mubr.bf16.mxu0 0
        %802 = vmatmul.mubr.bf16.gmra.mrb[0].mxu0 %v732
        %v803 = vpop.f32.mrb[0].mxu0
        %v804 = vadd.f32 %v470, %v803
        %v805 = vpop.f32.mrb[0].mxu0
        %v806 = vpop.f32.mrb[0].mxu0
        %v807 = vadd.f32 %v470, %v806
        %v808 = vpop.f32.mrb[0].mxu0
        %809 = vmatprep.mubr.bf16.mxu0 0
        %810 = vmatmul.mubr.bf16.gmra.mrb[0].mxu0 %v733
        %v811 = vpop.f32.mrb[0].mxu0
        %v812 = vadd.f32 %v470, %v811
        %v813 = vpop.f32.mrb[0].mxu0
        %v814 = vpop.f32.mrb[0].mxu0
        %v815 = vadd.f32 %v470, %v814
        %v816 = vpop.f32.mrb[0].mxu0
        %817 = vmatprep.mubr.bf16.mxu0 0
        %818 = vmatmul.mubr.bf16.gmra.mrb[0].mxu0 %v734
        %v819 = vpop.f32.mrb[0].mxu0
        %v820 = vadd.f32 %v470, %v819
        %v821 = vpop.f32.mrb[0].mxu0
        %v822 = vpop.f32.mrb[0].mxu0
        %v823 = vadd.f32 %v470, %v822
        %v824 = vpop.f32.mrb[0].mxu0
        %825 = vmatprep.mubr.bf16.mxu0 0
        %826 = vmatmul.mubr.bf16.gmra.mrb[0].mxu0 %v735
        %v827 = vpop.f32.mrb[0].mxu0
        %v828 = vadd.f32 %v470, %v827
        %v829 = vpop.f32.mrb[0].mxu0
        %v830 = vpop.f32.mrb[0].mxu0
        %v831 = vadd.f32 %v470, %v830
        %v832 = vpop.f32.mrb[0].mxu0
        %833 = vmatprep.mubr.bf16.mxu0 0
        %834 = vmatmul.mubr.bf16.gmra.mrb[0].mxu0 %v736
        %v835 = vpop.f32.mrb[0].mxu0
        %v836 = vadd.f32 %v470, %v835
        %v837 = vpop.f32.mrb[0].mxu0
        %v838 = vpop.f32.mrb[0].mxu0
        %v839 = vadd.f32 %v470, %v838
        %v840 = vpop.f32.mrb[0].mxu0
        %841 = vdwg.mxu0
        %v842 = vmax.f32 %v780, 0.0
        %v843 = vmax.f32 %v783, 0.0
        %v844 = vmax.f32 %v788, 0.0
        %v845 = vmax.f32 %v791, 0.0
        %v846 = vmax.f32 %v796, 0.0
        %v847 = vmax.f32 %v799, 0.0
        %v848 = vmax.f32 %v804, 0.0
        %v849 = vmax.f32 %v807, 0.0
        %v850 = vmax.f32 %v812, 0.0
        %v851 = vmax.f32 %v815, 0.0
        %v852 = vmax.f32 %v820, 0.0
        %v853 = vmax.f32 %v823, 0.0
        %v854 = vmax.f32 %v828, 0.0
        %v855 = vmax.f32 %v831, 0.0
        %v856 = vmax.f32 %v836, 0.0
        %v857 = vmax.f32 %v839, 0.0
        %v858 = vmax.f32 %v665, %v842
        %v859 = vmax.f32 %v666, %v843
        %v860 = vmax.f32 %v667, %v844
        %v861 = vmax.f32 %v668, %v845
        %v862 = vmax.f32 %v669, %v846
        %v863 = vmax.f32 %v670, %v847
        %v864 = vmax.f32 %v671, %v848
        %v865 = vmax.f32 %v672, %v849
        %v866 = vmax.f32 %v673, %v850
        %v867 = vmax.f32 %v674, %v851
        %v868 = vmax.f32 %v675, %v852
        %v869 = vmax.f32 %v676, %v853
        %v870 = vmax.f32 %v677, %v854
        %v871 = vmax.f32 %v678, %v855
        %v872 = vmax.f32 %v679, %v856
        %v873 = vmax.f32 %v680, %v857
        %v874 = vpack.c.bf16 %v859, %v858
        %v875 = vpack.c.bf16 %v861, %v860
        %v876 = vpack.c.bf16 %v863, %v862
        %v877 = vpack.c.bf16 %v865, %v864
        %v878 = vpack.c.bf16 %v867, %v866
        %v879 = vpack.c.bf16 %v869, %v868
        %v880 = vpack.c.bf16 %v871, %v870
        %v881 = vpack.c.bf16 %v873, %v872
        %v882 = vld [vmem:[%s4] sm:$0xff]
        %v883 = vld [vmem:[%s4 + $0x8] sm:$0xff]
        %v884 = vld [vmem:[%s4 + $0x10] sm:$0xff]
        %v885 = vld [vmem:[%s4 + $0x18] sm:$0xff]
        %v886 = vld [vmem:[%s4 + $0x20] sm:$0xff]
        %v887 = vld [vmem:[%s4 + $0x28] sm:$0xff]
        %v888 = vld [vmem:[%s4 + $0x30] sm:$0xff]
        %v889 = vld [vmem:[%s4 + $0x38] sm:$0xff]
        %v890 = vld [vmem:[%s4 + $0x40] sm:$0xff]
        %v891 = vld [vmem:[%s4 + $0x48] sm:$0xff]
        %v892 = vld [vmem:[%s4 + $0x50] sm:$0xff]
        %v893 = vld [vmem:[%s4 + $0x58] sm:$0xff]
        %v894 = vld [vmem:[%s4 + $0x60] sm:$0xff]
        %v895 = vld [vmem:[%s4 + $0x68] sm:$0xff]
        %v896 = vld [vmem:[%s4 + $0x70] sm:$0xff]
        %v897 = vld [vmem:[%s4 + $0x78] sm:$0xff]
        %v898 = vld [vmem:[%s4 + $0x80] sm:$0xff]
        %v899 = vld [vmem:[%s4 + $0x88] sm:$0xff]
        %v900 = vld [vmem:[%s4 + $0x90] sm:$0xff]
        %v901 = vld [vmem:[%s4 + $0x98] sm:$0xff]
        %v902 = vld [vmem:[%s4 + $0xa0] sm:$0xff]
        %v903 = vld [vmem:[%s4 + $0xa8] sm:$0xff]
        %v904 = vld [vmem:[%s4 + $0xb0] sm:$0xff]
        %v905 = vld [vmem:[%s4 + $0xb8] sm:$0xff]
        %v906 = vld [vmem:[%s4 + $0xc0] sm:$0xff]
        %v907 = vld [vmem:[%s4 + $0xc8] sm:$0xff]
        %v908 = vld [vmem:[%s4 + $0xd0] sm:$0xff]
        %v909 = vld [vmem:[%s4 + $0xd8] sm:$0xff]
        %v910 = vld [vmem:[%s4 + $0xe0] sm:$0xff]
        %v911 = vld [vmem:[%s4 + $0xe8] sm:$0xff]
        %v912 = vld [vmem:[%s4 + $0xf0] sm:$0xff]
        %v913 = vld [vmem:[%s4 + $0xf8] sm:$0xff]
        %v914 = vld [vmem:[%s7] sm:$0xf]
        %v916 = vlaneseq
        %v917 = vshrl.u32 %v916, 7
        %v918 = vsub.s32 0, %v917
        %v919 = vrot.slane %v914, %v918
        %v920 = vlaneseq
        %v921 = vshrl.u32 %v920, 7
        %v922 = vsub.s32 1, %v921
        %v923 = vrot.slane %v914, %v922
        %v924 = vlaneseq
        %v925 = vshrl.u32 %v924, 7
        %v926 = vsub.s32 2, %v925
        %v927 = vrot.slane %v914, %v926
        %v928 = vlaneseq
        %v929 = vshrl.u32 %v928, 7
        %v930 = vsub.s32 3, %v929
        %v931 = vrot.slane %v914, %v930
        %v968 = vunpack.c.l.b16 %v882
        %v969 = vunpack.c.h.b16 %v882
        %v970 = vunpack.c.l.b16 %v883
        %v971 = vunpack.c.h.b16 %v883
        %v972 = vunpack.c.l.b16 %v884
        %v973 = vunpack.c.h.b16 %v884
        %v974 = vunpack.c.l.b16 %v885
        %v975 = vunpack.c.h.b16 %v885
        %v976 = vunpack.c.l.b16 %v886
        %v977 = vunpack.c.h.b16 %v886
        %v978 = vunpack.c.l.b16 %v887
        %v979 = vunpack.c.h.b16 %v887
        %v980 = vunpack.c.l.b16 %v888
        %v981 = vunpack.c.h.b16 %v888
        %v982 = vunpack.c.l.b16 %v889
        %v983 = vunpack.c.h.b16 %v889
        %v984 = vunpack.c.l.b16 %v890
        %v985 = vunpack.c.h.b16 %v890
        %v986 = vunpack.c.l.b16 %v891
        %v987 = vunpack.c.h.b16 %v891
        %v988 = vunpack.c.l.b16 %v892
        %v989 = vunpack.c.h.b16 %v892
        %v990 = vunpack.c.l.b16 %v893
        %v991 = vunpack.c.h.b16 %v893
        %v992 = vunpack.c.l.b16 %v894
        %v993 = vunpack.c.h.b16 %v894
        %v994 = vunpack.c.l.b16 %v895
        %v995 = vunpack.c.h.b16 %v895
        %v996 = vunpack.c.l.b16 %v896
        %v997 = vunpack.c.h.b16 %v896
        %v998 = vunpack.c.l.b16 %v897
        %v999 = vunpack.c.h.b16 %v897
        %v1000 = vunpack.c.l.b16 %v898
        %v1001 = vunpack.c.h.b16 %v898
        %v1002 = vunpack.c.l.b16 %v899
        %v1003 = vunpack.c.h.b16 %v899
        %v1004 = vunpack.c.l.b16 %v900
        %v1005 = vunpack.c.h.b16 %v900
        %v1006 = vunpack.c.l.b16 %v901
        %v1007 = vunpack.c.h.b16 %v901
        %v1008 = vunpack.c.l.b16 %v902
        %v1009 = vunpack.c.h.b16 %v902
        %v1010 = vunpack.c.l.b16 %v903
        %v1011 = vunpack.c.h.b16 %v903
        %v1012 = vunpack.c.l.b16 %v904
        %v1013 = vunpack.c.h.b16 %v904
        %v1014 = vunpack.c.l.b16 %v905
        %v1015 = vunpack.c.h.b16 %v905
        %v1016 = vunpack.c.l.b16 %v906
        %v1017 = vunpack.c.h.b16 %v906
        %v1018 = vunpack.c.l.b16 %v907
        %v1019 = vunpack.c.h.b16 %v907
        %v1020 = vunpack.c.l.b16 %v908
        %v1021 = vunpack.c.h.b16 %v908
        %v1022 = vunpack.c.l.b16 %v909
        %v1023 = vunpack.c.h.b16 %v909
        %v1024 = vunpack.c.l.b16 %v910
        %v1025 = vunpack.c.h.b16 %v910
        %v1026 = vunpack.c.l.b16 %v911
        %v1027 = vunpack.c.h.b16 %v911
        %v1028 = vunpack.c.l.b16 %v912
        %v1029 = vunpack.c.h.b16 %v912
        %v1030 = vunpack.c.l.b16 %v913
        %v1031 = vunpack.c.h.b16 %v913
        %v1032 = vpack.c.b16 %v972, %v968
        %v1033 = vpack.c.b16 %v973, %v969
        %v1034 = vpack.c.b16 %v974, %v970
        %v1035 = vpack.c.b16 %v975, %v971
        %v1036 = vpack.c.b16 %v980, %v976
        %v1037 = vpack.c.b16 %v981, %v977
        %v1038 = vpack.c.b16 %v982, %v978
        %v1039 = vpack.c.b16 %v983, %v979
        %v1040 = vpack.c.b16 %v988, %v984
        %v1041 = vpack.c.b16 %v989, %v985
        %v1042 = vpack.c.b16 %v990, %v986
        %v1043 = vpack.c.b16 %v991, %v987
        %v1044 = vpack.c.b16 %v996, %v992
        %v1045 = vpack.c.b16 %v997, %v993
        %v1046 = vpack.c.b16 %v998, %v994
        %v1047 = vpack.c.b16 %v999, %v995
        %v1048 = vpack.c.b16 %v1004, %v1000
        %v1049 = vpack.c.b16 %v1005, %v1001
        %v1050 = vpack.c.b16 %v1006, %v1002
        %v1051 = vpack.c.b16 %v1007, %v1003
        %v1052 = vpack.c.b16 %v1012, %v1008
        %v1053 = vpack.c.b16 %v1013, %v1009
        %v1054 = vpack.c.b16 %v1014, %v1010
        %v1055 = vpack.c.b16 %v1015, %v1011
        %v1056 = vpack.c.b16 %v1020, %v1016
        %v1057 = vpack.c.b16 %v1021, %v1017
        %v1058 = vpack.c.b16 %v1022, %v1018
        %v1059 = vpack.c.b16 %v1023, %v1019
        %v1060 = vpack.c.b16 %v1028, %v1024
        %v1061 = vpack.c.b16 %v1029, %v1025
        %v1062 = vpack.c.b16 %v1030, %v1026
        %v1063 = vpack.c.b16 %v1031, %v1027
        %1096 = vmatprep.subr.bf16.mxu0 %v1033
        %1097 = vmatpush1.bf16.msra.mxu0 %v1032
        %1098 = vmatprep.subr.bf16.mxu0 %v1037
        %1099 = vmatpush1.bf16.msra.mxu0 %v1036
        %1100 = vmatprep.subr.bf16.mxu0 %v1041
        %1101 = vmatpush1.bf16.msra.mxu0 %v1040
        %1102 = vmatprep.subr.bf16.mxu0 %v1045
        %1103 = vmatpush1.bf16.msra.mxu0 %v1044
        %1104 = vmatprep.subr.bf16.mxu0 %v1049
        %1105 = vmatpush1.bf16.msra.mxu0 %v1048
        %1106 = vmatprep.subr.bf16.mxu0 %v1053
        %1107 = vmatpush1.bf16.msra.mxu0 %v1052
        %1108 = vmatprep.subr.bf16.mxu0 %v1057
        %1109 = vmatpush1.bf16.msra.mxu0 %v1056
        %1110 = vmatprep.subr.bf16.mxu0 %v1061
        %1111 = vmatpush1.bf16.msra.mxu0 %v1060
        %1112 = vmatprep.subr.bf16.mxu0 0
        %1113 = vmatpush1.bf16.msra.mxu0 0
        %1114 = vmatprep.subr.bf16.mxu0 0
        %1115 = vmatpush1.bf16.msra.mxu0 0
        %1116 = vmatprep.subr.bf16.mxu0 0
        %1117 = vmatpush1.bf16.msra.mxu0 0
        %1118 = vmatprep.subr.bf16.mxu0 0
        %1119 = vmatpush1.bf16.msra.mxu0 0
        %1120 = vmatprep.subr.bf16.mxu0 0
        %1121 = vmatpush1.bf16.msra.mxu0 0
        %1122 = vmatprep.subr.bf16.mxu0 0
        %1123 = vmatpush1.bf16.msra.mxu0 0
        %1124 = vmatprep.subr.bf16.mxu0 0
        %1125 = vmatpush1.bf16.msra.mxu0 0
        %1126 = vmatprep.subr.bf16.mxu0 0
        %1127 = vmatpush1.bf16.msra.mxu0 0
        %1128 = vmatprep.mubr.bf16.mxu0 0
        %1129 = vmatmul.mubr.bf16.gmra.mrb[0].mxu0 %v874
        %v1130 = vpop.f32.mrb[0].mxu0
        %v1131 = vadd.f32 %v919, %v1130
        %v1132 = vpop.f32.mrb[0].mxu0
        %v1133 = vadd.f32 %v923, %v1132
        %v1134 = vpop.f32.mrb[0].mxu0
        %v1135 = vadd.f32 %v919, %v1134
        %v1136 = vpop.f32.mrb[0].mxu0
        %v1137 = vadd.f32 %v923, %v1136
        %1138 = vmatprep.mubr.bf16.mxu0 0
        %1139 = vmatmul.mubr.bf16.gmra.mrb[0].mxu0 %v875
        %v1140 = vpop.f32.mrb[0].mxu0
        %v1141 = vadd.f32 %v919, %v1140
        %v1142 = vpop.f32.mrb[0].mxu0
        %v1143 = vadd.f32 %v923, %v1142
        %v1144 = vpop.f32.mrb[0].mxu0
        %v1145 = vadd.f32 %v919, %v1144
        %v1146 = vpop.f32.mrb[0].mxu0
        %v1147 = vadd.f32 %v923, %v1146
        %1148 = vmatprep.mubr.bf16.mxu0 0
        %1149 = vmatmul.mubr.bf16.gmra.mrb[0].mxu0 %v876
        %v1150 = vpop.f32.mrb[0].mxu0
        %v1151 = vadd.f32 %v919, %v1150
        %v1152 = vpop.f32.mrb[0].mxu0
        %v1153 = vadd.f32 %v923, %v1152
        %v1154 = vpop.f32.mrb[0].mxu0
        %v1155 = vadd.f32 %v919, %v1154
        %v1156 = vpop.f32.mrb[0].mxu0
        %v1157 = vadd.f32 %v923, %v1156
        %1158 = vmatprep.mubr.bf16.mxu0 0
        %1159 = vmatmul.mubr.bf16.gmra.mrb[0].mxu0 %v877
        %v1160 = vpop.f32.mrb[0].mxu0
        %v1161 = vadd.f32 %v919, %v1160
        %v1162 = vpop.f32.mrb[0].mxu0
        %v1163 = vadd.f32 %v923, %v1162
        %v1164 = vpop.f32.mrb[0].mxu0
        %v1165 = vadd.f32 %v919, %v1164
        %v1166 = vpop.f32.mrb[0].mxu0
        %v1167 = vadd.f32 %v923, %v1166
        %1168 = vmatprep.mubr.bf16.mxu0 0
        %1169 = vmatmul.mubr.bf16.gmra.mrb[0].mxu0 %v878
        %v1170 = vpop.f32.mrb[0].mxu0
        %v1171 = vadd.f32 %v919, %v1170
        %v1172 = vpop.f32.mrb[0].mxu0
        %v1173 = vadd.f32 %v923, %v1172
        %v1174 = vpop.f32.mrb[0].mxu0
        %v1175 = vadd.f32 %v919, %v1174
        %v1176 = vpop.f32.mrb[0].mxu0
        %v1177 = vadd.f32 %v923, %v1176
        %1178 = vmatprep.mubr.bf16.mxu0 0
        %1179 = vmatmul.mubr.bf16.gmra.mrb[0].mxu0 %v879
        %v1180 = vpop.f32.mrb[0].mxu0
        %v1181 = vadd.f32 %v919, %v1180
        %v1182 = vpop.f32.mrb[0].mxu0
        %v1183 = vadd.f32 %v923, %v1182
        %v1184 = vpop.f32.mrb[0].mxu0
        %v1185 = vadd.f32 %v919, %v1184
        %v1186 = vpop.f32.mrb[0].mxu0
        %v1187 = vadd.f32 %v923, %v1186
        %1188 = vmatprep.mubr.bf16.mxu0 0
        %1189 = vmatmul.mubr.bf16.gmra.mrb[0].mxu0 %v880
        %v1190 = vpop.f32.mrb[0].mxu0
        %v1191 = vadd.f32 %v919, %v1190
        %v1192 = vpop.f32.mrb[0].mxu0
        %v1193 = vadd.f32 %v923, %v1192
        %v1194 = vpop.f32.mrb[0].mxu0
        %v1195 = vadd.f32 %v919, %v1194
        %v1196 = vpop.f32.mrb[0].mxu0
        %v1197 = vadd.f32 %v923, %v1196
        %1198 = vmatprep.mubr.bf16.mxu0 0
        %1199 = vmatmul.mubr.bf16.gmra.mrb[0].mxu0 %v881
        %v1200 = vpop.f32.mrb[0].mxu0
        %v1201 = vadd.f32 %v919, %v1200
        %v1202 = vpop.f32.mrb[0].mxu0
        %v1203 = vadd.f32 %v923, %v1202
        %v1204 = vpop.f32.mrb[0].mxu0
        %v1205 = vadd.f32 %v919, %v1204
        %v1206 = vpop.f32.mrb[0].mxu0
        %v1207 = vadd.f32 %v923, %v1206
        %1208 = vdwg.mxu0
        %1209 = vmatprep.subr.bf16.mxu0 %v1035
        %1210 = vmatpush1.bf16.msra.mxu0 %v1034
        %1211 = vmatprep.subr.bf16.mxu0 %v1039
        %1212 = vmatpush1.bf16.msra.mxu0 %v1038
        %1213 = vmatprep.subr.bf16.mxu0 %v1043
        %1214 = vmatpush1.bf16.msra.mxu0 %v1042
        %1215 = vmatprep.subr.bf16.mxu0 %v1047
        %1216 = vmatpush1.bf16.msra.mxu0 %v1046
        %1217 = vmatprep.subr.bf16.mxu0 %v1051
        %1218 = vmatpush1.bf16.msra.mxu0 %v1050
        %1219 = vmatprep.subr.bf16.mxu0 %v1055
        %1220 = vmatpush1.bf16.msra.mxu0 %v1054
        %1221 = vmatprep.subr.bf16.mxu0 %v1059
        %1222 = vmatpush1.bf16.msra.mxu0 %v1058
        %1223 = vmatprep.subr.bf16.mxu0 %v1063
        %1224 = vmatpush1.bf16.msra.mxu0 %v1062
        %1225 = vmatprep.subr.bf16.mxu0 0
        %1226 = vmatpush1.bf16.msra.mxu0 0
        %1227 = vmatprep.subr.bf16.mxu0 0
        %1228 = vmatpush1.bf16.msra.mxu0 0
        %1229 = vmatprep.subr.bf16.mxu0 0
        %1230 = vmatpush1.bf16.msra.mxu0 0
        %1231 = vmatprep.subr.bf16.mxu0 0
        %1232 = vmatpush1.bf16.msra.mxu0 0
        %1233 = vmatprep.subr.bf16.mxu0 0
        %1234 = vmatpush1.bf16.msra.mxu0 0
        %1235 = vmatprep.subr.bf16.mxu0 0
        %1236 = vmatpush1.bf16.msra.mxu0 0
        %1237 = vmatprep.subr.bf16.mxu0 0
        %1238 = vmatpush1.bf16.msra.mxu0 0
        %1239 = vmatprep.subr.bf16.mxu0 0
        %1240 = vmatpush1.bf16.msra.mxu0 0
        %1241 = vmatprep.mubr.bf16.mxu0 0
        %1242 = vmatmul.mubr.bf16.gmra.mrb[0].mxu0 %v874
        %v1243 = vpop.f32.mrb[0].mxu0
        %v1244 = vadd.f32 %v927, %v1243
        %v1245 = vpop.f32.mrb[0].mxu0
        %v1246 = vadd.f32 %v931, %v1245
        %v1247 = vpop.f32.mrb[0].mxu0
        %v1248 = vadd.f32 %v927, %v1247
        %v1249 = vpop.f32.mrb[0].mxu0
        %v1250 = vadd.f32 %v931, %v1249
        %1251 = vmatprep.mubr.bf16.mxu0 0
        %1252 = vmatmul.mubr.bf16.gmra.mrb[0].mxu0 %v875
        %v1253 = vpop.f32.mrb[0].mxu0
        %v1254 = vadd.f32 %v927, %v1253
        %v1255 = vpop.f32.mrb[0].mxu0
        %v1256 = vadd.f32 %v931, %v1255
        %v1257 = vpop.f32.mrb[0].mxu0
        %v1258 = vadd.f32 %v927, %v1257
        %v1259 = vpop.f32.mrb[0].mxu0
        %v1260 = vadd.f32 %v931, %v1259
        %1261 = vmatprep.mubr.bf16.mxu0 0
        %1262 = vmatmul.mubr.bf16.gmra.mrb[0].mxu0 %v876
        %v1263 = vpop.f32.mrb[0].mxu0
        %v1264 = vadd.f32 %v927, %v1263
        %v1265 = vpop.f32.mrb[0].mxu0
        %v1266 = vadd.f32 %v931, %v1265
        %v1267 = vpop.f32.mrb[0].mxu0
        %v1268 = vadd.f32 %v927, %v1267
        %v1269 = vpop.f32.mrb[0].mxu0
        %v1270 = vadd.f32 %v931, %v1269
        %1271 = vmatprep.mubr.bf16.mxu0 0
        %1272 = vmatmul.mubr.bf16.gmra.mrb[0].mxu0 %v877
        %v1273 = vpop.f32.mrb[0].mxu0
        %v1274 = vadd.f32 %v927, %v1273
        %v1275 = vpop.f32.mrb[0].mxu0
        %v1276 = vadd.f32 %v931, %v1275
        %v1277 = vpop.f32.mrb[0].mxu0
        %v1278 = vadd.f32 %v927, %v1277
        %v1279 = vpop.f32.mrb[0].mxu0
        %v1280 = vadd.f32 %v931, %v1279
        %1281 = vmatprep.mubr.bf16.mxu0 0
        %1282 = vmatmul.mubr.bf16.gmra.mrb[0].mxu0 %v878
        %v1283 = vpop.f32.mrb[0].mxu0
        %v1284 = vadd.f32 %v927, %v1283
        %v1285 = vpop.f32.mrb[0].mxu0
        %v1286 = vadd.f32 %v931, %v1285
        %v1287 = vpop.f32.mrb[0].mxu0
        %v1288 = vadd.f32 %v927, %v1287
        %v1289 = vpop.f32.mrb[0].mxu0
        %v1290 = vadd.f32 %v931, %v1289
        %1291 = vmatprep.mubr.bf16.mxu0 0
        %1292 = vmatmul.mubr.bf16.gmra.mrb[0].mxu0 %v879
        %v1293 = vpop.f32.mrb[0].mxu0
        %v1294 = vadd.f32 %v927, %v1293
        %v1295 = vpop.f32.mrb[0].mxu0
        %v1296 = vadd.f32 %v931, %v1295
        %v1297 = vpop.f32.mrb[0].mxu0
        %v1298 = vadd.f32 %v927, %v1297
        %v1299 = vpop.f32.mrb[0].mxu0
        %v1300 = vadd.f32 %v931, %v1299
        %1301 = vmatprep.mubr.bf16.mxu0 0
        %1302 = vmatmul.mubr.bf16.gmra.mrb[0].mxu0 %v880
        %v1303 = vpop.f32.mrb[0].mxu0
        %v1304 = vadd.f32 %v927, %v1303
        %v1305 = vpop.f32.mrb[0].mxu0
        %v1306 = vadd.f32 %v931, %v1305
        %v1307 = vpop.f32.mrb[0].mxu0
        %v1308 = vadd.f32 %v927, %v1307
        %v1309 = vpop.f32.mrb[0].mxu0
        %v1310 = vadd.f32 %v931, %v1309
        %1311 = vmatprep.mubr.bf16.mxu0 0
        %1312 = vmatmul.mubr.bf16.gmra.mrb[0].mxu0 %v881
        %v1313 = vpop.f32.mrb[0].mxu0
        %v1314 = vadd.f32 %v927, %v1313
        %v1315 = vpop.f32.mrb[0].mxu0
        %v1316 = vadd.f32 %v931, %v1315
        %v1317 = vpop.f32.mrb[0].mxu0
        %v1318 = vadd.f32 %v927, %v1317
        %v1319 = vpop.f32.mrb[0].mxu0
        %v1320 = vadd.f32 %v931, %v1319
        %1321 = vdwg.mxu0
        %v1322 = vld [vmem:[%s5] sm:$0xff]
        %v1323 = vld [vmem:[%s5 + $0x8] sm:$0xff]
        %v1324 = vld [vmem:[%s5 + $0x10] sm:$0xff]
        %v1325 = vld [vmem:[%s5 + $0x18] sm:$0xff]
        %v1326 = vld [vmem:[%s5 + $0x20] sm:$0xff]
        %v1327 = vld [vmem:[%s5 + $0x28] sm:$0xff]
        %v1328 = vld [vmem:[%s5 + $0x30] sm:$0xff]
        %v1329 = vld [vmem:[%s5 + $0x38] sm:$0xff]
        %v1330 = vld [vmem:[%s5 + $0x40] sm:$0xff]
        %v1331 = vld [vmem:[%s5 + $0x48] sm:$0xff]
        %v1332 = vld [vmem:[%s5 + $0x50] sm:$0xff]
        %v1333 = vld [vmem:[%s5 + $0x58] sm:$0xff]
        %v1334 = vld [vmem:[%s5 + $0x60] sm:$0xff]
        %v1335 = vld [vmem:[%s5 + $0x68] sm:$0xff]
        %v1336 = vld [vmem:[%s5 + $0x70] sm:$0xff]
        %v1337 = vld [vmem:[%s5 + $0x78] sm:$0xff]
        %v1338 = vld [vmem:[%s5 + $0x80] sm:$0xff]
        %v1339 = vld [vmem:[%s5 + $0x88] sm:$0xff]
        %v1340 = vld [vmem:[%s5 + $0x90] sm:$0xff]
        %v1341 = vld [vmem:[%s5 + $0x98] sm:$0xff]
        %v1342 = vld [vmem:[%s5 + $0xa0] sm:$0xff]
        %v1343 = vld [vmem:[%s5 + $0xa8] sm:$0xff]
        %v1344 = vld [vmem:[%s5 + $0xb0] sm:$0xff]
        %v1345 = vld [vmem:[%s5 + $0xb8] sm:$0xff]
        %v1346 = vld [vmem:[%s5 + $0xc0] sm:$0xff]
        %v1347 = vld [vmem:[%s5 + $0xc8] sm:$0xff]
        %v1348 = vld [vmem:[%s5 + $0xd0] sm:$0xff]
        %v1349 = vld [vmem:[%s5 + $0xd8] sm:$0xff]
        %v1350 = vld [vmem:[%s5 + $0xe0] sm:$0xff]
        %v1351 = vld [vmem:[%s5 + $0xe8] sm:$0xff]
        %v1352 = vld [vmem:[%s5 + $0xf0] sm:$0xff]
        %v1353 = vld [vmem:[%s5 + $0xf8] sm:$0xff]
        %v1386 = vunpack.c.l.b16 %v1322
        %v1387 = vunpack.c.h.b16 %v1322
        %v1388 = vunpack.c.l.b16 %v1323
        %v1389 = vunpack.c.h.b16 %v1323
        %v1390 = vunpack.c.l.b16 %v1324
        %v1391 = vunpack.c.h.b16 %v1324
        %v1392 = vunpack.c.l.b16 %v1325
        %v1393 = vunpack.c.h.b16 %v1325
        %v1394 = vunpack.c.l.b16 %v1326
        %v1395 = vunpack.c.h.b16 %v1326
        %v1396 = vunpack.c.l.b16 %v1327
        %v1397 = vunpack.c.h.b16 %v1327
        %v1398 = vunpack.c.l.b16 %v1328
        %v1399 = vunpack.c.h.b16 %v1328
        %v1400 = vunpack.c.l.b16 %v1329
        %v1401 = vunpack.c.h.b16 %v1329
        %v1402 = vunpack.c.l.b16 %v1330
        %v1403 = vunpack.c.h.b16 %v1330
        %v1404 = vunpack.c.l.b16 %v1331
        %v1405 = vunpack.c.h.b16 %v1331
        %v1406 = vunpack.c.l.b16 %v1332
        %v1407 = vunpack.c.h.b16 %v1332
        %v1408 = vunpack.c.l.b16 %v1333
        %v1409 = vunpack.c.h.b16 %v1333
        %v1410 = vunpack.c.l.b16 %v1334
        %v1411 = vunpack.c.h.b16 %v1334
        %v1412 = vunpack.c.l.b16 %v1335
        %v1413 = vunpack.c.h.b16 %v1335
        %v1414 = vunpack.c.l.b16 %v1336
        %v1415 = vunpack.c.h.b16 %v1336
        %v1416 = vunpack.c.l.b16 %v1337
        %v1417 = vunpack.c.h.b16 %v1337
        %v1418 = vunpack.c.l.b16 %v1338
        %v1419 = vunpack.c.h.b16 %v1338
        %v1420 = vunpack.c.l.b16 %v1339
        %v1421 = vunpack.c.h.b16 %v1339
        %v1422 = vunpack.c.l.b16 %v1340
        %v1423 = vunpack.c.h.b16 %v1340
        %v1424 = vunpack.c.l.b16 %v1341
        %v1425 = vunpack.c.h.b16 %v1341
        %v1426 = vunpack.c.l.b16 %v1342
        %v1427 = vunpack.c.h.b16 %v1342
        %v1428 = vunpack.c.l.b16 %v1343
        %v1429 = vunpack.c.h.b16 %v1343
        %v1430 = vunpack.c.l.b16 %v1344
        %v1431 = vunpack.c.h.b16 %v1344
        %v1432 = vunpack.c.l.b16 %v1345
        %v1433 = vunpack.c.h.b16 %v1345
        %v1434 = vunpack.c.l.b16 %v1346
        %v1435 = vunpack.c.h.b16 %v1346
        %v1436 = vunpack.c.l.b16 %v1347
        %v1437 = vunpack.c.h.b16 %v1347
        %v1438 = vunpack.c.l.b16 %v1348
        %v1439 = vunpack.c.h.b16 %v1348
        %v1440 = vunpack.c.l.b16 %v1349
        %v1441 = vunpack.c.h.b16 %v1349
        %v1442 = vunpack.c.l.b16 %v1350
        %v1443 = vunpack.c.h.b16 %v1350
        %v1444 = vunpack.c.l.b16 %v1351
        %v1445 = vunpack.c.h.b16 %v1351
        %v1446 = vunpack.c.l.b16 %v1352
        %v1447 = vunpack.c.h.b16 %v1352
        %v1448 = vunpack.c.l.b16 %v1353
        %v1449 = vunpack.c.h.b16 %v1353
        %v1450 = vpack.c.b16 %v1390, %v1386
        %v1451 = vpack.c.b16 %v1391, %v1387
        %v1452 = vpack.c.b16 %v1392, %v1388
        %v1453 = vpack.c.b16 %v1393, %v1389
        %v1454 = vpack.c.b16 %v1398, %v1394
        %v1455 = vpack.c.b16 %v1399, %v1395
        %v1456 = vpack.c.b16 %v1400, %v1396
        %v1457 = vpack.c.b16 %v1401, %v1397
        %v1458 = vpack.c.b16 %v1406, %v1402
        %v1459 = vpack.c.b16 %v1407, %v1403
        %v1460 = vpack.c.b16 %v1408, %v1404
        %v1461 = vpack.c.b16 %v1409, %v1405
        %v1462 = vpack.c.b16 %v1414, %v1410
        %v1463 = vpack.c.b16 %v1415, %v1411
        %v1464 = vpack.c.b16 %v1416, %v1412
        %v1465 = vpack.c.b16 %v1417, %v1413
        %v1466 = vpack.c.b16 %v1422, %v1418
        %v1467 = vpack.c.b16 %v1423, %v1419
        %v1468 = vpack.c.b16 %v1424, %v1420
        %v1469 = vpack.c.b16 %v1425, %v1421
        %v1470 = vpack.c.b16 %v1430, %v1426
        %v1471 = vpack.c.b16 %v1431, %v1427
        %v1472 = vpack.c.b16 %v1432, %v1428
        %v1473 = vpack.c.b16 %v1433, %v1429
        %v1474 = vpack.c.b16 %v1438, %v1434
        %v1475 = vpack.c.b16 %v1439, %v1435
        %v1476 = vpack.c.b16 %v1440, %v1436
        %v1477 = vpack.c.b16 %v1441, %v1437
        %v1478 = vpack.c.b16 %v1446, %v1442
        %v1479 = vpack.c.b16 %v1447, %v1443
        %v1480 = vpack.c.b16 %v1448, %v1444
        %v1481 = vpack.c.b16 %v1449, %v1445
        %1514 = vmatprep.subr.bf16.mxu0 %v1451
        %1515 = vmatpush1.bf16.msra.mxu0 %v1450
        %1516 = vmatprep.subr.bf16.mxu0 %v1455
        %1517 = vmatpush1.bf16.msra.mxu0 %v1454
        %1518 = vmatprep.subr.bf16.mxu0 %v1459
        %1519 = vmatpush1.bf16.msra.mxu0 %v1458
        %1520 = vmatprep.subr.bf16.mxu0 %v1463
        %1521 = vmatpush1.bf16.msra.mxu0 %v1462
        %1522 = vmatprep.subr.bf16.mxu0 %v1467
        %1523 = vmatpush1.bf16.msra.mxu0 %v1466
        %1524 = vmatprep.subr.bf16.mxu0 %v1471
        %1525 = vmatpush1.bf16.msra.mxu0 %v1470
        %1526 = vmatprep.subr.bf16.mxu0 %v1475
        %1527 = vmatpush1.bf16.msra.mxu0 %v1474
        %1528 = vmatprep.subr.bf16.mxu0 %v1479
        %1529 = vmatpush1.bf16.msra.mxu0 %v1478
        %1530 = vmatprep.subr.bf16.mxu0 0
        %1531 = vmatpush1.bf16.msra.mxu0 0
        %1532 = vmatprep.subr.bf16.mxu0 0
        %1533 = vmatpush1.bf16.msra.mxu0 0
        %1534 = vmatprep.subr.bf16.mxu0 0
        %1535 = vmatpush1.bf16.msra.mxu0 0
        %1536 = vmatprep.subr.bf16.mxu0 0
        %1537 = vmatpush1.bf16.msra.mxu0 0
        %1538 = vmatprep.subr.bf16.mxu0 0
        %1539 = vmatpush1.bf16.msra.mxu0 0
        %1540 = vmatprep.subr.bf16.mxu0 0
        %1541 = vmatpush1.bf16.msra.mxu0 0
        %1542 = vmatprep.subr.bf16.mxu0 0
        %1543 = vmatpush1.bf16.msra.mxu0 0
        %1544 = vmatprep.subr.bf16.mxu0 0
        %1545 = vmatpush1.bf16.msra.mxu0 0
        %1546 = vmatprep.mubr.bf16.mxu0 0
        %1547 = vmatmul.mubr.bf16.gmra.mrb[0].mxu0 %v874
        %v1548 = vpop.f32.mrb[0].mxu0
        %v1549 = vadd.f32 0.0, %v1548
        %v1550 = vpop.f32.mrb[0].mxu0
        %v1551 = vadd.f32 0.0, %v1550
        %v1552 = vpop.f32.mrb[0].mxu0
        %v1553 = vadd.f32 0.0, %v1552
        %v1554 = vpop.f32.mrb[0].mxu0
        %v1555 = vadd.f32 0.0, %v1554
        %1556 = vmatprep.mubr.bf16.mxu0 0
        %1557 = vmatmul.mubr.bf16.gmra.mrb[0].mxu0 %v875
        %v1558 = vpop.f32.mrb[0].mxu0
        %v1559 = vadd.f32 0.0, %v1558
        %v1560 = vpop.f32.mrb[0].mxu0
        %v1561 = vadd.f32 0.0, %v1560
        %v1562 = vpop.f32.mrb[0].mxu0
        %v1563 = vadd.f32 0.0, %v1562
        %v1564 = vpop.f32.mrb[0].mxu0
        %v1565 = vadd.f32 0.0, %v1564
        %1566 = vmatprep.mubr.bf16.mxu0 0
        %1567 = vmatmul.mubr.bf16.gmra.mrb[0].mxu0 %v876
        %v1568 = vpop.f32.mrb[0].mxu0
        %v1569 = vadd.f32 0.0, %v1568
        %v1570 = vpop.f32.mrb[0].mxu0
        %v1571 = vadd.f32 0.0, %v1570
        %v1572 = vpop.f32.mrb[0].mxu0
        %v1573 = vadd.f32 0.0, %v1572
        %v1574 = vpop.f32.mrb[0].mxu0
        %v1575 = vadd.f32 0.0, %v1574
        %1576 = vmatprep.mubr.bf16.mxu0 0
        %1577 = vmatmul.mubr.bf16.gmra.mrb[0].mxu0 %v877
        %v1578 = vpop.f32.mrb[0].mxu0
        %v1579 = vadd.f32 0.0, %v1578
        %v1580 = vpop.f32.mrb[0].mxu0
        %v1581 = vadd.f32 0.0, %v1580
        %v1582 = vpop.f32.mrb[0].mxu0
        %v1583 = vadd.f32 0.0, %v1582
        %v1584 = vpop.f32.mrb[0].mxu0
        %v1585 = vadd.f32 0.0, %v1584
        %1586 = vmatprep.mubr.bf16.mxu0 0
        %1587 = vmatmul.mubr.bf16.gmra.mrb[0].mxu0 %v878
        %v1588 = vpop.f32.mrb[0].mxu0
        %v1589 = vadd.f32 0.0, %v1588
        %v1590 = vpop.f32.mrb[0].mxu0
        %v1591 = vadd.f32 0.0, %v1590
        %v1592 = vpop.f32.mrb[0].mxu0
        %v1593 = vadd.f32 0.0, %v1592
        %v1594 = vpop.f32.mrb[0].mxu0
        %v1595 = vadd.f32 0.0, %v1594
        %1596 = vmatprep.mubr.bf16.mxu0 0
        %1597 = vmatmul.mubr.bf16.gmra.mrb[0].mxu0 %v879
        %v1598 = vpop.f32.mrb[0].mxu0
        %v1599 = vadd.f32 0.0, %v1598
        %v1600 = vpop.f32.mrb[0].mxu0
        %v1601 = vadd.f32 0.0, %v1600
        %v1602 = vpop.f32.mrb[0].mxu0
        %v1603 = vadd.f32 0.0, %v1602
        %v1604 = vpop.f32.mrb[0].mxu0
        %v1605 = vadd.f32 0.0, %v1604
        %1606 = vmatprep.mubr.bf16.mxu0 0
        %1607 = vmatmul.mubr.bf16.gmra.mrb[0].mxu0 %v880
        %v1608 = vpop.f32.mrb[0].mxu0
        %v1609 = vadd.f32 0.0, %v1608
        %v1610 = vpop.f32.mrb[0].mxu0
        %v1611 = vadd.f32 0.0, %v1610
        %v1612 = vpop.f32.mrb[0].mxu0
        %v1613 = vadd.f32 0.0, %v1612
        %v1614 = vpop.f32.mrb[0].mxu0
        %v1615 = vadd.f32 0.0, %v1614
        %1616 = vmatprep.mubr.bf16.mxu0 0
        %1617 = vmatmul.mubr.bf16.gmra.mrb[0].mxu0 %v881
        %v1618 = vpop.f32.mrb[0].mxu0
        %v1619 = vadd.f32 0.0, %v1618
        %v1620 = vpop.f32.mrb[0].mxu0
        %v1621 = vadd.f32 0.0, %v1620
        %v1622 = vpop.f32.mrb[0].mxu0
        %v1623 = vadd.f32 0.0, %v1622
        %v1624 = vpop.f32.mrb[0].mxu0
        %v1625 = vadd.f32 0.0, %v1624
        %1626 = vdwg.mxu0
        %1627 = vmatprep.subr.bf16.mxu0 %v1453
        %1628 = vmatpush1.bf16.msra.mxu0 %v1452
        %1629 = vmatprep.subr.bf16.mxu0 %v1457
        %1630 = vmatpush1.bf16.msra.mxu0 %v1456
        %1631 = vmatprep.subr.bf16.mxu0 %v1461
        %1632 = vmatpush1.bf16.msra.mxu0 %v1460
        %1633 = vmatprep.subr.bf16.mxu0 %v1465
        %1634 = vmatpush1.bf16.msra.mxu0 %v1464
        %1635 = vmatprep.subr.bf16.mxu0 %v1469
        %1636 = vmatpush1.bf16.msra.mxu0 %v1468
        %1637 = vmatprep.subr.bf16.mxu0 %v1473
        %1638 = vmatpush1.bf16.msra.mxu0 %v1472
        %1639 = vmatprep.subr.bf16.mxu0 %v1477
        %1640 = vmatpush1.bf16.msra.mxu0 %v1476
        %1641 = vmatprep.subr.bf16.mxu0 %v1481
        %1642 = vmatpush1.bf16.msra.mxu0 %v1480
        %1643 = vmatprep.subr.bf16.mxu0 0
        %1644 = vmatpush1.bf16.msra.mxu0 0
        %1645 = vmatprep.subr.bf16.mxu0 0
        %1646 = vmatpush1.bf16.msra.mxu0 0
        %1647 = vmatprep.subr.bf16.mxu0 0
        %1648 = vmatpush1.bf16.msra.mxu0 0
        %1649 = vmatprep.subr.bf16.mxu0 0
        %1650 = vmatpush1.bf16.msra.mxu0 0
        %1651 = vmatprep.subr.bf16.mxu0 0
        %1652 = vmatpush1.bf16.msra.mxu0 0
        %1653 = vmatprep.subr.bf16.mxu0 0
        %1654 = vmatpush1.bf16.msra.mxu0 0
        %1655 = vmatprep.subr.bf16.mxu0 0
        %1656 = vmatpush1.bf16.msra.mxu0 0
        %1657 = vmatprep.subr.bf16.mxu0 0
        %1658 = vmatpush1.bf16.msra.mxu0 0
        %1659 = vmatprep.mubr.bf16.mxu0 0
        %1660 = vmatmul.mubr.bf16.gmra.mrb[0].mxu0 %v874
        %v1661 = vpop.f32.mrb[0].mxu0
        %v1662 = vadd.f32 0.0, %v1661
        %v1663 = vpop.f32.mrb[0].mxu0
        %v1664 = vadd.f32 0.0, %v1663
        %v1665 = vpop.f32.mrb[0].mxu0
        %v1666 = vadd.f32 0.0, %v1665
        %v1667 = vpop.f32.mrb[0].mxu0
        %v1668 = vadd.f32 0.0, %v1667
        %1669 = vmatprep.mubr.bf16.mxu0 0
        %1670 = vmatmul.mubr.bf16.gmra.mrb[0].mxu0 %v875
        %v1671 = vpop.f32.mrb[0].mxu0
        %v1672 = vadd.f32 0.0, %v1671
        %v1673 = vpop.f32.mrb[0].mxu0
        %v1674 = vadd.f32 0.0, %v1673
        %v1675 = vpop.f32.mrb[0].mxu0
        %v1676 = vadd.f32 0.0, %v1675
        %v1677 = vpop.f32.mrb[0].mxu0
        %v1678 = vadd.f32 0.0, %v1677
        %1679 = vmatprep.mubr.bf16.mxu0 0
        %1680 = vmatmul.mubr.bf16.gmra.mrb[0].mxu0 %v876
        %v1681 = vpop.f32.mrb[0].mxu0
        %v1682 = vadd.f32 0.0, %v1681
        %v1683 = vpop.f32.mrb[0].mxu0
        %v1684 = vadd.f32 0.0, %v1683
        %v1685 = vpop.f32.mrb[0].mxu0
        %v1686 = vadd.f32 0.0, %v1685
        %v1687 = vpop.f32.mrb[0].mxu0
        %v1688 = vadd.f32 0.0, %v1687
        %1689 = vmatprep.mubr.bf16.mxu0 0
        %1690 = vmatmul.mubr.bf16.gmra.mrb[0].mxu0 %v877
        %v1691 = vpop.f32.mrb[0].mxu0
        %v1692 = vadd.f32 0.0, %v1691
        %v1693 = vpop.f32.mrb[0].mxu0
        %v1694 = vadd.f32 0.0, %v1693
        %v1695 = vpop.f32.mrb[0].mxu0
        %v1696 = vadd.f32 0.0, %v1695
        %v1697 = vpop.f32.mrb[0].mxu0
        %v1698 = vadd.f32 0.0, %v1697
        %1699 = vmatprep.mubr.bf16.mxu0 0
        %1700 = vmatmul.mubr.bf16.gmra.mrb[0].mxu0 %v878
        %v1701 = vpop.f32.mrb[0].mxu0
        %v1702 = vadd.f32 0.0, %v1701
        %v1703 = vpop.f32.mrb[0].mxu0
        %v1704 = vadd.f32 0.0, %v1703
        %v1705 = vpop.f32.mrb[0].mxu0
        %v1706 = vadd.f32 0.0, %v1705
        %v1707 = vpop.f32.mrb[0].mxu0
        %v1708 = vadd.f32 0.0, %v1707
        %1709 = vmatprep.mubr.bf16.mxu0 0
        %1710 = vmatmul.mubr.bf16.gmra.mrb[0].mxu0 %v879
        %v1711 = vpop.f32.mrb[0].mxu0
        %v1712 = vadd.f32 0.0, %v1711
        %v1713 = vpop.f32.mrb[0].mxu0
        %v1714 = vadd.f32 0.0, %v1713
        %v1715 = vpop.f32.mrb[0].mxu0
        %v1716 = vadd.f32 0.0, %v1715
        %v1717 = vpop.f32.mrb[0].mxu0
        %v1718 = vadd.f32 0.0, %v1717
        %1719 = vmatprep.mubr.bf16.mxu0 0
        %1720 = vmatmul.mubr.bf16.gmra.mrb[0].mxu0 %v880
        %v1721 = vpop.f32.mrb[0].mxu0
        %v1722 = vadd.f32 0.0, %v1721
        %v1723 = vpop.f32.mrb[0].mxu0
        %v1724 = vadd.f32 0.0, %v1723
        %v1725 = vpop.f32.mrb[0].mxu0
        %v1726 = vadd.f32 0.0, %v1725
        %v1727 = vpop.f32.mrb[0].mxu0
        %v1728 = vadd.f32 0.0, %v1727
        %1729 = vmatprep.mubr.bf16.mxu0 0
        %1730 = vmatmul.mubr.bf16.gmra.mrb[0].mxu0 %v881
        %v1731 = vpop.f32.mrb[0].mxu0
        %v1732 = vadd.f32 0.0, %v1731
        %v1733 = vpop.f32.mrb[0].mxu0
        %v1734 = vadd.f32 0.0, %v1733
        %v1735 = vpop.f32.mrb[0].mxu0
        %v1736 = vadd.f32 0.0, %v1735
        %v1737 = vpop.f32.mrb[0].mxu0
        %v1738 = vadd.f32 0.0, %v1737
        %1739 = vdwg.mxu0
        %v1740 = vld [vmem:[%s6] sm:$0xff]
        %v1741 = vld [vmem:[%s6 + $0x8] sm:$0xff]
        %v1742 = vld [vmem:[%s6 + $0x10] sm:$0xff]
        %v1743 = vld [vmem:[%s6 + $0x18] sm:$0xff]
        %v1744 = vld [vmem:[%s6 + $0x20] sm:$0xff]
        %v1745 = vld [vmem:[%s6 + $0x28] sm:$0xff]
        %v1746 = vld [vmem:[%s6 + $0x30] sm:$0xff]
        %v1747 = vld [vmem:[%s6 + $0x38] sm:$0xff]
        %v1748 = vld [vmem:[%s6 + $0x40] sm:$0xff]
        %v1749 = vld [vmem:[%s6 + $0x48] sm:$0xff]
        %v1750 = vld [vmem:[%s6 + $0x50] sm:$0xff]
        %v1751 = vld [vmem:[%s6 + $0x58] sm:$0xff]
        %v1752 = vld [vmem:[%s6 + $0x60] sm:$0xff]
        %v1753 = vld [vmem:[%s6 + $0x68] sm:$0xff]
        %v1754 = vld [vmem:[%s6 + $0x70] sm:$0xff]
        %v1755 = vld [vmem:[%s6 + $0x78] sm:$0xff]
        %v1756 = vld [vmem:[%s6 + $0x80] sm:$0xff]
        %v1757 = vld [vmem:[%s6 + $0x88] sm:$0xff]
        %v1758 = vld [vmem:[%s6 + $0x90] sm:$0xff]
        %v1759 = vld [vmem:[%s6 + $0x98] sm:$0xff]
        %v1760 = vld [vmem:[%s6 + $0xa0] sm:$0xff]
        %v1761 = vld [vmem:[%s6 + $0xa8] sm:$0xff]
        %v1762 = vld [vmem:[%s6 + $0xb0] sm:$0xff]
        %v1763 = vld [vmem:[%s6 + $0xb8] sm:$0xff]
        %v1764 = vld [vmem:[%s6 + $0xc0] sm:$0xff]
        %v1765 = vld [vmem:[%s6 + $0xc8] sm:$0xff]
        %v1766 = vld [vmem:[%s6 + $0xd0] sm:$0xff]
        %v1767 = vld [vmem:[%s6 + $0xd8] sm:$0xff]
        %v1768 = vld [vmem:[%s6 + $0xe0] sm:$0xff]
        %v1769 = vld [vmem:[%s6 + $0xe8] sm:$0xff]
        %v1770 = vld [vmem:[%s6 + $0xf0] sm:$0xff]
        %v1771 = vld [vmem:[%s6 + $0xf8] sm:$0xff]
        %v1772 = vadd.f32 %v1131, %v1623
        %v1773 = vadd.f32 %v1133, %v1625
        %v1774 = vadd.f32 %v1244, %v1736
        %v1775 = vadd.f32 %v1246, %v1738
        %v1808 = vunpack.c.l.b16 %v1740
        %v1809 = vunpack.c.h.b16 %v1740
        %v1810 = vunpack.c.l.b16 %v1741
        %v1811 = vunpack.c.h.b16 %v1741
        %v1812 = vunpack.c.l.b16 %v1742
        %v1813 = vunpack.c.h.b16 %v1742
        %v1814 = vunpack.c.l.b16 %v1743
        %v1815 = vunpack.c.h.b16 %v1743
        %v1816 = vunpack.c.l.b16 %v1744
        %v1817 = vunpack.c.h.b16 %v1744
        %v1818 = vunpack.c.l.b16 %v1745
        %v1819 = vunpack.c.h.b16 %v1745
        %v1820 = vunpack.c.l.b16 %v1746
        %v1821 = vunpack.c.h.b16 %v1746
        %v1822 = vunpack.c.l.b16 %v1747
        %v1823 = vunpack.c.h.b16 %v1747
        %v1824 = vunpack.c.l.b16 %v1748
        %v1825 = vunpack.c.h.b16 %v1748
        %v1826 = vunpack.c.l.b16 %v1749
        %v1827 = vunpack.c.h.b16 %v1749
        %v1828 = vunpack.c.l.b16 %v1750
        %v1829 = vunpack.c.h.b16 %v1750
        %v1830 = vunpack.c.l.b16 %v1751
        %v1831 = vunpack.c.h.b16 %v1751
        %v1832 = vunpack.c.l.b16 %v1752
        %v1833 = vunpack.c.h.b16 %v1752
        %v1834 = vunpack.c.l.b16 %v1753
        %v1835 = vunpack.c.h.b16 %v1753
        %v1836 = vunpack.c.l.b16 %v1754
        %v1837 = vunpack.c.h.b16 %v1754
        %v1838 = vunpack.c.l.b16 %v1755
        %v1839 = vunpack.c.h.b16 %v1755
        %v1840 = vunpack.c.l.b16 %v1756
        %v1841 = vunpack.c.h.b16 %v1756
        %v1842 = vunpack.c.l.b16 %v1757
        %v1843 = vunpack.c.h.b16 %v1757
        %v1844 = vunpack.c.l.b16 %v1758
        %v1845 = vunpack.c.h.b16 %v1758
        %v1846 = vunpack.c.l.b16 %v1759
        %v1847 = vunpack.c.h.b16 %v1759
        %v1848 = vunpack.c.l.b16 %v1760
        %v1849 = vunpack.c.h.b16 %v1760
        %v1850 = vunpack.c.l.b16 %v1761
        %v1851 = vunpack.c.h.b16 %v1761
        %v1852 = vunpack.c.l.b16 %v1762
        %v1853 = vunpack.c.h.b16 %v1762
        %v1854 = vunpack.c.l.b16 %v1763
        %v1855 = vunpack.c.h.b16 %v1763
        %v1856 = vunpack.c.l.b16 %v1764
        %v1857 = vunpack.c.h.b16 %v1764
        %v1858 = vunpack.c.l.b16 %v1765
        %v1859 = vunpack.c.h.b16 %v1765
        %v1860 = vunpack.c.l.b16 %v1766
        %v1861 = vunpack.c.h.b16 %v1766
        %v1862 = vunpack.c.l.b16 %v1767
        %v1863 = vunpack.c.h.b16 %v1767
        %v1864 = vunpack.c.l.b16 %v1768
        %v1865 = vunpack.c.h.b16 %v1768
        %v1866 = vunpack.c.l.b16 %v1769
        %v1867 = vunpack.c.h.b16 %v1769
        %v1868 = vunpack.c.l.b16 %v1770
        %v1869 = vunpack.c.h.b16 %v1770
        %v1870 = vunpack.c.l.b16 %v1771
        %v1871 = vunpack.c.h.b16 %v1771
        %v1872 = vpack.c.b16 %v1812, %v1808
        %v1873 = vpack.c.b16 %v1813, %v1809
        %v1874 = vpack.c.b16 %v1814, %v1810
        %v1875 = vpack.c.b16 %v1815, %v1811
        %v1876 = vpack.c.b16 %v1820, %v1816
        %v1877 = vpack.c.b16 %v1821, %v1817
        %v1878 = vpack.c.b16 %v1822, %v1818
        %v1879 = vpack.c.b16 %v1823, %v1819
        %v1880 = vpack.c.b16 %v1828, %v1824
        %v1881 = vpack.c.b16 %v1829, %v1825
        %v1882 = vpack.c.b16 %v1830, %v1826
        %v1883 = vpack.c.b16 %v1831, %v1827
        %v1884 = vpack.c.b16 %v1836, %v1832
        %v1885 = vpack.c.b16 %v1837, %v1833
        %v1886 = vpack.c.b16 %v1838, %v1834
        %v1887 = vpack.c.b16 %v1839, %v1835
        %v1888 = vpack.c.b16 %v1844, %v1840
        %v1889 = vpack.c.b16 %v1845, %v1841
        %v1890 = vpack.c.b16 %v1846, %v1842
        %v1891 = vpack.c.b16 %v1847, %v1843
        %v1892 = vpack.c.b16 %v1852, %v1848
        %v1893 = vpack.c.b16 %v1853, %v1849
        %v1894 = vpack.c.b16 %v1854, %v1850
        %v1895 = vpack.c.b16 %v1855, %v1851
        %v1896 = vpack.c.b16 %v1860, %v1856
        %v1897 = vpack.c.b16 %v1861, %v1857
        %v1898 = vpack.c.b16 %v1862, %v1858
        %v1899 = vpack.c.b16 %v1863, %v1859
        %v1900 = vpack.c.b16 %v1868, %v1864
        %v1901 = vpack.c.b16 %v1869, %v1865
        %v1902 = vpack.c.b16 %v1870, %v1866
        %v1903 = vpack.c.b16 %v1871, %v1867
        %1936 = vmatprep.subr.bf16.mxu0 %v1873
        %1937 = vmatpush1.bf16.msra.mxu0 %v1872
        %1938 = vmatprep.subr.bf16.mxu0 %v1877
        %1939 = vmatpush1.bf16.msra.mxu0 %v1876
        %1940 = vmatprep.subr.bf16.mxu0 %v1881
        %1941 = vmatpush1.bf16.msra.mxu0 %v1880
        %1942 = vmatprep.subr.bf16.mxu0 %v1885
        %1943 = vmatpush1.bf16.msra.mxu0 %v1884
        %1944 = vmatprep.subr.bf16.mxu0 %v1889
        %1945 = vmatpush1.bf16.msra.mxu0 %v1888
        %1946 = vmatprep.subr.bf16.mxu0 %v1893
        %1947 = vmatpush1.bf16.msra.mxu0 %v1892
        %1948 = vmatprep.subr.bf16.mxu0 %v1897
        %1949 = vmatpush1.bf16.msra.mxu0 %v1896
        %1950 = vmatprep.subr.bf16.mxu0 %v1901
        %1951 = vmatpush1.bf16.msra.mxu0 %v1900
        %1952 = vmatprep.subr.bf16.mxu0 0
        %1953 = vmatpush1.bf16.msra.mxu0 0
        %1954 = vmatprep.subr.bf16.mxu0 0
        %1955 = vmatpush1.bf16.msra.mxu0 0
        %1956 = vmatprep.subr.bf16.mxu0 0
        %1957 = vmatpush1.bf16.msra.mxu0 0
        %1958 = vmatprep.subr.bf16.mxu0 0
        %1959 = vmatpush1.bf16.msra.mxu0 0
        %1960 = vmatprep.subr.bf16.mxu0 0
        %1961 = vmatpush1.bf16.msra.mxu0 0
        %1962 = vmatprep.subr.bf16.mxu0 0
        %1963 = vmatpush1.bf16.msra.mxu0 0
        %1964 = vmatprep.subr.bf16.mxu0 0
        %1965 = vmatpush1.bf16.msra.mxu0 0
        %1966 = vmatprep.subr.bf16.mxu0 0
        %1967 = vmatpush1.bf16.msra.mxu0 0
        %1968 = vmatprep.mubr.bf16.mxu0 0
        %1969 = vmatmul.mubr.bf16.gmra.mrb[0].mxu0 0
        %v1970 = vpop.f32.mrb[0].mxu0
        %v1971 = vadd.f32 0.0, %v1970
        %v1972 = vpop.f32.mrb[0].mxu0
        %v1973 = vadd.f32 0.0, %v1972
        %v1974 = vpop.f32.mrb[0].mxu0
        %v1975 = vpop.f32.mrb[0].mxu0
        %1976 = vdwg.mxu0
        %1977 = vmatprep.subr.bf16.mxu0 %v1875
        %1978 = vmatpush1.bf16.msra.mxu0 %v1874
        %1979 = vmatprep.subr.bf16.mxu0 %v1879
        %1980 = vmatpush1.bf16.msra.mxu0 %v1878
        %1981 = vmatprep.subr.bf16.mxu0 %v1883
        %1982 = vmatpush1.bf16.msra.mxu0 %v1882
        %1983 = vmatprep.subr.bf16.mxu0 %v1887
        %1984 = vmatpush1.bf16.msra.mxu0 %v1886
        %1985 = vmatprep.subr.bf16.mxu0 %v1891
        %1986 = vmatpush1.bf16.msra.mxu0 %v1890
        %1987 = vmatprep.subr.bf16.mxu0 %v1895
        %1988 = vmatpush1.bf16.msra.mxu0 %v1894
        %1989 = vmatprep.subr.bf16.mxu0 %v1899
        %1990 = vmatpush1.bf16.msra.mxu0 %v1898
        %1991 = vmatprep.subr.bf16.mxu0 %v1903
        %1992 = vmatpush1.bf16.msra.mxu0 %v1902
        %1993 = vmatprep.subr.bf16.mxu0 0
        %1994 = vmatpush1.bf16.msra.mxu0 0
        %1995 = vmatprep.subr.bf16.mxu0 0
        %1996 = vmatpush1.bf16.msra.mxu0 0
        %1997 = vmatprep.subr.bf16.mxu0 0
        %1998 = vmatpush1.bf16.msra.mxu0 0
        %1999 = vmatprep.subr.bf16.mxu0 0
        %2000 = vmatpush1.bf16.msra.mxu0 0
        %2001 = vmatprep.subr.bf16.mxu0 0
        %2002 = vmatpush1.bf16.msra.mxu0 0
        %2003 = vmatprep.subr.bf16.mxu0 0
        %2004 = vmatpush1.bf16.msra.mxu0 0
        %2005 = vmatprep.subr.bf16.mxu0 0
        %2006 = vmatpush1.bf16.msra.mxu0 0
        %2007 = vmatprep.subr.bf16.mxu0 0
        %2008 = vmatpush1.bf16.msra.mxu0 0
        %2009 = vmatprep.mubr.bf16.mxu0 0
        %2010 = vmatmul.mubr.bf16.gmra.mrb[0].mxu0 0
        %v2011 = vpop.f32.mrb[0].mxu0
        %v2012 = vadd.f32 0.0, %v2011
        %v2013 = vpop.f32.mrb[0].mxu0
        %v2014 = vadd.f32 0.0, %v2013
        %v2015 = vpop.f32.mrb[0].mxu0
        %v2016 = vpop.f32.mrb[0].mxu0
        %2017 = vdwg.mxu0
        %v2018 = vadd.f32 %v1772, %v1971
        %v2019 = vadd.f32 %v1773, %v1973
        %v2020 = vadd.f32 %v1774, %v2012
        %v2021 = vadd.f32 %v1775, %v2014
        %v2022 = vmul.f32 %v2018, 0.2
        %v2023 = vmul.f32 %v2019, 0.2
        %v2024 = vmul.f32 %v2020, 0.2
        %v2025 = vadd.f32 %v2022, 0.5
        %v2026 = vadd.f32 %v2023, 0.5
        %v2027 = vadd.f32 %v2024, 0.5
        %v2028 = vmax.f32 %v2025, 0.0
        %v2029 = vmax.f32 %v2026, 0.0
        %v2030 = vmax.f32 %v2027, 0.0
        %v2031 = vmin.f32 %v2028, 1.0
        %v2032 = vmin.f32 %v2029, 1.0
        %v2033 = vmin.f32 %v2030, 1.0
        %v2034 = vtanh.pop %v2021
        %v2035 = vmul.f32 %v2032, 0.0
        %v2036 = vmul.f32 %v2031, %v2034
        %v2037 = vadd.f32 %v2035, %v2036
        %v2038 = vtanh.pop %v2037
        %v2039 = vmul.f32 %v2033, %v2038
        %v2040 = vadd.f32 %v1135, %v1619
        %v2041 = vadd.f32 %v1137, %v1621
        %v2042 = vadd.f32 %v1248, %v1732
        %v2043 = vadd.f32 %v1250, %v1734
        %v2044 = vpack.c.bf16 %v2039, %v2039
        %2045 = vmatprep.subr.bf16.mxu0 %v1873
        %2046 = vmatpush1.bf16.msra.mxu0 %v1872
        %2047 = vmatprep.subr.bf16.mxu0 %v1877
        %2048 = vmatpush1.bf16.msra.mxu0 %v1876
        %2049 = vmatprep.subr.bf16.mxu0 %v1881
        %2050 = vmatpush1.bf16.msra.mxu0 %v1880
        %2051 = vmatprep.subr.bf16.mxu0 %v1885
        %2052 = vmatpush1.bf16.msra.mxu0 %v1884
        %2053 = vmatprep.subr.bf16.mxu0 %v1889
        %2054 = vmatpush1.bf16.msra.mxu0 %v1888
        %2055 = vmatprep.subr.bf16.mxu0 %v1893
        %2056 = vmatpush1.bf16.msra.mxu0 %v1892
        %2057 = vmatprep.subr.bf16.mxu0 %v1897
        %2058 = vmatpush1.bf16.msra.mxu0 %v1896
        %2059 = vmatprep.subr.bf16.mxu0 %v1901
        %2060 = vmatpush1.bf16.msra.mxu0 %v1900
        %2061 = vmatprep.subr.bf16.mxu0 0
        %2062 = vmatpush1.bf16.msra.mxu0 0
        %2063 = vmatprep.subr.bf16.mxu0 0
        %2064 = vmatpush1.bf16.msra.mxu0 0
        %2065 = vmatprep.subr.bf16.mxu0 0
        %2066 = vmatpush1.bf16.msra.mxu0 0
        %2067 = vmatprep.subr.bf16.mxu0 0
        %2068 = vmatpush1.bf16.msra.mxu0 0
        %2069 = vmatprep.subr.bf16.mxu0 0
        %2070 = vmatpush1.bf16.msra.mxu0 0
        %2071 = vmatprep.subr.bf16.mxu0 0
        %2072 = vmatpush1.bf16.msra.mxu0 0
        %2073 = vmatprep.subr.bf16.mxu0 0
        %2074 = vmatpush1.bf16.msra.mxu0 0
        %2075 = vmatprep.subr.bf16.mxu0 0
        %2076 = vmatpush1.bf16.msra.mxu0 0
        %2077 = vmatprep.mubr.bf16.mxu0 0
        %2078 = vmatmul.mubr.bf16.gmra.mrb[0].mxu0 %v2044
        %v2079 = vpop.f32.mrb[0].mxu0
        %v2080 = vadd.f32 0.0, %v2079
        %v2081 = vpop.f32.mrb[0].mxu0
        %v2082 = vadd.f32 0.0, %v2081
        %v2083 = vpop.f32.mrb[0].mxu0
        %v2084 = vpop.f32.mrb[0].mxu0
        %2085 = vdwg.mxu0
        %2086 = vmatprep.subr.bf16.mxu0 %v1875
        %2087 = vmatpush1.bf16.msra.mxu0 %v1874
        %2088 = vmatprep.subr.bf16.mxu0 %v1879
        %2089 = vmatpush1.bf16.msra.mxu0 %v1878
        %2090 = vmatprep.subr.bf16.mxu0 %v1883
        %2091 = vmatpush1.bf16.msra.mxu0 %v1882
        %2092 = vmatprep.subr.bf16.mxu0 %v1887
        %2093 = vmatpush1.bf16.msra.mxu0 %v1886
        %2094 = vmatprep.subr.bf16.mxu0 %v1891
        %2095 = vmatpush1.bf16.msra.mxu0 %v1890
        %2096 = vmatprep.subr.bf16.mxu0 %v1895
        %2097 = vmatpush1.bf16.msra.mxu0 %v1894
        %2098 = vmatprep.subr.bf16.mxu0 %v1899
        %2099 = vmatpush1.bf16.msra.mxu0 %v1898
        %2100 = vmatprep.subr.bf16.mxu0 %v1903
        %2101 = vmatpush1.bf16.msra.mxu0 %v1902
        %2102 = vmatprep.subr.bf16.mxu0 0
        %2103 = vmatpush1.bf16.msra.mxu0 0
        %2104 = vmatprep.subr.bf16.mxu0 0
        %2105 = vmatpush1.bf16.msra.mxu0 0
        %2106 = vmatprep.subr.bf16.mxu0 0
        %2107 = vmatpush1.bf16.msra.mxu0 0
        %2108 = vmatprep.subr.bf16.mxu0 0
        %2109 = vmatpush1.bf16.msra.mxu0 0
        %2110 = vmatprep.subr.bf16.mxu0 0
        %2111 = vmatpush1.bf16.msra.mxu0 0
        %2112 = vmatprep.subr.bf16.mxu0 0
        %2113 = vmatpush1.bf16.msra.mxu0 0
        %2114 = vmatprep.subr.bf16.mxu0 0
        %2115 = vmatpush1.bf16.msra.mxu0 0
        %2116 = vmatprep.subr.bf16.mxu0 0
        %2117 = vmatpush1.bf16.msra.mxu0 0
        %2118 = vmatprep.mubr.bf16.mxu0 0
        %2119 = vmatmul.mubr.bf16.gmra.mrb[0].mxu0 %v2044
        %v2120 = vpop.f32.mrb[0].mxu0
        %v2121 = vadd.f32 0.0, %v2120
        %v2122 = vpop.f32.mrb[0].mxu0
        %v2123 = vadd.f32 0.0, %v2122
        %v2124 = vpop.f32.mrb[0].mxu0
        %v2125 = vpop.f32.mrb[0].mxu0
        %2126 = vdwg.mxu0
        %v2127 = vadd.f32 %v2040, %v2080
        %v2128 = vadd.f32 %v2041, %v2082
        %v2129 = vadd.f32 %v2042, %v2121
        %v2130 = vadd.f32 %v2043, %v2123
        %v2131 = vmul.f32 %v2127, 0.2
        %v2132 = vmul.f32 %v2128, 0.2
        %v2133 = vmul.f32 %v2129, 0.2
        %v2134 = vadd.f32 %v2131, 0.5
        %v2135 = vadd.f32 %v2132, 0.5
        %v2136 = vadd.f32 %v2133, 0.5
        %v2137 = vmax.f32 %v2134, 0.0
        %v2138 = vmax.f32 %v2135, 0.0
        %v2139 = vmax.f32 %v2136, 0.0
        %v2140 = vmin.f32 %v2137, 1.0
        %v2141 = vmin.f32 %v2138, 1.0
        %v2142 = vmin.f32 %v2139, 1.0
        %v2143 = vtanh.pop %v2130
        %v2144 = vmul.f32 %v2141, %v2037
        %v2145 = vmul.f32 %v2140, %v2143
        %v2146 = vadd.f32 %v2144, %v2145
        %v2147 = vtanh.pop %v2146
        %v2148 = vmul.f32 %v2142, %v2147
        %v2149 = vmax.f32 %v2039, %v2148
        %v2150 = vadd.f32 %v1141, %v1613
        %v2151 = vadd.f32 %v1143, %v1615
        %v2152 = vadd.f32 %v1254, %v1726
        %v2153 = vadd.f32 %v1256, %v1728
        %v2154 = vpack.c.bf16 %v2148, %v2148
        %2155 = vmatprep.subr.bf16.mxu0 %v1873
        %2156 = vmatpush1.bf16.msra.mxu0 %v1872
        %2157 = vmatprep.subr.bf16.mxu0 %v1877
        %2158 = vmatpush1.bf16.msra.mxu0 %v1876
        %2159 = vmatprep.subr.bf16.mxu0 %v1881
        %2160 = vmatpush1.bf16.msra.mxu0 %v1880
        %2161 = vmatprep.subr.bf16.mxu0 %v1885
        %2162 = vmatpush1.bf16.msra.mxu0 %v1884
        %2163 = vmatprep.subr.bf16.mxu0 %v1889
        %2164 = vmatpush1.bf16.msra.mxu0 %v1888
        %2165 = vmatprep.subr.bf16.mxu0 %v1893
        %2166 = vmatpush1.bf16.msra.mxu0 %v1892
        %2167 = vmatprep.subr.bf16.mxu0 %v1897
        %2168 = vmatpush1.bf16.msra.mxu0 %v1896
        %2169 = vmatprep.subr.bf16.mxu0 %v1901
        %2170 = vmatpush1.bf16.msra.mxu0 %v1900
        %2171 = vmatprep.subr.bf16.mxu0 0
        %2172 = vmatpush1.bf16.msra.mxu0 0
        %2173 = vmatprep.subr.bf16.mxu0 0
        %2174 = vmatpush1.bf16.msra.mxu0 0
        %2175 = vmatprep.subr.bf16.mxu0 0
        %2176 = vmatpush1.bf16.msra.mxu0 0
        %2177 = vmatprep.subr.bf16.mxu0 0
        %2178 = vmatpush1.bf16.msra.mxu0 0
        %2179 = vmatprep.subr.bf16.mxu0 0
        %2180 = vmatpush1.bf16.msra.mxu0 0
        %2181 = vmatprep.subr.bf16.mxu0 0
        %2182 = vmatpush1.bf16.msra.mxu0 0
        %2183 = vmatprep.subr.bf16.mxu0 0
        %2184 = vmatpush1.bf16.msra.mxu0 0
        %2185 = vmatprep.subr.bf16.mxu0 0
        %2186 = vmatpush1.bf16.msra.mxu0 0
        %2187 = vmatprep.mubr.bf16.mxu0 0
        %2188 = vmatmul.mubr.bf16.gmra.mrb[0].mxu0 %v2154
        %v2189 = vpop.f32.mrb[0].mxu0
        %v2190 = vadd.f32 0.0, %v2189
        %v2191 = vpop.f32.mrb[0].mxu0
        %v2192 = vadd.f32 0.0, %v2191
        %v2193 = vpop.f32.mrb[0].mxu0
        %v2194 = vpop.f32.mrb[0].mxu0
        %2195 = vdwg.mxu0
        %2196 = vmatprep.subr.bf16.mxu0 %v1875
        %2197 = vmatpush1.bf16.msra.mxu0 %v1874
        %2198 = vmatprep.subr.bf16.mxu0 %v1879
        %2199 = vmatpush1.bf16.msra.mxu0 %v1878
        %2200 = vmatprep.subr.bf16.mxu0 %v1883
        %2201 = vmatpush1.bf16.msra.mxu0 %v1882
        %2202 = vmatprep.subr.bf16.mxu0 %v1887
        %2203 = vmatpush1.bf16.msra.mxu0 %v1886
        %2204 = vmatprep.subr.bf16.mxu0 %v1891
        %2205 = vmatpush1.bf16.msra.mxu0 %v1890
        %2206 = vmatprep.subr.bf16.mxu0 %v1895
        %2207 = vmatpush1.bf16.msra.mxu0 %v1894
        %2208 = vmatprep.subr.bf16.mxu0 %v1899
        %2209 = vmatpush1.bf16.msra.mxu0 %v1898
        %2210 = vmatprep.subr.bf16.mxu0 %v1903
        %2211 = vmatpush1.bf16.msra.mxu0 %v1902
        %2212 = vmatprep.subr.bf16.mxu0 0
        %2213 = vmatpush1.bf16.msra.mxu0 0
        %2214 = vmatprep.subr.bf16.mxu0 0
        %2215 = vmatpush1.bf16.msra.mxu0 0
        %2216 = vmatprep.subr.bf16.mxu0 0
        %2217 = vmatpush1.bf16.msra.mxu0 0
        %2218 = vmatprep.subr.bf16.mxu0 0
        %2219 = vmatpush1.bf16.msra.mxu0 0
        %2220 = vmatprep.subr.bf16.mxu0 0
        %2221 = vmatpush1.bf16.msra.mxu0 0
        %2222 = vmatprep.subr.bf16.mxu0 0
        %2223 = vmatpush1.bf16.msra.mxu0 0
        %2224 = vmatprep.subr.bf16.mxu0 0
        %2225 = vmatpush1.bf16.msra.mxu0 0
        %2226 = vmatprep.subr.bf16.mxu0 0
        %2227 = vmatpush1.bf16.msra.mxu0 0
        %2228 = vmatprep.mubr.bf16.mxu0 0
        %2229 = vmatmul.mubr.bf16.gmra.mrb[0].mxu0 %v2154
        %v2230 = vpop.f32.mrb[0].mxu0
        %v2231 = vadd.f32 0.0, %v2230
        %v2232 = vpop.f32.mrb[0].mxu0
        %v2233 = vadd.f32 0.0, %v2232
        %v2234 = vpop.f32.mrb[0].mxu0
        %v2235 = vpop.f32.mrb[0].mxu0
        %2236 = vdwg.mxu0
        %v2237 = vadd.f32 %v2150, %v2190
        %v2238 = vadd.f32 %v2151, %v2192
        %v2239 = vadd.f32 %v2152, %v2231
        %v2240 = vadd.f32 %v2153, %v2233
        %v2241 = vmul.f32 %v2237, 0.2
        %v2242 = vmul.f32 %v2238, 0.2
        %v2243 = vmul.f32 %v2239, 0.2
        %v2244 = vadd.f32 %v2241, 0.5
        %v2245 = vadd.f32 %v2242, 0.5
        %v2246 = vadd.f32 %v2243, 0.5
        %v2247 = vmax.f32 %v2244, 0.0
        %v2248 = vmax.f32 %v2245, 0.0
        %v2249 = vmax.f32 %v2246, 0.0
        %v2250 = vmin.f32 %v2247, 1.0
        %v2251 = vmin.f32 %v2248, 1.0
        %v2252 = vmin.f32 %v2249, 1.0
        %v2253 = vtanh.pop %v2240
        %v2254 = vmul.f32 %v2251, %v2146
        %v2255 = vmul.f32 %v2250, %v2253
        %v2256 = vadd.f32 %v2254, %v2255
        %v2257 = vtanh.pop %v2256
        %v2258 = vmul.f32 %v2252, %v2257
        %v2259 = vmax.f32 %v2149, %v2258
        %v2260 = vadd.f32 %v1145, %v1609
        %v2261 = vadd.f32 %v1147, %v1611
        %v2262 = vadd.f32 %v1258, %v1722
        %v2263 = vadd.f32 %v1260, %v1724
        %v2264 = vpack.c.bf16 %v2258, %v2258
        %2265 = vmatprep.subr.bf16.mxu0 %v1873
        %2266 = vmatpush1.bf16.msra.mxu0 %v1872
        %2267 = vmatprep.subr.bf16.mxu0 %v1877
        %2268 = vmatpush1.bf16.msra.mxu0 %v1876
        %2269 = vmatprep.subr.bf16.mxu0 %v1881
        %2270 = vmatpush1.bf16.msra.mxu0 %v1880
        %2271 = vmatprep.subr.bf16.mxu0 %v1885
        %2272 = vmatpush1.bf16.msra.mxu0 %v1884
        %2273 = vmatprep.subr.bf16.mxu0 %v1889
        %2274 = vmatpush1.bf16.msra.mxu0 %v1888
        %2275 = vmatprep.subr.bf16.mxu0 %v1893
        %2276 = vmatpush1.bf16.msra.mxu0 %v1892
        %2277 = vmatprep.subr.bf16.mxu0 %v1897
        %2278 = vmatpush1.bf16.msra.mxu0 %v1896
        %2279 = vmatprep.subr.bf16.mxu0 %v1901
        %2280 = vmatpush1.bf16.msra.mxu0 %v1900
        %2281 = vmatprep.subr.bf16.mxu0 0
        %2282 = vmatpush1.bf16.msra.mxu0 0
        %2283 = vmatprep.subr.bf16.mxu0 0
        %2284 = vmatpush1.bf16.msra.mxu0 0
        %2285 = vmatprep.subr.bf16.mxu0 0
        %2286 = vmatpush1.bf16.msra.mxu0 0
        %2287 = vmatprep.subr.bf16.mxu0 0
        %2288 = vmatpush1.bf16.msra.mxu0 0
        %2289 = vmatprep.subr.bf16.mxu0 0
        %2290 = vmatpush1.bf16.msra.mxu0 0
        %2291 = vmatprep.subr.bf16.mxu0 0
        %2292 = vmatpush1.bf16.msra.mxu0 0
        %2293 = vmatprep.subr.bf16.mxu0 0
        %2294 = vmatpush1.bf16.msra.mxu0 0
        %2295 = vmatprep.subr.bf16.mxu0 0
        %2296 = vmatpush1.bf16.msra.mxu0 0
        %2297 = vmatprep.mubr.bf16.mxu0 0
        %2298 = vmatmul.mubr.bf16.gmra.mrb[0].mxu0 %v2264
        %v2299 = vpop.f32.mrb[0].mxu0
        %v2300 = vadd.f32 0.0, %v2299
        %v2301 = vpop.f32.mrb[0].mxu0
        %v2302 = vadd.f32 0.0, %v2301
        %v2303 = vpop.f32.mrb[0].mxu0
        %v2304 = vpop.f32.mrb[0].mxu0
        %2305 = vdwg.mxu0
        %2306 = vmatprep.subr.bf16.mxu0 %v1875
        %2307 = vmatpush1.bf16.msra.mxu0 %v1874
        %2308 = vmatprep.subr.bf16.mxu0 %v1879
        %2309 = vmatpush1.bf16.msra.mxu0 %v1878
        %2310 = vmatprep.subr.bf16.mxu0 %v1883
        %2311 = vmatpush1.bf16.msra.mxu0 %v1882
        %2312 = vmatprep.subr.bf16.mxu0 %v1887
        %2313 = vmatpush1.bf16.msra.mxu0 %v1886
        %2314 = vmatprep.subr.bf16.mxu0 %v1891
        %2315 = vmatpush1.bf16.msra.mxu0 %v1890
        %2316 = vmatprep.subr.bf16.mxu0 %v1895
        %2317 = vmatpush1.bf16.msra.mxu0 %v1894
        %2318 = vmatprep.subr.bf16.mxu0 %v1899
        %2319 = vmatpush1.bf16.msra.mxu0 %v1898
        %2320 = vmatprep.subr.bf16.mxu0 %v1903
        %2321 = vmatpush1.bf16.msra.mxu0 %v1902
        %2322 = vmatprep.subr.bf16.mxu0 0
        %2323 = vmatpush1.bf16.msra.mxu0 0
        %2324 = vmatprep.subr.bf16.mxu0 0
        %2325 = vmatpush1.bf16.msra.mxu0 0
        %2326 = vmatprep.subr.bf16.mxu0 0
        %2327 = vmatpush1.bf16.msra.mxu0 0
        %2328 = vmatprep.subr.bf16.mxu0 0
        %2329 = vmatpush1.bf16.msra.mxu0 0
        %2330 = vmatprep.subr.bf16.mxu0 0
        %2331 = vmatpush1.bf16.msra.mxu0 0
        %2332 = vmatprep.subr.bf16.mxu0 0
        %2333 = vmatpush1.bf16.msra.mxu0 0
        %2334 = vmatprep.subr.bf16.mxu0 0
        %2335 = vmatpush1.bf16.msra.mxu0 0
        %2336 = vmatprep.subr.bf16.mxu0 0
        %2337 = vmatpush1.bf16.msra.mxu0 0
        %2338 = vmatprep.mubr.bf16.mxu0 0
        %2339 = vmatmul.mubr.bf16.gmra.mrb[0].mxu0 %v2264
        %v2340 = vpop.f32.mrb[0].mxu0
        %v2341 = vadd.f32 0.0, %v2340
        %v2342 = vpop.f32.mrb[0].mxu0
        %v2343 = vadd.f32 0.0, %v2342
        %v2344 = vpop.f32.mrb[0].mxu0
        %v2345 = vpop.f32.mrb[0].mxu0
        %2346 = vdwg.mxu0
        %v2347 = vadd.f32 %v2260, %v2300
        %v2348 = vadd.f32 %v2261, %v2302
        %v2349 = vadd.f32 %v2262, %v2341
        %v2350 = vadd.f32 %v2263, %v2343
        %v2351 = vmul.f32 %v2347, 0.2
        %v2352 = vmul.f32 %v2348, 0.2
        %v2353 = vmul.f32 %v2349, 0.2
        %v2354 = vadd.f32 %v2351, 0.5
        %v2355 = vadd.f32 %v2352, 0.5
        %v2356 = vadd.f32 %v2353, 0.5
        %v2357 = vmax.f32 %v2354, 0.0
        %v2358 = vmax.f32 %v2355, 0.0
        %v2359 = vmax.f32 %v2356, 0.0
        %v2360 = vmin.f32 %v2357, 1.0
        %v2361 = vmin.f32 %v2358, 1.0
        %v2362 = vmin.f32 %v2359, 1.0
        %v2363 = vtanh.pop %v2350
        %v2364 = vmul.f32 %v2361, %v2256
        %v2365 = vmul.f32 %v2360, %v2363
        %v2366 = vadd.f32 %v2364, %v2365
        %v2367 = vtanh.pop %v2366
        %v2368 = vmul.f32 %v2362, %v2367
        %v2369 = vmax.f32 %v2259, %v2368
        %v2370 = vadd.f32 %v1151, %v1603
        %v2371 = vadd.f32 %v1153, %v1605
        %v2372 = vadd.f32 %v1264, %v1716
        %v2373 = vadd.f32 %v1266, %v1718
        %v2374 = vpack.c.bf16 %v2368, %v2368
        %2375 = vmatprep.subr.bf16.mxu0 %v1873
        %2376 = vmatpush1.bf16.msra.mxu0 %v1872
        %2377 = vmatprep.subr.bf16.mxu0 %v1877
        %2378 = vmatpush1.bf16.msra.mxu0 %v1876
        %2379 = vmatprep.subr.bf16.mxu0 %v1881
        %2380 = vmatpush1.bf16.msra.mxu0 %v1880
        %2381 = vmatprep.subr.bf16.mxu0 %v1885
        %2382 = vmatpush1.bf16.msra.mxu0 %v1884
        %2383 = vmatprep.subr.bf16.mxu0 %v1889
        %2384 = vmatpush1.bf16.msra.mxu0 %v1888
        %2385 = vmatprep.subr.bf16.mxu0 %v1893
        %2386 = vmatpush1.bf16.msra.mxu0 %v1892
        %2387 = vmatprep.subr.bf16.mxu0 %v1897
        %2388 = vmatpush1.bf16.msra.mxu0 %v1896
        %2389 = vmatprep.subr.bf16.mxu0 %v1901
        %2390 = vmatpush1.bf16.msra.mxu0 %v1900
        %2391 = vmatprep.subr.bf16.mxu0 0
        %2392 = vmatpush1.bf16.msra.mxu0 0
        %2393 = vmatprep.subr.bf16.mxu0 0
        %2394 = vmatpush1.bf16.msra.mxu0 0
        %2395 = vmatprep.subr.bf16.mxu0 0
        %2396 = vmatpush1.bf16.msra.mxu0 0
        %2397 = vmatprep.subr.bf16.mxu0 0
        %2398 = vmatpush1.bf16.msra.mxu0 0
        %2399 = vmatprep.subr.bf16.mxu0 0
        %2400 = vmatpush1.bf16.msra.mxu0 0
        %2401 = vmatprep.subr.bf16.mxu0 0
        %2402 = vmatpush1.bf16.msra.mxu0 0
        %2403 = vmatprep.subr.bf16.mxu0 0
        %2404 = vmatpush1.bf16.msra.mxu0 0
        %2405 = vmatprep.subr.bf16.mxu0 0
        %2406 = vmatpush1.bf16.msra.mxu0 0
        %2407 = vmatprep.mubr.bf16.mxu0 0
        %2408 = vmatmul.mubr.bf16.gmra.mrb[0].mxu0 %v2374
        %v2409 = vpop.f32.mrb[0].mxu0
        %v2410 = vadd.f32 0.0, %v2409
        %v2411 = vpop.f32.mrb[0].mxu0
        %v2412 = vadd.f32 0.0, %v2411
        %v2413 = vpop.f32.mrb[0].mxu0
        %v2414 = vpop.f32.mrb[0].mxu0
        %2415 = vdwg.mxu0
        %2416 = vmatprep.subr.bf16.mxu0 %v1875
        %2417 = vmatpush1.bf16.msra.mxu0 %v1874
        %2418 = vmatprep.subr.bf16.mxu0 %v1879
        %2419 = vmatpush1.bf16.msra.mxu0 %v1878
        %2420 = vmatprep.subr.bf16.mxu0 %v1883
        %2421 = vmatpush1.bf16.msra.mxu0 %v1882
        %2422 = vmatprep.subr.bf16.mxu0 %v1887
        %2423 = vmatpush1.bf16.msra.mxu0 %v1886
        %2424 = vmatprep.subr.bf16.mxu0 %v1891
        %2425 = vmatpush1.bf16.msra.mxu0 %v1890
        %2426 = vmatprep.subr.bf16.mxu0 %v1895
        %2427 = vmatpush1.bf16.msra.mxu0 %v1894
        %2428 = vmatprep.subr.bf16.mxu0 %v1899
        %2429 = vmatpush1.bf16.msra.mxu0 %v1898
        %2430 = vmatprep.subr.bf16.mxu0 %v1903
        %2431 = vmatpush1.bf16.msra.mxu0 %v1902
        %2432 = vmatprep.subr.bf16.mxu0 0
        %2433 = vmatpush1.bf16.msra.mxu0 0
        %2434 = vmatprep.subr.bf16.mxu0 0
        %2435 = vmatpush1.bf16.msra.mxu0 0
        %2436 = vmatprep.subr.bf16.mxu0 0
        %2437 = vmatpush1.bf16.msra.mxu0 0
        %2438 = vmatprep.subr.bf16.mxu0 0
        %2439 = vmatpush1.bf16.msra.mxu0 0
        %2440 = vmatprep.subr.bf16.mxu0 0
        %2441 = vmatpush1.bf16.msra.mxu0 0
        %2442 = vmatprep.subr.bf16.mxu0 0
        %2443 = vmatpush1.bf16.msra.mxu0 0
        %2444 = vmatprep.subr.bf16.mxu0 0
        %2445 = vmatpush1.bf16.msra.mxu0 0
        %2446 = vmatprep.subr.bf16.mxu0 0
        %2447 = vmatpush1.bf16.msra.mxu0 0
        %2448 = vmatprep.mubr.bf16.mxu0 0
        %2449 = vmatmul.mubr.bf16.gmra.mrb[0].mxu0 %v2374
        %v2450 = vpop.f32.mrb[0].mxu0
        %v2451 = vadd.f32 0.0, %v2450
        %v2452 = vpop.f32.mrb[0].mxu0
        %v2453 = vadd.f32 0.0, %v2452
        %v2454 = vpop.f32.mrb[0].mxu0
        %v2455 = vpop.f32.mrb[0].mxu0
        %2456 = vdwg.mxu0
        %v2457 = vadd.f32 %v2370, %v2410
        %v2458 = vadd.f32 %v2371, %v2412
        %v2459 = vadd.f32 %v2372, %v2451
        %v2460 = vadd.f32 %v2373, %v2453
        %v2461 = vmul.f32 %v2457, 0.2
        %v2462 = vmul.f32 %v2458, 0.2
        %v2463 = vmul.f32 %v2459, 0.2
        %v2464 = vadd.f32 %v2461, 0.5
        %v2465 = vadd.f32 %v2462, 0.5
        %v2466 = vadd.f32 %v2463, 0.5
        %v2467 = vmax.f32 %v2464, 0.0
        %v2468 = vmax.f32 %v2465, 0.0
        %v2469 = vmax.f32 %v2466, 0.0
        %v2470 = vmin.f32 %v2467, 1.0
        %v2471 = vmin.f32 %v2468, 1.0
        %v2472 = vmin.f32 %v2469, 1.0
        %v2473 = vtanh.pop %v2460
        %v2474 = vmul.f32 %v2471, %v2366
        %v2475 = vmul.f32 %v2470, %v2473
        %v2476 = vadd.f32 %v2474, %v2475
        %v2477 = vtanh.pop %v2476
        %v2478 = vmul.f32 %v2472, %v2477
        %v2479 = vmax.f32 %v2369, %v2478
        %v2480 = vadd.f32 %v1155, %v1599
        %v2481 = vadd.f32 %v1157, %v1601
        %v2482 = vadd.f32 %v1268, %v1712
        %v2483 = vadd.f32 %v1270, %v1714
        %v2484 = vpack.c.bf16 %v2478, %v2478
        %2485 = vmatprep.subr.bf16.mxu0 %v1873
        %2486 = vmatpush1.bf16.msra.mxu0 %v1872
        %2487 = vmatprep.subr.bf16.mxu0 %v1877
        %2488 = vmatpush1.bf16.msra.mxu0 %v1876
        %2489 = vmatprep.subr.bf16.mxu0 %v1881
        %2490 = vmatpush1.bf16.msra.mxu0 %v1880
        %2491 = vmatprep.subr.bf16.mxu0 %v1885
        %2492 = vmatpush1.bf16.msra.mxu0 %v1884
        %2493 = vmatprep.subr.bf16.mxu0 %v1889
        %2494 = vmatpush1.bf16.msra.mxu0 %v1888
        %2495 = vmatprep.subr.bf16.mxu0 %v1893
        %2496 = vmatpush1.bf16.msra.mxu0 %v1892
        %2497 = vmatprep.subr.bf16.mxu0 %v1897
        %2498 = vmatpush1.bf16.msra.mxu0 %v1896
        %2499 = vmatprep.subr.bf16.mxu0 %v1901
        %2500 = vmatpush1.bf16.msra.mxu0 %v1900
        %2501 = vmatprep.subr.bf16.mxu0 0
        %2502 = vmatpush1.bf16.msra.mxu0 0
        %2503 = vmatprep.subr.bf16.mxu0 0
        %2504 = vmatpush1.bf16.msra.mxu0 0
        %2505 = vmatprep.subr.bf16.mxu0 0
        %2506 = vmatpush1.bf16.msra.mxu0 0
        %2507 = vmatprep.subr.bf16.mxu0 0
        %2508 = vmatpush1.bf16.msra.mxu0 0
        %2509 = vmatprep.subr.bf16.mxu0 0
        %2510 = vmatpush1.bf16.msra.mxu0 0
        %2511 = vmatprep.subr.bf16.mxu0 0
        %2512 = vmatpush1.bf16.msra.mxu0 0
        %2513 = vmatprep.subr.bf16.mxu0 0
        %2514 = vmatpush1.bf16.msra.mxu0 0
        %2515 = vmatprep.subr.bf16.mxu0 0
        %2516 = vmatpush1.bf16.msra.mxu0 0
        %2517 = vmatprep.mubr.bf16.mxu0 0
        %2518 = vmatmul.mubr.bf16.gmra.mrb[0].mxu0 %v2484
        %v2519 = vpop.f32.mrb[0].mxu0
        %v2520 = vadd.f32 0.0, %v2519
        %v2521 = vpop.f32.mrb[0].mxu0
        %v2522 = vadd.f32 0.0, %v2521
        %v2523 = vpop.f32.mrb[0].mxu0
        %v2524 = vpop.f32.mrb[0].mxu0
        %2525 = vdwg.mxu0
        %2526 = vmatprep.subr.bf16.mxu0 %v1875
        %2527 = vmatpush1.bf16.msra.mxu0 %v1874
        %2528 = vmatprep.subr.bf16.mxu0 %v1879
        %2529 = vmatpush1.bf16.msra.mxu0 %v1878
        %2530 = vmatprep.subr.bf16.mxu0 %v1883
        %2531 = vmatpush1.bf16.msra.mxu0 %v1882
        %2532 = vmatprep.subr.bf16.mxu0 %v1887
        %2533 = vmatpush1.bf16.msra.mxu0 %v1886
        %2534 = vmatprep.subr.bf16.mxu0 %v1891
        %2535 = vmatpush1.bf16.msra.mxu0 %v1890
        %2536 = vmatprep.subr.bf16.mxu0 %v1895
        %2537 = vmatpush1.bf16.msra.mxu0 %v1894
        %2538 = vmatprep.subr.bf16.mxu0 %v1899
        %2539 = vmatpush1.bf16.msra.mxu0 %v1898
        %2540 = vmatprep.subr.bf16.mxu0 %v1903
        %2541 = vmatpush1.bf16.msra.mxu0 %v1902
        %2542 = vmatprep.subr.bf16.mxu0 0
        %2543 = vmatpush1.bf16.msra.mxu0 0
        %2544 = vmatprep.subr.bf16.mxu0 0
        %2545 = vmatpush1.bf16.msra.mxu0 0
        %2546 = vmatprep.subr.bf16.mxu0 0
        %2547 = vmatpush1.bf16.msra.mxu0 0
        %2548 = vmatprep.subr.bf16.mxu0 0
        %2549 = vmatpush1.bf16.msra.mxu0 0
        %2550 = vmatprep.subr.bf16.mxu0 0
        %2551 = vmatpush1.bf16.msra.mxu0 0
        %2552 = vmatprep.subr.bf16.mxu0 0
        %2553 = vmatpush1.bf16.msra.mxu0 0
        %2554 = vmatprep.subr.bf16.mxu0 0
        %2555 = vmatpush1.bf16.msra.mxu0 0
        %2556 = vmatprep.subr.bf16.mxu0 0
        %2557 = vmatpush1.bf16.msra.mxu0 0
        %2558 = vmatprep.mubr.bf16.mxu0 0
        %2559 = vmatmul.mubr.bf16.gmra.mrb[0].mxu0 %v2484
        %v2560 = vpop.f32.mrb[0].mxu0
        %v2561 = vadd.f32 0.0, %v2560
        %v2562 = vpop.f32.mrb[0].mxu0
        %v2563 = vadd.f32 0.0, %v2562
        %v2564 = vpop.f32.mrb[0].mxu0
        %v2565 = vpop.f32.mrb[0].mxu0
        %2566 = vdwg.mxu0
        %v2567 = vadd.f32 %v2480, %v2520
        %v2568 = vadd.f32 %v2481, %v2522
        %v2569 = vadd.f32 %v2482, %v2561
        %v2570 = vadd.f32 %v2483, %v2563
        %v2571 = vmul.f32 %v2567, 0.2
        %v2572 = vmul.f32 %v2568, 0.2
        %v2573 = vmul.f32 %v2569, 0.2
        %v2574 = vadd.f32 %v2571, 0.5
        %v2575 = vadd.f32 %v2572, 0.5
        %v2576 = vadd.f32 %v2573, 0.5
        %v2577 = vmax.f32 %v2574, 0.0
        %v2578 = vmax.f32 %v2575, 0.0
        %v2579 = vmax.f32 %v2576, 0.0
        %v2580 = vmin.f32 %v2577, 1.0
        %v2581 = vmin.f32 %v2578, 1.0
        %v2582 = vmin.f32 %v2579, 1.0
        %v2583 = vtanh.pop %v2570
        %v2584 = vmul.f32 %v2581, %v2476
        %v2585 = vmul.f32 %v2580, %v2583
        %v2586 = vadd.f32 %v2584, %v2585
        %v2587 = vtanh.pop %v2586
        %v2588 = vmul.f32 %v2582, %v2587
        %v2589 = vmax.f32 %v2479, %v2588
        %v2590 = vadd.f32 %v1161, %v1593
        %v2591 = vadd.f32 %v1163, %v1595
        %v2592 = vadd.f32 %v1274, %v1706
        %v2593 = vadd.f32 %v1276, %v1708
        %v2594 = vpack.c.bf16 %v2588, %v2588
        %2595 = vmatprep.subr.bf16.mxu0 %v1873
        %2596 = vmatpush1.bf16.msra.mxu0 %v1872
        %2597 = vmatprep.subr.bf16.mxu0 %v1877
        %2598 = vmatpush1.bf16.msra.mxu0 %v1876
        %2599 = vmatprep.subr.bf16.mxu0 %v1881
        %2600 = vmatpush1.bf16.msra.mxu0 %v1880
        %2601 = vmatprep.subr.bf16.mxu0 %v1885
        %2602 = vmatpush1.bf16.msra.mxu0 %v1884
        %2603 = vmatprep.subr.bf16.mxu0 %v1889
        %2604 = vmatpush1.bf16.msra.mxu0 %v1888
        %2605 = vmatprep.subr.bf16.mxu0 %v1893
        %2606 = vmatpush1.bf16.msra.mxu0 %v1892
        %2607 = vmatprep.subr.bf16.mxu0 %v1897
        %2608 = vmatpush1.bf16.msra.mxu0 %v1896
        %2609 = vmatprep.subr.bf16.mxu0 %v1901
        %2610 = vmatpush1.bf16.msra.mxu0 %v1900
        %2611 = vmatprep.subr.bf16.mxu0 0
        %2612 = vmatpush1.bf16.msra.mxu0 0
        %2613 = vmatprep.subr.bf16.mxu0 0
        %2614 = vmatpush1.bf16.msra.mxu0 0
        %2615 = vmatprep.subr.bf16.mxu0 0
        %2616 = vmatpush1.bf16.msra.mxu0 0
        %2617 = vmatprep.subr.bf16.mxu0 0
        %2618 = vmatpush1.bf16.msra.mxu0 0
        %2619 = vmatprep.subr.bf16.mxu0 0
        %2620 = vmatpush1.bf16.msra.mxu0 0
        %2621 = vmatprep.subr.bf16.mxu0 0
        %2622 = vmatpush1.bf16.msra.mxu0 0
        %2623 = vmatprep.subr.bf16.mxu0 0
        %2624 = vmatpush1.bf16.msra.mxu0 0
        %2625 = vmatprep.subr.bf16.mxu0 0
        %2626 = vmatpush1.bf16.msra.mxu0 0
        %2627 = vmatprep.mubr.bf16.mxu0 0
        %2628 = vmatmul.mubr.bf16.gmra.mrb[0].mxu0 %v2594
        %v2629 = vpop.f32.mrb[0].mxu0
        %v2630 = vadd.f32 0.0, %v2629
        %v2631 = vpop.f32.mrb[0].mxu0
        %v2632 = vadd.f32 0.0, %v2631
        %v2633 = vpop.f32.mrb[0].mxu0
        %v2634 = vpop.f32.mrb[0].mxu0
        %2635 = vdwg.mxu0
        %2636 = vmatprep.subr.bf16.mxu0 %v1875
        %2637 = vmatpush1.bf16.msra.mxu0 %v1874
        %2638 = vmatprep.subr.bf16.mxu0 %v1879
        %2639 = vmatpush1.bf16.msra.mxu0 %v1878
        %2640 = vmatprep.subr.bf16.mxu0 %v1883
        %2641 = vmatpush1.bf16.msra.mxu0 %v1882
        %2642 = vmatprep.subr.bf16.mxu0 %v1887
        %2643 = vmatpush1.bf16.msra.mxu0 %v1886
        %2644 = vmatprep.subr.bf16.mxu0 %v1891
        %2645 = vmatpush1.bf16.msra.mxu0 %v1890
        %2646 = vmatprep.subr.bf16.mxu0 %v1895
        %2647 = vmatpush1.bf16.msra.mxu0 %v1894
        %2648 = vmatprep.subr.bf16.mxu0 %v1899
        %2649 = vmatpush1.bf16.msra.mxu0 %v1898
        %2650 = vmatprep.subr.bf16.mxu0 %v1903
        %2651 = vmatpush1.bf16.msra.mxu0 %v1902
        %2652 = vmatprep.subr.bf16.mxu0 0
        %2653 = vmatpush1.bf16.msra.mxu0 0
        %2654 = vmatprep.subr.bf16.mxu0 0
        %2655 = vmatpush1.bf16.msra.mxu0 0
        %2656 = vmatprep.subr.bf16.mxu0 0
        %2657 = vmatpush1.bf16.msra.mxu0 0
        %2658 = vmatprep.subr.bf16.mxu0 0
        %2659 = vmatpush1.bf16.msra.mxu0 0
        %2660 = vmatprep.subr.bf16.mxu0 0
        %2661 = vmatpush1.bf16.msra.mxu0 0
        %2662 = vmatprep.subr.bf16.mxu0 0
        %2663 = vmatpush1.bf16.msra.mxu0 0
        %2664 = vmatprep.subr.bf16.mxu0 0
        %2665 = vmatpush1.bf16.msra.mxu0 0
        %2666 = vmatprep.subr.bf16.mxu0 0
        %2667 = vmatpush1.bf16.msra.mxu0 0
        %2668 = vmatprep.mubr.bf16.mxu0 0
        %2669 = vmatmul.mubr.bf16.gmra.mrb[0].mxu0 %v2594
        %v2670 = vpop.f32.mrb[0].mxu0
        %v2671 = vadd.f32 0.0, %v2670
        %v2672 = vpop.f32.mrb[0].mxu0
        %v2673 = vadd.f32 0.0, %v2672
        %v2674 = vpop.f32.mrb[0].mxu0
        %v2675 = vpop.f32.mrb[0].mxu0
        %2676 = vdwg.mxu0
        %v2677 = vadd.f32 %v2590, %v2630
        %v2678 = vadd.f32 %v2591, %v2632
        %v2679 = vadd.f32 %v2592, %v2671
        %v2680 = vadd.f32 %v2593, %v2673
        %v2681 = vmul.f32 %v2677, 0.2
        %v2682 = vmul.f32 %v2678, 0.2
        %v2683 = vmul.f32 %v2679, 0.2
        %v2684 = vadd.f32 %v2681, 0.5
        %v2685 = vadd.f32 %v2682, 0.5
        %v2686 = vadd.f32 %v2683, 0.5
        %v2687 = vmax.f32 %v2684, 0.0
        %v2688 = vmax.f32 %v2685, 0.0
        %v2689 = vmax.f32 %v2686, 0.0
        %v2690 = vmin.f32 %v2687, 1.0
        %v2691 = vmin.f32 %v2688, 1.0
        %v2692 = vmin.f32 %v2689, 1.0
        %v2693 = vtanh.pop %v2680
        %v2694 = vmul.f32 %v2691, %v2586
        %v2695 = vmul.f32 %v2690, %v2693
        %v2696 = vadd.f32 %v2694, %v2695
        %v2697 = vtanh.pop %v2696
        %v2698 = vmul.f32 %v2692, %v2697
        %v2699 = vmax.f32 %v2589, %v2698
        %v2700 = vadd.f32 %v1165, %v1589
        %v2701 = vadd.f32 %v1167, %v1591
        %v2702 = vadd.f32 %v1278, %v1702
        %v2703 = vadd.f32 %v1280, %v1704
        %v2704 = vpack.c.bf16 %v2698, %v2698
        %2705 = vmatprep.subr.bf16.mxu0 %v1873
        %2706 = vmatpush1.bf16.msra.mxu0 %v1872
        %2707 = vmatprep.subr.bf16.mxu0 %v1877
        %2708 = vmatpush1.bf16.msra.mxu0 %v1876
        %2709 = vmatprep.subr.bf16.mxu0 %v1881
        %2710 = vmatpush1.bf16.msra.mxu0 %v1880
        %2711 = vmatprep.subr.bf16.mxu0 %v1885
        %2712 = vmatpush1.bf16.msra.mxu0 %v1884
        %2713 = vmatprep.subr.bf16.mxu0 %v1889
        %2714 = vmatpush1.bf16.msra.mxu0 %v1888
        %2715 = vmatprep.subr.bf16.mxu0 %v1893
        %2716 = vmatpush1.bf16.msra.mxu0 %v1892
        %2717 = vmatprep.subr.bf16.mxu0 %v1897
        %2718 = vmatpush1.bf16.msra.mxu0 %v1896
        %2719 = vmatprep.subr.bf16.mxu0 %v1901
        %2720 = vmatpush1.bf16.msra.mxu0 %v1900
        %2721 = vmatprep.subr.bf16.mxu0 0
        %2722 = vmatpush1.bf16.msra.mxu0 0
        %2723 = vmatprep.subr.bf16.mxu0 0
        %2724 = vmatpush1.bf16.msra.mxu0 0
        %2725 = vmatprep.subr.bf16.mxu0 0
        %2726 = vmatpush1.bf16.msra.mxu0 0
        %2727 = vmatprep.subr.bf16.mxu0 0
        %2728 = vmatpush1.bf16.msra.mxu0 0
        %2729 = vmatprep.subr.bf16.mxu0 0
        %2730 = vmatpush1.bf16.msra.mxu0 0
        %2731 = vmatprep.subr.bf16.mxu0 0
        %2732 = vmatpush1.bf16.msra.mxu0 0
        %2733 = vmatprep.subr.bf16.mxu0 0
        %2734 = vmatpush1.bf16.msra.mxu0 0
        %2735 = vmatprep.subr.bf16.mxu0 0
        %2736 = vmatpush1.bf16.msra.mxu0 0
        %2737 = vmatprep.mubr.bf16.mxu0 0
        %2738 = vmatmul.mubr.bf16.gmra.mrb[0].mxu0 %v2704
        %v2739 = vpop.f32.mrb[0].mxu0
        %v2740 = vadd.f32 0.0, %v2739
        %v2741 = vpop.f32.mrb[0].mxu0
        %v2742 = vadd.f32 0.0, %v2741
        %v2743 = vpop.f32.mrb[0].mxu0
        %v2744 = vpop.f32.mrb[0].mxu0
        %2745 = vdwg.mxu0
        %2746 = vmatprep.subr.bf16.mxu0 %v1875
        %2747 = vmatpush1.bf16.msra.mxu0 %v1874
        %2748 = vmatprep.subr.bf16.mxu0 %v1879
        %2749 = vmatpush1.bf16.msra.mxu0 %v1878
        %2750 = vmatprep.subr.bf16.mxu0 %v1883
        %2751 = vmatpush1.bf16.msra.mxu0 %v1882
        %2752 = vmatprep.subr.bf16.mxu0 %v1887
        %2753 = vmatpush1.bf16.msra.mxu0 %v1886
        %2754 = vmatprep.subr.bf16.mxu0 %v1891
        %2755 = vmatpush1.bf16.msra.mxu0 %v1890
        %2756 = vmatprep.subr.bf16.mxu0 %v1895
        %2757 = vmatpush1.bf16.msra.mxu0 %v1894
        %2758 = vmatprep.subr.bf16.mxu0 %v1899
        %2759 = vmatpush1.bf16.msra.mxu0 %v1898
        %2760 = vmatprep.subr.bf16.mxu0 %v1903
        %2761 = vmatpush1.bf16.msra.mxu0 %v1902
        %2762 = vmatprep.subr.bf16.mxu0 0
        %2763 = vmatpush1.bf16.msra.mxu0 0
        %2764 = vmatprep.subr.bf16.mxu0 0
        %2765 = vmatpush1.bf16.msra.mxu0 0
        %2766 = vmatprep.subr.bf16.mxu0 0
        %2767 = vmatpush1.bf16.msra.mxu0 0
        %2768 = vmatprep.subr.bf16.mxu0 0
        %2769 = vmatpush1.bf16.msra.mxu0 0
        %2770 = vmatprep.subr.bf16.mxu0 0
        %2771 = vmatpush1.bf16.msra.mxu0 0
        %2772 = vmatprep.subr.bf16.mxu0 0
        %2773 = vmatpush1.bf16.msra.mxu0 0
        %2774 = vmatprep.subr.bf16.mxu0 0
        %2775 = vmatpush1.bf16.msra.mxu0 0
        %2776 = vmatprep.subr.bf16.mxu0 0
        %2777 = vmatpush1.bf16.msra.mxu0 0
        %2778 = vmatprep.mubr.bf16.mxu0 0
        %2779 = vmatmul.mubr.bf16.gmra.mrb[0].mxu0 %v2704
        %v2780 = vpop.f32.mrb[0].mxu0
        %v2781 = vadd.f32 0.0, %v2780
        %v2782 = vpop.f32.mrb[0].mxu0
        %v2783 = vadd.f32 0.0, %v2782
        %v2784 = vpop.f32.mrb[0].mxu0
        %v2785 = vpop.f32.mrb[0].mxu0
        %2786 = vdwg.mxu0
        %v2787 = vadd.f32 %v2700, %v2740
        %v2788 = vadd.f32 %v2701, %v2742
        %v2789 = vadd.f32 %v2702, %v2781
        %v2790 = vadd.f32 %v2703, %v2783
        %v2791 = vmul.f32 %v2787, 0.2
        %v2792 = vmul.f32 %v2788, 0.2
        %v2793 = vmul.f32 %v2789, 0.2
        %v2794 = vadd.f32 %v2791, 0.5
        %v2795 = vadd.f32 %v2792, 0.5
        %v2796 = vadd.f32 %v2793, 0.5
        %v2797 = vmax.f32 %v2794, 0.0
        %v2798 = vmax.f32 %v2795, 0.0
        %v2799 = vmax.f32 %v2796, 0.0
        %v2800 = vmin.f32 %v2797, 1.0
        %v2801 = vmin.f32 %v2798, 1.0
        %v2802 = vmin.f32 %v2799, 1.0
        %v2803 = vtanh.pop %v2790
        %v2804 = vmul.f32 %v2801, %v2696
        %v2805 = vmul.f32 %v2800, %v2803
        %v2806 = vadd.f32 %v2804, %v2805
        %v2807 = vtanh.pop %v2806
        %v2808 = vmul.f32 %v2802, %v2807
        %v2809 = vmax.f32 %v2699, %v2808
        %v2810 = vadd.f32 %v1171, %v1583
        %v2811 = vadd.f32 %v1173, %v1585
        %v2812 = vadd.f32 %v1284, %v1696
        %v2813 = vadd.f32 %v1286, %v1698
        %v2814 = vpack.c.bf16 %v2808, %v2808
        %2815 = vmatprep.subr.bf16.mxu0 %v1873
        %2816 = vmatpush1.bf16.msra.mxu0 %v1872
        %2817 = vmatprep.subr.bf16.mxu0 %v1877
        %2818 = vmatpush1.bf16.msra.mxu0 %v1876
        %2819 = vmatprep.subr.bf16.mxu0 %v1881
        %2820 = vmatpush1.bf16.msra.mxu0 %v1880
        %2821 = vmatprep.subr.bf16.mxu0 %v1885
        %2822 = vmatpush1.bf16.msra.mxu0 %v1884
        %2823 = vmatprep.subr.bf16.mxu0 %v1889
        %2824 = vmatpush1.bf16.msra.mxu0 %v1888
        %2825 = vmatprep.subr.bf16.mxu0 %v1893
        %2826 = vmatpush1.bf16.msra.mxu0 %v1892
        %2827 = vmatprep.subr.bf16.mxu0 %v1897
        %2828 = vmatpush1.bf16.msra.mxu0 %v1896
        %2829 = vmatprep.subr.bf16.mxu0 %v1901
        %2830 = vmatpush1.bf16.msra.mxu0 %v1900
        %2831 = vmatprep.subr.bf16.mxu0 0
        %2832 = vmatpush1.bf16.msra.mxu0 0
        %2833 = vmatprep.subr.bf16.mxu0 0
        %2834 = vmatpush1.bf16.msra.mxu0 0
        %2835 = vmatprep.subr.bf16.mxu0 0
        %2836 = vmatpush1.bf16.msra.mxu0 0
        %2837 = vmatprep.subr.bf16.mxu0 0
        %2838 = vmatpush1.bf16.msra.mxu0 0
        %2839 = vmatprep.subr.bf16.mxu0 0
        %2840 = vmatpush1.bf16.msra.mxu0 0
        %2841 = vmatprep.subr.bf16.mxu0 0
        %2842 = vmatpush1.bf16.msra.mxu0 0
        %2843 = vmatprep.subr.bf16.mxu0 0
        %2844 = vmatpush1.bf16.msra.mxu0 0
        %2845 = vmatprep.subr.bf16.mxu0 0
        %2846 = vmatpush1.bf16.msra.mxu0 0
        %2847 = vmatprep.mubr.bf16.mxu0 0
        %2848 = vmatmul.mubr.bf16.gmra.mrb[0].mxu0 %v2814
        %v2849 = vpop.f32.mrb[0].mxu0
        %v2850 = vadd.f32 0.0, %v2849
        %v2851 = vpop.f32.mrb[0].mxu0
        %v2852 = vadd.f32 0.0, %v2851
        %v2853 = vpop.f32.mrb[0].mxu0
        %v2854 = vpop.f32.mrb[0].mxu0
        %2855 = vdwg.mxu0
        %2856 = vmatprep.subr.bf16.mxu0 %v1875
        %2857 = vmatpush1.bf16.msra.mxu0 %v1874
        %2858 = vmatprep.subr.bf16.mxu0 %v1879
        %2859 = vmatpush1.bf16.msra.mxu0 %v1878
        %2860 = vmatprep.subr.bf16.mxu0 %v1883
        %2861 = vmatpush1.bf16.msra.mxu0 %v1882
        %2862 = vmatprep.subr.bf16.mxu0 %v1887
        %2863 = vmatpush1.bf16.msra.mxu0 %v1886
        %2864 = vmatprep.subr.bf16.mxu0 %v1891
        %2865 = vmatpush1.bf16.msra.mxu0 %v1890
        %2866 = vmatprep.subr.bf16.mxu0 %v1895
        %2867 = vmatpush1.bf16.msra.mxu0 %v1894
        %2868 = vmatprep.subr.bf16.mxu0 %v1899
        %2869 = vmatpush1.bf16.msra.mxu0 %v1898
        %2870 = vmatprep.subr.bf16.mxu0 %v1903
        %2871 = vmatpush1.bf16.msra.mxu0 %v1902
        %2872 = vmatprep.subr.bf16.mxu0 0
        %2873 = vmatpush1.bf16.msra.mxu0 0
        %2874 = vmatprep.subr.bf16.mxu0 0
        %2875 = vmatpush1.bf16.msra.mxu0 0
        %2876 = vmatprep.subr.bf16.mxu0 0
        %2877 = vmatpush1.bf16.msra.mxu0 0
        %2878 = vmatprep.subr.bf16.mxu0 0
        %2879 = vmatpush1.bf16.msra.mxu0 0
        %2880 = vmatprep.subr.bf16.mxu0 0
        %2881 = vmatpush1.bf16.msra.mxu0 0
        %2882 = vmatprep.subr.bf16.mxu0 0
        %2883 = vmatpush1.bf16.msra.mxu0 0
        %2884 = vmatprep.subr.bf16.mxu0 0
        %2885 = vmatpush1.bf16.msra.mxu0 0
        %2886 = vmatprep.subr.bf16.mxu0 0
        %2887 = vmatpush1.bf16.msra.mxu0 0
        %2888 = vmatprep.mubr.bf16.mxu0 0
        %2889 = vmatmul.mubr.bf16.gmra.mrb[0].mxu0 %v2814
        %v2890 = vpop.f32.mrb[0].mxu0
        %v2891 = vadd.f32 0.0, %v2890
        %v2892 = vpop.f32.mrb[0].mxu0
        %v2893 = vadd.f32 0.0, %v2892
        %v2894 = vpop.f32.mrb[0].mxu0
        %v2895 = vpop.f32.mrb[0].mxu0
        %2896 = vdwg.mxu0
        %v2897 = vadd.f32 %v2810, %v2850
        %v2898 = vadd.f32 %v2811, %v2852
        %v2899 = vadd.f32 %v2812, %v2891
        %v2900 = vadd.f32 %v2813, %v2893
        %v2901 = vmul.f32 %v2897, 0.2
        %v2902 = vmul.f32 %v2898, 0.2
        %v2903 = vmul.f32 %v2899, 0.2
        %v2904 = vadd.f32 %v2901, 0.5
        %v2905 = vadd.f32 %v2902, 0.5
        %v2906 = vadd.f32 %v2903, 0.5
        %v2907 = vmax.f32 %v2904, 0.0
        %v2908 = vmax.f32 %v2905, 0.0
        %v2909 = vmax.f32 %v2906, 0.0
        %v2910 = vmin.f32 %v2907, 1.0
        %v2911 = vmin.f32 %v2908, 1.0
        %v2912 = vmin.f32 %v2909, 1.0
        %v2913 = vtanh.pop %v2900
        %v2914 = vmul.f32 %v2911, %v2806
        %v2915 = vmul.f32 %v2910, %v2913
        %v2916 = vadd.f32 %v2914, %v2915
        %v2917 = vtanh.pop %v2916
        %v2918 = vmul.f32 %v2912, %v2917
        %v2919 = vmax.f32 %v2809, %v2918
        %v2920 = vadd.f32 %v1175, %v1579
        %v2921 = vadd.f32 %v1177, %v1581
        %v2922 = vadd.f32 %v1288, %v1692
        %v2923 = vadd.f32 %v1290, %v1694
        %v2924 = vpack.c.bf16 %v2918, %v2918
        %2925 = vmatprep.subr.bf16.mxu0 %v1873
        %2926 = vmatpush1.bf16.msra.mxu0 %v1872
        %2927 = vmatprep.subr.bf16.mxu0 %v1877
        %2928 = vmatpush1.bf16.msra.mxu0 %v1876
        %2929 = vmatprep.subr.bf16.mxu0 %v1881
        %2930 = vmatpush1.bf16.msra.mxu0 %v1880
        %2931 = vmatprep.subr.bf16.mxu0 %v1885
        %2932 = vmatpush1.bf16.msra.mxu0 %v1884
        %2933 = vmatprep.subr.bf16.mxu0 %v1889
        %2934 = vmatpush1.bf16.msra.mxu0 %v1888
        %2935 = vmatprep.subr.bf16.mxu0 %v1893
        %2936 = vmatpush1.bf16.msra.mxu0 %v1892
        %2937 = vmatprep.subr.bf16.mxu0 %v1897
        %2938 = vmatpush1.bf16.msra.mxu0 %v1896
        %2939 = vmatprep.subr.bf16.mxu0 %v1901
        %2940 = vmatpush1.bf16.msra.mxu0 %v1900
        %2941 = vmatprep.subr.bf16.mxu0 0
        %2942 = vmatpush1.bf16.msra.mxu0 0
        %2943 = vmatprep.subr.bf16.mxu0 0
        %2944 = vmatpush1.bf16.msra.mxu0 0
        %2945 = vmatprep.subr.bf16.mxu0 0
        %2946 = vmatpush1.bf16.msra.mxu0 0
        %2947 = vmatprep.subr.bf16.mxu0 0
        %2948 = vmatpush1.bf16.msra.mxu0 0
        %2949 = vmatprep.subr.bf16.mxu0 0
        %2950 = vmatpush1.bf16.msra.mxu0 0
        %2951 = vmatprep.subr.bf16.mxu0 0
        %2952 = vmatpush1.bf16.msra.mxu0 0
        %2953 = vmatprep.subr.bf16.mxu0 0
        %2954 = vmatpush1.bf16.msra.mxu0 0
        %2955 = vmatprep.subr.bf16.mxu0 0
        %2956 = vmatpush1.bf16.msra.mxu0 0
        %2957 = vmatprep.mubr.bf16.mxu0 0
        %2958 = vmatmul.mubr.bf16.gmra.mrb[0].mxu0 %v2924
        %v2959 = vpop.f32.mrb[0].mxu0
        %v2960 = vadd.f32 0.0, %v2959
        %v2961 = vpop.f32.mrb[0].mxu0
        %v2962 = vadd.f32 0.0, %v2961
        %v2963 = vpop.f32.mrb[0].mxu0
        %v2964 = vpop.f32.mrb[0].mxu0
        %2965 = vdwg.mxu0
        %2966 = vmatprep.subr.bf16.mxu0 %v1875
        %2967 = vmatpush1.bf16.msra.mxu0 %v1874
        %2968 = vmatprep.subr.bf16.mxu0 %v1879
        %2969 = vmatpush1.bf16.msra.mxu0 %v1878
        %2970 = vmatprep.subr.bf16.mxu0 %v1883
        %2971 = vmatpush1.bf16.msra.mxu0 %v1882
        %2972 = vmatprep.subr.bf16.mxu0 %v1887
        %2973 = vmatpush1.bf16.msra.mxu0 %v1886
        %2974 = vmatprep.subr.bf16.mxu0 %v1891
        %2975 = vmatpush1.bf16.msra.mxu0 %v1890
        %2976 = vmatprep.subr.bf16.mxu0 %v1895
        %2977 = vmatpush1.bf16.msra.mxu0 %v1894
        %2978 = vmatprep.subr.bf16.mxu0 %v1899
        %2979 = vmatpush1.bf16.msra.mxu0 %v1898
        %2980 = vmatprep.subr.bf16.mxu0 %v1903
        %2981 = vmatpush1.bf16.msra.mxu0 %v1902
        %2982 = vmatprep.subr.bf16.mxu0 0
        %2983 = vmatpush1.bf16.msra.mxu0 0
        %2984 = vmatprep.subr.bf16.mxu0 0
        %2985 = vmatpush1.bf16.msra.mxu0 0
        %2986 = vmatprep.subr.bf16.mxu0 0
        %2987 = vmatpush1.bf16.msra.mxu0 0
        %2988 = vmatprep.subr.bf16.mxu0 0
        %2989 = vmatpush1.bf16.msra.mxu0 0
        %2990 = vmatprep.subr.bf16.mxu0 0
        %2991 = vmatpush1.bf16.msra.mxu0 0
        %2992 = vmatprep.subr.bf16.mxu0 0
        %2993 = vmatpush1.bf16.msra.mxu0 0
        %2994 = vmatprep.subr.bf16.mxu0 0
        %2995 = vmatpush1.bf16.msra.mxu0 0
        %2996 = vmatprep.subr.bf16.mxu0 0
        %2997 = vmatpush1.bf16.msra.mxu0 0
        %2998 = vmatprep.mubr.bf16.mxu0 0
        %2999 = vmatmul.mubr.bf16.gmra.mrb[0].mxu0 %v2924
        %v3000 = vpop.f32.mrb[0].mxu0
        %v3001 = vadd.f32 0.0, %v3000
        %v3002 = vpop.f32.mrb[0].mxu0
        %v3003 = vadd.f32 0.0, %v3002
        %v3004 = vpop.f32.mrb[0].mxu0
        %v3005 = vpop.f32.mrb[0].mxu0
        %3006 = vdwg.mxu0
        %v3007 = vadd.f32 %v2920, %v2960
        %v3008 = vadd.f32 %v2921, %v2962
        %v3009 = vadd.f32 %v2922, %v3001
        %v3010 = vadd.f32 %v2923, %v3003
        %v3011 = vmul.f32 %v3007, 0.2
        %v3012 = vmul.f32 %v3008, 0.2
        %v3013 = vmul.f32 %v3009, 0.2
        %v3014 = vadd.f32 %v3011, 0.5
        %v3015 = vadd.f32 %v3012, 0.5
        %v3016 = vadd.f32 %v3013, 0.5
        %v3017 = vmax.f32 %v3014, 0.0
        %v3018 = vmax.f32 %v3015, 0.0
        %v3019 = vmax.f32 %v3016, 0.0
        %v3020 = vmin.f32 %v3017, 1.0
        %v3021 = vmin.f32 %v3018, 1.0
        %v3022 = vmin.f32 %v3019, 1.0
        %v3023 = vtanh.pop %v3010
        %v3024 = vmul.f32 %v3021, %v2916
        %v3025 = vmul.f32 %v3020, %v3023
        %v3026 = vadd.f32 %v3024, %v3025
        %v3027 = vtanh.pop %v3026
        %v3028 = vmul.f32 %v3022, %v3027
        %v3029 = vmax.f32 %v2919, %v3028
        %v3030 = vadd.f32 %v1181, %v1573
        %v3031 = vadd.f32 %v1183, %v1575
        %v3032 = vadd.f32 %v1294, %v1686
        %v3033 = vadd.f32 %v1296, %v1688
        %v3034 = vpack.c.bf16 %v3028, %v3028
        %3035 = vmatprep.subr.bf16.mxu0 %v1873
        %3036 = vmatpush1.bf16.msra.mxu0 %v1872
        %3037 = vmatprep.subr.bf16.mxu0 %v1877
        %3038 = vmatpush1.bf16.msra.mxu0 %v1876
        %3039 = vmatprep.subr.bf16.mxu0 %v1881
        %3040 = vmatpush1.bf16.msra.mxu0 %v1880
        %3041 = vmatprep.subr.bf16.mxu0 %v1885
        %3042 = vmatpush1.bf16.msra.mxu0 %v1884
        %3043 = vmatprep.subr.bf16.mxu0 %v1889
        %3044 = vmatpush1.bf16.msra.mxu0 %v1888
        %3045 = vmatprep.subr.bf16.mxu0 %v1893
        %3046 = vmatpush1.bf16.msra.mxu0 %v1892
        %3047 = vmatprep.subr.bf16.mxu0 %v1897
        %3048 = vmatpush1.bf16.msra.mxu0 %v1896
        %3049 = vmatprep.subr.bf16.mxu0 %v1901
        %3050 = vmatpush1.bf16.msra.mxu0 %v1900
        %3051 = vmatprep.subr.bf16.mxu0 0
        %3052 = vmatpush1.bf16.msra.mxu0 0
        %3053 = vmatprep.subr.bf16.mxu0 0
        %3054 = vmatpush1.bf16.msra.mxu0 0
        %3055 = vmatprep.subr.bf16.mxu0 0
        %3056 = vmatpush1.bf16.msra.mxu0 0
        %3057 = vmatprep.subr.bf16.mxu0 0
        %3058 = vmatpush1.bf16.msra.mxu0 0
        %3059 = vmatprep.subr.bf16.mxu0 0
        %3060 = vmatpush1.bf16.msra.mxu0 0
        %3061 = vmatprep.subr.bf16.mxu0 0
        %3062 = vmatpush1.bf16.msra.mxu0 0
        %3063 = vmatprep.subr.bf16.mxu0 0
        %3064 = vmatpush1.bf16.msra.mxu0 0
        %3065 = vmatprep.subr.bf16.mxu0 0
        %3066 = vmatpush1.bf16.msra.mxu0 0
        %3067 = vmatprep.mubr.bf16.mxu0 0
        %3068 = vmatmul.mubr.bf16.gmra.mrb[0].mxu0 %v3034
        %v3069 = vpop.f32.mrb[0].mxu0
        %v3070 = vadd.f32 0.0, %v3069
        %v3071 = vpop.f32.mrb[0].mxu0
        %v3072 = vadd.f32 0.0, %v3071
        %v3073 = vpop.f32.mrb[0].mxu0
        %v3074 = vpop.f32.mrb[0].mxu0
        %3075 = vdwg.mxu0
        %3076 = vmatprep.subr.bf16.mxu0 %v1875
        %3077 = vmatpush1.bf16.msra.mxu0 %v1874
        %3078 = vmatprep.subr.bf16.mxu0 %v1879
        %3079 = vmatpush1.bf16.msra.mxu0 %v1878
        %3080 = vmatprep.subr.bf16.mxu0 %v1883
        %3081 = vmatpush1.bf16.msra.mxu0 %v1882
        %3082 = vmatprep.subr.bf16.mxu0 %v1887
        %3083 = vmatpush1.bf16.msra.mxu0 %v1886
        %3084 = vmatprep.subr.bf16.mxu0 %v1891
        %3085 = vmatpush1.bf16.msra.mxu0 %v1890
        %3086 = vmatprep.subr.bf16.mxu0 %v1895
        %3087 = vmatpush1.bf16.msra.mxu0 %v1894
        %3088 = vmatprep.subr.bf16.mxu0 %v1899
        %3089 = vmatpush1.bf16.msra.mxu0 %v1898
        %3090 = vmatprep.subr.bf16.mxu0 %v1903
        %3091 = vmatpush1.bf16.msra.mxu0 %v1902
        %3092 = vmatprep.subr.bf16.mxu0 0
        %3093 = vmatpush1.bf16.msra.mxu0 0
        %3094 = vmatprep.subr.bf16.mxu0 0
        %3095 = vmatpush1.bf16.msra.mxu0 0
        %3096 = vmatprep.subr.bf16.mxu0 0
        %3097 = vmatpush1.bf16.msra.mxu0 0
        %3098 = vmatprep.subr.bf16.mxu0 0
        %3099 = vmatpush1.bf16.msra.mxu0 0
        %3100 = vmatprep.subr.bf16.mxu0 0
        %3101 = vmatpush1.bf16.msra.mxu0 0
        %3102 = vmatprep.subr.bf16.mxu0 0
        %3103 = vmatpush1.bf16.msra.mxu0 0
        %3104 = vmatprep.subr.bf16.mxu0 0
        %3105 = vmatpush1.bf16.msra.mxu0 0
        %3106 = vmatprep.subr.bf16.mxu0 0
        %3107 = vmatpush1.bf16.msra.mxu0 0
        %3108 = vmatprep.mubr.bf16.mxu0 0
        %3109 = vmatmul.mubr.bf16.gmra.mrb[0].mxu0 %v3034
        %v3110 = vpop.f32.mrb[0].mxu0
        %v3111 = vadd.f32 0.0, %v3110
        %v3112 = vpop.f32.mrb[0].mxu0
        %v3113 = vadd.f32 0.0, %v3112
        %v3114 = vpop.f32.mrb[0].mxu0
        %v3115 = vpop.f32.mrb[0].mxu0
        %3116 = vdwg.mxu0
        %v3117 = vadd.f32 %v3030, %v3070
        %v3118 = vadd.f32 %v3031, %v3072
        %v3119 = vadd.f32 %v3032, %v3111
        %v3120 = vadd.f32 %v3033, %v3113
        %v3121 = vmul.f32 %v3117, 0.2
        %v3122 = vmul.f32 %v3118, 0.2
        %v3123 = vmul.f32 %v3119, 0.2
        %v3124 = vadd.f32 %v3121, 0.5
        %v3125 = vadd.f32 %v3122, 0.5
        %v3126 = vadd.f32 %v3123, 0.5
        %v3127 = vmax.f32 %v3124, 0.0
        %v3128 = vmax.f32 %v3125, 0.0
        %v3129 = vmax.f32 %v3126, 0.0
        %v3130 = vmin.f32 %v3127, 1.0
        %v3131 = vmin.f32 %v3128, 1.0
        %v3132 = vmin.f32 %v3129, 1.0
        %v3133 = vtanh.pop %v3120
        %v3134 = vmul.f32 %v3131, %v3026
        %v3135 = vmul.f32 %v3130, %v3133
        %v3136 = vadd.f32 %v3134, %v3135
        %v3137 = vtanh.pop %v3136
        %v3138 = vmul.f32 %v3132, %v3137
        %v3139 = vmax.f32 %v3029, %v3138
        %v3140 = vadd.f32 %v1185, %v1569
        %v3141 = vadd.f32 %v1187, %v1571
        %v3142 = vadd.f32 %v1298, %v1682
        %v3143 = vadd.f32 %v1300, %v1684
        %v3144 = vpack.c.bf16 %v3138, %v3138
        %3145 = vmatprep.subr.bf16.mxu0 %v1873
        %3146 = vmatpush1.bf16.msra.mxu0 %v1872
        %3147 = vmatprep.subr.bf16.mxu0 %v1877
        %3148 = vmatpush1.bf16.msra.mxu0 %v1876
        %3149 = vmatprep.subr.bf16.mxu0 %v1881
        %3150 = vmatpush1.bf16.msra.mxu0 %v1880
        %3151 = vmatprep.subr.bf16.mxu0 %v1885
        %3152 = vmatpush1.bf16.msra.mxu0 %v1884
        %3153 = vmatprep.subr.bf16.mxu0 %v1889
        %3154 = vmatpush1.bf16.msra.mxu0 %v1888
        %3155 = vmatprep.subr.bf16.mxu0 %v1893
        %3156 = vmatpush1.bf16.msra.mxu0 %v1892
        %3157 = vmatprep.subr.bf16.mxu0 %v1897
        %3158 = vmatpush1.bf16.msra.mxu0 %v1896
        %3159 = vmatprep.subr.bf16.mxu0 %v1901
        %3160 = vmatpush1.bf16.msra.mxu0 %v1900
        %3161 = vmatprep.subr.bf16.mxu0 0
        %3162 = vmatpush1.bf16.msra.mxu0 0
        %3163 = vmatprep.subr.bf16.mxu0 0
        %3164 = vmatpush1.bf16.msra.mxu0 0
        %3165 = vmatprep.subr.bf16.mxu0 0
        %3166 = vmatpush1.bf16.msra.mxu0 0
        %3167 = vmatprep.subr.bf16.mxu0 0
        %3168 = vmatpush1.bf16.msra.mxu0 0
        %3169 = vmatprep.subr.bf16.mxu0 0
        %3170 = vmatpush1.bf16.msra.mxu0 0
        %3171 = vmatprep.subr.bf16.mxu0 0
        %3172 = vmatpush1.bf16.msra.mxu0 0
        %3173 = vmatprep.subr.bf16.mxu0 0
        %3174 = vmatpush1.bf16.msra.mxu0 0
        %3175 = vmatprep.subr.bf16.mxu0 0
        %3176 = vmatpush1.bf16.msra.mxu0 0
        %3177 = vmatprep.mubr.bf16.mxu0 0
        %3178 = vmatmul.mubr.bf16.gmra.mrb[0].mxu0 %v3144
        %v3179 = vpop.f32.mrb[0].mxu0
        %v3180 = vadd.f32 0.0, %v3179
        %v3181 = vpop.f32.mrb[0].mxu0
        %v3182 = vadd.f32 0.0, %v3181
        %v3183 = vpop.f32.mrb[0].mxu0
        %v3184 = vpop.f32.mrb[0].mxu0
        %3185 = vdwg.mxu0
        %3186 = vmatprep.subr.bf16.mxu0 %v1875
        %3187 = vmatpush1.bf16.msra.mxu0 %v1874
        %3188 = vmatprep.subr.bf16.mxu0 %v1879
        %3189 = vmatpush1.bf16.msra.mxu0 %v1878
        %3190 = vmatprep.subr.bf16.mxu0 %v1883
        %3191 = vmatpush1.bf16.msra.mxu0 %v1882
        %3192 = vmatprep.subr.bf16.mxu0 %v1887
        %3193 = vmatpush1.bf16.msra.mxu0 %v1886
        %3194 = vmatprep.subr.bf16.mxu0 %v1891
        %3195 = vmatpush1.bf16.msra.mxu0 %v1890
        %3196 = vmatprep.subr.bf16.mxu0 %v1895
        %3197 = vmatpush1.bf16.msra.mxu0 %v1894
        %3198 = vmatprep.subr.bf16.mxu0 %v1899
        %3199 = vmatpush1.bf16.msra.mxu0 %v1898
        %3200 = vmatprep.subr.bf16.mxu0 %v1903
        %3201 = vmatpush1.bf16.msra.mxu0 %v1902
        %3202 = vmatprep.subr.bf16.mxu0 0
        %3203 = vmatpush1.bf16.msra.mxu0 0
        %3204 = vmatprep.subr.bf16.mxu0 0
        %3205 = vmatpush1.bf16.msra.mxu0 0
        %3206 = vmatprep.subr.bf16.mxu0 0
        %3207 = vmatpush1.bf16.msra.mxu0 0
        %3208 = vmatprep.subr.bf16.mxu0 0
        %3209 = vmatpush1.bf16.msra.mxu0 0
        %3210 = vmatprep.subr.bf16.mxu0 0
        %3211 = vmatpush1.bf16.msra.mxu0 0
        %3212 = vmatprep.subr.bf16.mxu0 0
        %3213 = vmatpush1.bf16.msra.mxu0 0
        %3214 = vmatprep.subr.bf16.mxu0 0
        %3215 = vmatpush1.bf16.msra.mxu0 0
        %3216 = vmatprep.subr.bf16.mxu0 0
        %3217 = vmatpush1.bf16.msra.mxu0 0
        %3218 = vmatprep.mubr.bf16.mxu0 0
        %3219 = vmatmul.mubr.bf16.gmra.mrb[0].mxu0 %v3144
        %v3220 = vpop.f32.mrb[0].mxu0
        %v3221 = vadd.f32 0.0, %v3220
        %v3222 = vpop.f32.mrb[0].mxu0
        %v3223 = vadd.f32 0.0, %v3222
        %v3224 = vpop.f32.mrb[0].mxu0
        %v3225 = vpop.f32.mrb[0].mxu0
        %3226 = vdwg.mxu0
        %v3227 = vadd.f32 %v3140, %v3180
        %v3228 = vadd.f32 %v3141, %v3182
        %v3229 = vadd.f32 %v3142, %v3221
        %v3230 = vadd.f32 %v3143, %v3223
        %v3231 = vmul.f32 %v3227, 0.2
        %v3232 = vmul.f32 %v3228, 0.2
        %v3233 = vmul.f32 %v3229, 0.2
        %v3234 = vadd.f32 %v3231, 0.5
        %v3235 = vadd.f32 %v3232, 0.5
        %v3236 = vadd.f32 %v3233, 0.5
        %v3237 = vmax.f32 %v3234, 0.0
        %v3238 = vmax.f32 %v3235, 0.0
        %v3239 = vmax.f32 %v3236, 0.0
        %v3240 = vmin.f32 %v3237, 1.0
        %v3241 = vmin.f32 %v3238, 1.0
        %v3242 = vmin.f32 %v3239, 1.0
        %v3243 = vtanh.pop %v3230
        %v3244 = vmul.f32 %v3241, %v3136
        %v3245 = vmul.f32 %v3240, %v3243
        %v3246 = vadd.f32 %v3244, %v3245
        %v3247 = vtanh.pop %v3246
        %v3248 = vmul.f32 %v3242, %v3247
        %v3249 = vmax.f32 %v3139, %v3248
        %v3250 = vadd.f32 %v1191, %v1563
        %v3251 = vadd.f32 %v1193, %v1565
        %v3252 = vadd.f32 %v1304, %v1676
        %v3253 = vadd.f32 %v1306, %v1678
        %v3254 = vpack.c.bf16 %v3248, %v3248
        %3255 = vmatprep.subr.bf16.mxu0 %v1873
        %3256 = vmatpush1.bf16.msra.mxu0 %v1872
        %3257 = vmatprep.subr.bf16.mxu0 %v1877
        %3258 = vmatpush1.bf16.msra.mxu0 %v1876
        %3259 = vmatprep.subr.bf16.mxu0 %v1881
        %3260 = vmatpush1.bf16.msra.mxu0 %v1880
        %3261 = vmatprep.subr.bf16.mxu0 %v1885
        %3262 = vmatpush1.bf16.msra.mxu0 %v1884
        %3263 = vmatprep.subr.bf16.mxu0 %v1889
        %3264 = vmatpush1.bf16.msra.mxu0 %v1888
        %3265 = vmatprep.subr.bf16.mxu0 %v1893
        %3266 = vmatpush1.bf16.msra.mxu0 %v1892
        %3267 = vmatprep.subr.bf16.mxu0 %v1897
        %3268 = vmatpush1.bf16.msra.mxu0 %v1896
        %3269 = vmatprep.subr.bf16.mxu0 %v1901
        %3270 = vmatpush1.bf16.msra.mxu0 %v1900
        %3271 = vmatprep.subr.bf16.mxu0 0
        %3272 = vmatpush1.bf16.msra.mxu0 0
        %3273 = vmatprep.subr.bf16.mxu0 0
        %3274 = vmatpush1.bf16.msra.mxu0 0
        %3275 = vmatprep.subr.bf16.mxu0 0
        %3276 = vmatpush1.bf16.msra.mxu0 0
        %3277 = vmatprep.subr.bf16.mxu0 0
        %3278 = vmatpush1.bf16.msra.mxu0 0
        %3279 = vmatprep.subr.bf16.mxu0 0
        %3280 = vmatpush1.bf16.msra.mxu0 0
        %3281 = vmatprep.subr.bf16.mxu0 0
        %3282 = vmatpush1.bf16.msra.mxu0 0
        %3283 = vmatprep.subr.bf16.mxu0 0
        %3284 = vmatpush1.bf16.msra.mxu0 0
        %3285 = vmatprep.subr.bf16.mxu0 0
        %3286 = vmatpush1.bf16.msra.mxu0 0
        %3287 = vmatprep.mubr.bf16.mxu0 0
        %3288 = vmatmul.mubr.bf16.gmra.mrb[0].mxu0 %v3254
        %v3289 = vpop.f32.mrb[0].mxu0
        %v3290 = vadd.f32 0.0, %v3289
        %v3291 = vpop.f32.mrb[0].mxu0
        %v3292 = vadd.f32 0.0, %v3291
        %v3293 = vpop.f32.mrb[0].mxu0
        %v3294 = vpop.f32.mrb[0].mxu0
        %3295 = vdwg.mxu0
        %3296 = vmatprep.subr.bf16.mxu0 %v1875
        %3297 = vmatpush1.bf16.msra.mxu0 %v1874
        %3298 = vmatprep.subr.bf16.mxu0 %v1879
        %3299 = vmatpush1.bf16.msra.mxu0 %v1878
        %3300 = vmatprep.subr.bf16.mxu0 %v1883
        %3301 = vmatpush1.bf16.msra.mxu0 %v1882
        %3302 = vmatprep.subr.bf16.mxu0 %v1887
        %3303 = vmatpush1.bf16.msra.mxu0 %v1886
        %3304 = vmatprep.subr.bf16.mxu0 %v1891
        %3305 = vmatpush1.bf16.msra.mxu0 %v1890
        %3306 = vmatprep.subr.bf16.mxu0 %v1895
        %3307 = vmatpush1.bf16.msra.mxu0 %v1894
        %3308 = vmatprep.subr.bf16.mxu0 %v1899
        %3309 = vmatpush1.bf16.msra.mxu0 %v1898
        %3310 = vmatprep.subr.bf16.mxu0 %v1903
        %3311 = vmatpush1.bf16.msra.mxu0 %v1902
        %3312 = vmatprep.subr.bf16.mxu0 0
        %3313 = vmatpush1.bf16.msra.mxu0 0
        %3314 = vmatprep.subr.bf16.mxu0 0
        %3315 = vmatpush1.bf16.msra.mxu0 0
        %3316 = vmatprep.subr.bf16.mxu0 0
        %3317 = vmatpush1.bf16.msra.mxu0 0
        %3318 = vmatprep.subr.bf16.mxu0 0
        %3319 = vmatpush1.bf16.msra.mxu0 0
        %3320 = vmatprep.subr.bf16.mxu0 0
        %3321 = vmatpush1.bf16.msra.mxu0 0
        %3322 = vmatprep.subr.bf16.mxu0 0
        %3323 = vmatpush1.bf16.msra.mxu0 0
        %3324 = vmatprep.subr.bf16.mxu0 0
        %3325 = vmatpush1.bf16.msra.mxu0 0
        %3326 = vmatprep.subr.bf16.mxu0 0
        %3327 = vmatpush1.bf16.msra.mxu0 0
        %3328 = vmatprep.mubr.bf16.mxu0 0
        %3329 = vmatmul.mubr.bf16.gmra.mrb[0].mxu0 %v3254
        %v3330 = vpop.f32.mrb[0].mxu0
        %v3331 = vadd.f32 0.0, %v3330
        %v3332 = vpop.f32.mrb[0].mxu0
        %v3333 = vadd.f32 0.0, %v3332
        %v3334 = vpop.f32.mrb[0].mxu0
        %v3335 = vpop.f32.mrb[0].mxu0
        %3336 = vdwg.mxu0
        %v3337 = vadd.f32 %v3250, %v3290
        %v3338 = vadd.f32 %v3251, %v3292
        %v3339 = vadd.f32 %v3252, %v3331
        %v3340 = vadd.f32 %v3253, %v3333
        %v3341 = vmul.f32 %v3337, 0.2
        %v3342 = vmul.f32 %v3338, 0.2
        %v3343 = vmul.f32 %v3339, 0.2
        %v3344 = vadd.f32 %v3341, 0.5
        %v3345 = vadd.f32 %v3342, 0.5
        %v3346 = vadd.f32 %v3343, 0.5
        %v3347 = vmax.f32 %v3344, 0.0
        %v3348 = vmax.f32 %v3345, 0.0
        %v3349 = vmax.f32 %v3346, 0.0
        %v3350 = vmin.f32 %v3347, 1.0
        %v3351 = vmin.f32 %v3348, 1.0
        %v3352 = vmin.f32 %v3349, 1.0
        %v3353 = vtanh.pop %v3340
        %v3354 = vmul.f32 %v3351, %v3246
        %v3355 = vmul.f32 %v3350, %v3353
        %v3356 = vadd.f32 %v3354, %v3355
        %v3357 = vtanh.pop %v3356
        %v3358 = vmul.f32 %v3352, %v3357
        %v3359 = vmax.f32 %v3249, %v3358
        %v3360 = vadd.f32 %v1195, %v1559
        %v3361 = vadd.f32 %v1197, %v1561
        %v3362 = vadd.f32 %v1308, %v1672
        %v3363 = vadd.f32 %v1310, %v1674
        %v3364 = vpack.c.bf16 %v3358, %v3358
        %3365 = vmatprep.subr.bf16.mxu0 %v1873
        %3366 = vmatpush1.bf16.msra.mxu0 %v1872
        %3367 = vmatprep.subr.bf16.mxu0 %v1877
        %3368 = vmatpush1.bf16.msra.mxu0 %v1876
        %3369 = vmatprep.subr.bf16.mxu0 %v1881
        %3370 = vmatpush1.bf16.msra.mxu0 %v1880
        %3371 = vmatprep.subr.bf16.mxu0 %v1885
        %3372 = vmatpush1.bf16.msra.mxu0 %v1884
        %3373 = vmatprep.subr.bf16.mxu0 %v1889
        %3374 = vmatpush1.bf16.msra.mxu0 %v1888
        %3375 = vmatprep.subr.bf16.mxu0 %v1893
        %3376 = vmatpush1.bf16.msra.mxu0 %v1892
        %3377 = vmatprep.subr.bf16.mxu0 %v1897
        %3378 = vmatpush1.bf16.msra.mxu0 %v1896
        %3379 = vmatprep.subr.bf16.mxu0 %v1901
        %3380 = vmatpush1.bf16.msra.mxu0 %v1900
        %3381 = vmatprep.subr.bf16.mxu0 0
        %3382 = vmatpush1.bf16.msra.mxu0 0
        %3383 = vmatprep.subr.bf16.mxu0 0
        %3384 = vmatpush1.bf16.msra.mxu0 0
        %3385 = vmatprep.subr.bf16.mxu0 0
        %3386 = vmatpush1.bf16.msra.mxu0 0
        %3387 = vmatprep.subr.bf16.mxu0 0
        %3388 = vmatpush1.bf16.msra.mxu0 0
        %3389 = vmatprep.subr.bf16.mxu0 0
        %3390 = vmatpush1.bf16.msra.mxu0 0
        %3391 = vmatprep.subr.bf16.mxu0 0
        %3392 = vmatpush1.bf16.msra.mxu0 0
        %3393 = vmatprep.subr.bf16.mxu0 0
        %3394 = vmatpush1.bf16.msra.mxu0 0
        %3395 = vmatprep.subr.bf16.mxu0 0
        %3396 = vmatpush1.bf16.msra.mxu0 0
        %3397 = vmatprep.mubr.bf16.mxu0 0
        %3398 = vmatmul.mubr.bf16.gmra.mrb[0].mxu0 %v3364
        %v3399 = vpop.f32.mrb[0].mxu0
        %v3400 = vadd.f32 0.0, %v3399
        %v3401 = vpop.f32.mrb[0].mxu0
        %v3402 = vadd.f32 0.0, %v3401
        %v3403 = vpop.f32.mrb[0].mxu0
        %v3404 = vpop.f32.mrb[0].mxu0
        %3405 = vdwg.mxu0
        %3406 = vmatprep.subr.bf16.mxu0 %v1875
        %3407 = vmatpush1.bf16.msra.mxu0 %v1874
        %3408 = vmatprep.subr.bf16.mxu0 %v1879
        %3409 = vmatpush1.bf16.msra.mxu0 %v1878
        %3410 = vmatprep.subr.bf16.mxu0 %v1883
        %3411 = vmatpush1.bf16.msra.mxu0 %v1882
        %3412 = vmatprep.subr.bf16.mxu0 %v1887
        %3413 = vmatpush1.bf16.msra.mxu0 %v1886
        %3414 = vmatprep.subr.bf16.mxu0 %v1891
        %3415 = vmatpush1.bf16.msra.mxu0 %v1890
        %3416 = vmatprep.subr.bf16.mxu0 %v1895
        %3417 = vmatpush1.bf16.msra.mxu0 %v1894
        %3418 = vmatprep.subr.bf16.mxu0 %v1899
        %3419 = vmatpush1.bf16.msra.mxu0 %v1898
        %3420 = vmatprep.subr.bf16.mxu0 %v1903
        %3421 = vmatpush1.bf16.msra.mxu0 %v1902
        %3422 = vmatprep.subr.bf16.mxu0 0
        %3423 = vmatpush1.bf16.msra.mxu0 0
        %3424 = vmatprep.subr.bf16.mxu0 0
        %3425 = vmatpush1.bf16.msra.mxu0 0
        %3426 = vmatprep.subr.bf16.mxu0 0
        %3427 = vmatpush1.bf16.msra.mxu0 0
        %3428 = vmatprep.subr.bf16.mxu0 0
        %3429 = vmatpush1.bf16.msra.mxu0 0
        %3430 = vmatprep.subr.bf16.mxu0 0
        %3431 = vmatpush1.bf16.msra.mxu0 0
        %3432 = vmatprep.subr.bf16.mxu0 0
        %3433 = vmatpush1.bf16.msra.mxu0 0
        %3434 = vmatprep.subr.bf16.mxu0 0
        %3435 = vmatpush1.bf16.msra.mxu0 0
        %3436 = vmatprep.subr.bf16.mxu0 0
        %3437 = vmatpush1.bf16.msra.mxu0 0
        %3438 = vmatprep.mubr.bf16.mxu0 0
        %3439 = vmatmul.mubr.bf16.gmra.mrb[0].mxu0 %v3364
        %v3440 = vpop.f32.mrb[0].mxu0
        %v3441 = vadd.f32 0.0, %v3440
        %v3442 = vpop.f32.mrb[0].mxu0
        %v3443 = vadd.f32 0.0, %v3442
        %v3444 = vpop.f32.mrb[0].mxu0
        %v3445 = vpop.f32.mrb[0].mxu0
        %3446 = vdwg.mxu0
        %v3447 = vadd.f32 %v3360, %v3400
        %v3448 = vadd.f32 %v3361, %v3402
        %v3449 = vadd.f32 %v3362, %v3441
        %v3450 = vadd.f32 %v3363, %v3443
        %v3451 = vmul.f32 %v3447, 0.2
        %v3452 = vmul.f32 %v3448, 0.2
        %v3453 = vmul.f32 %v3449, 0.2
        %v3454 = vadd.f32 %v3451, 0.5
        %v3455 = vadd.f32 %v3452, 0.5
        %v3456 = vadd.f32 %v3453, 0.5
        %v3457 = vmax.f32 %v3454, 0.0
        %v3458 = vmax.f32 %v3455, 0.0
        %v3459 = vmax.f32 %v3456, 0.0
        %v3460 = vmin.f32 %v3457, 1.0
        %v3461 = vmin.f32 %v3458, 1.0
        %v3462 = vmin.f32 %v3459, 1.0
        %v3463 = vtanh.pop %v3450
        %v3464 = vmul.f32 %v3461, %v3356
        %v3465 = vmul.f32 %v3460, %v3463
        %v3466 = vadd.f32 %v3464, %v3465
        %v3467 = vtanh.pop %v3466
        %v3468 = vmul.f32 %v3462, %v3467
        %v3469 = vmax.f32 %v3359, %v3468
        %v3470 = vadd.f32 %v1201, %v1553
        %v3471 = vadd.f32 %v1203, %v1555
        %v3472 = vadd.f32 %v1314, %v1666
        %v3473 = vadd.f32 %v1316, %v1668
        %v3474 = vpack.c.bf16 %v3468, %v3468
        %3475 = vmatprep.subr.bf16.mxu0 %v1873
        %3476 = vmatpush1.bf16.msra.mxu0 %v1872
        %3477 = vmatprep.subr.bf16.mxu0 %v1877
        %3478 = vmatpush1.bf16.msra.mxu0 %v1876
        %3479 = vmatprep.subr.bf16.mxu0 %v1881
        %3480 = vmatpush1.bf16.msra.mxu0 %v1880
        %3481 = vmatprep.subr.bf16.mxu0 %v1885
        %3482 = vmatpush1.bf16.msra.mxu0 %v1884
        %3483 = vmatprep.subr.bf16.mxu0 %v1889
        %3484 = vmatpush1.bf16.msra.mxu0 %v1888
        %3485 = vmatprep.subr.bf16.mxu0 %v1893
        %3486 = vmatpush1.bf16.msra.mxu0 %v1892
        %3487 = vmatprep.subr.bf16.mxu0 %v1897
        %3488 = vmatpush1.bf16.msra.mxu0 %v1896
        %3489 = vmatprep.subr.bf16.mxu0 %v1901
        %3490 = vmatpush1.bf16.msra.mxu0 %v1900
        %3491 = vmatprep.subr.bf16.mxu0 0
        %3492 = vmatpush1.bf16.msra.mxu0 0
        %3493 = vmatprep.subr.bf16.mxu0 0
        %3494 = vmatpush1.bf16.msra.mxu0 0
        %3495 = vmatprep.subr.bf16.mxu0 0
        %3496 = vmatpush1.bf16.msra.mxu0 0
        %3497 = vmatprep.subr.bf16.mxu0 0
        %3498 = vmatpush1.bf16.msra.mxu0 0
        %3499 = vmatprep.subr.bf16.mxu0 0
        %3500 = vmatpush1.bf16.msra.mxu0 0
        %3501 = vmatprep.subr.bf16.mxu0 0
        %3502 = vmatpush1.bf16.msra.mxu0 0
        %3503 = vmatprep.subr.bf16.mxu0 0
        %3504 = vmatpush1.bf16.msra.mxu0 0
        %3505 = vmatprep.subr.bf16.mxu0 0
        %3506 = vmatpush1.bf16.msra.mxu0 0
        %3507 = vmatprep.mubr.bf16.mxu0 0
        %3508 = vmatmul.mubr.bf16.gmra.mrb[0].mxu0 %v3474
        %v3509 = vpop.f32.mrb[0].mxu0
        %v3510 = vadd.f32 0.0, %v3509
        %v3511 = vpop.f32.mrb[0].mxu0
        %v3512 = vadd.f32 0.0, %v3511
        %v3513 = vpop.f32.mrb[0].mxu0
        %v3514 = vpop.f32.mrb[0].mxu0
        %3515 = vdwg.mxu0
        %3516 = vmatprep.subr.bf16.mxu0 %v1875
        %3517 = vmatpush1.bf16.msra.mxu0 %v1874
        %3518 = vmatprep.subr.bf16.mxu0 %v1879
        %3519 = vmatpush1.bf16.msra.mxu0 %v1878
        %3520 = vmatprep.subr.bf16.mxu0 %v1883
        %3521 = vmatpush1.bf16.msra.mxu0 %v1882
        %3522 = vmatprep.subr.bf16.mxu0 %v1887
        %3523 = vmatpush1.bf16.msra.mxu0 %v1886
        %3524 = vmatprep.subr.bf16.mxu0 %v1891
        %3525 = vmatpush1.bf16.msra.mxu0 %v1890
        %3526 = vmatprep.subr.bf16.mxu0 %v1895
        %3527 = vmatpush1.bf16.msra.mxu0 %v1894
        %3528 = vmatprep.subr.bf16.mxu0 %v1899
        %3529 = vmatpush1.bf16.msra.mxu0 %v1898
        %3530 = vmatprep.subr.bf16.mxu0 %v1903
        %3531 = vmatpush1.bf16.msra.mxu0 %v1902
        %3532 = vmatprep.subr.bf16.mxu0 0
        %3533 = vmatpush1.bf16.msra.mxu0 0
        %3534 = vmatprep.subr.bf16.mxu0 0
        %3535 = vmatpush1.bf16.msra.mxu0 0
        %3536 = vmatprep.subr.bf16.mxu0 0
        %3537 = vmatpush1.bf16.msra.mxu0 0
        %3538 = vmatprep.subr.bf16.mxu0 0
        %3539 = vmatpush1.bf16.msra.mxu0 0
        %3540 = vmatprep.subr.bf16.mxu0 0
        %3541 = vmatpush1.bf16.msra.mxu0 0
        %3542 = vmatprep.subr.bf16.mxu0 0
        %3543 = vmatpush1.bf16.msra.mxu0 0
        %3544 = vmatprep.subr.bf16.mxu0 0
        %3545 = vmatpush1.bf16.msra.mxu0 0
        %3546 = vmatprep.subr.bf16.mxu0 0
        %3547 = vmatpush1.bf16.msra.mxu0 0
        %3548 = vmatprep.mubr.bf16.mxu0 0
        %3549 = vmatmul.mubr.bf16.gmra.mrb[0].mxu0 %v3474
        %v3550 = vpop.f32.mrb[0].mxu0
        %v3551 = vadd.f32 0.0, %v3550
        %v3552 = vpop.f32.mrb[0].mxu0
        %v3553 = vadd.f32 0.0, %v3552
        %v3554 = vpop.f32.mrb[0].mxu0
        %v3555 = vpop.f32.mrb[0].mxu0
        %3556 = vdwg.mxu0
        %v3557 = vadd.f32 %v3470, %v3510
        %v3558 = vadd.f32 %v3471, %v3512
        %v3559 = vadd.f32 %v3472, %v3551
        %v3560 = vadd.f32 %v3473, %v3553
        %v3561 = vmul.f32 %v3557, 0.2
        %v3562 = vmul.f32 %v3558, 0.2
        %v3563 = vmul.f32 %v3559, 0.2
        %v3564 = vadd.f32 %v3561, 0.5
        %v3565 = vadd.f32 %v3562, 0.5
        %v3566 = vadd.f32 %v3563, 0.5
        %v3567 = vmax.f32 %v3564, 0.0
        %v3568 = vmax.f32 %v3565, 0.0
        %v3569 = vmax.f32 %v3566, 0.0
        %v3570 = vmin.f32 %v3567, 1.0
        %v3571 = vmin.f32 %v3568, 1.0
        %v3572 = vmin.f32 %v3569, 1.0
        %v3573 = vtanh.pop %v3560
        %v3574 = vmul.f32 %v3571, %v3466
        %v3575 = vmul.f32 %v3570, %v3573
        %v3576 = vadd.f32 %v3574, %v3575
        %v3577 = vtanh.pop %v3576
        %v3578 = vmul.f32 %v3572, %v3577
        %v3579 = vmax.f32 %v3469, %v3578
        %v3580 = vadd.f32 %v1205, %v1549
        %v3581 = vadd.f32 %v1207, %v1551
        %v3582 = vadd.f32 %v1318, %v1662
        %v3583 = vadd.f32 %v1320, %v1664
        %v3584 = vpack.c.bf16 %v3578, %v3578
        %3585 = vmatprep.subr.bf16.mxu0 %v1873
        %3586 = vmatpush1.bf16.msra.mxu0 %v1872
        %3587 = vmatprep.subr.bf16.mxu0 %v1877
        %3588 = vmatpush1.bf16.msra.mxu0 %v1876
        %3589 = vmatprep.subr.bf16.mxu0 %v1881
        %3590 = vmatpush1.bf16.msra.mxu0 %v1880
        %3591 = vmatprep.subr.bf16.mxu0 %v1885
        %3592 = vmatpush1.bf16.msra.mxu0 %v1884
        %3593 = vmatprep.subr.bf16.mxu0 %v1889
        %3594 = vmatpush1.bf16.msra.mxu0 %v1888
        %3595 = vmatprep.subr.bf16.mxu0 %v1893
        %3596 = vmatpush1.bf16.msra.mxu0 %v1892
        %3597 = vmatprep.subr.bf16.mxu0 %v1897
        %3598 = vmatpush1.bf16.msra.mxu0 %v1896
        %3599 = vmatprep.subr.bf16.mxu0 %v1901
        %3600 = vmatpush1.bf16.msra.mxu0 %v1900
        %3601 = vmatprep.subr.bf16.mxu0 0
        %3602 = vmatpush1.bf16.msra.mxu0 0
        %3603 = vmatprep.subr.bf16.mxu0 0
        %3604 = vmatpush1.bf16.msra.mxu0 0
        %3605 = vmatprep.subr.bf16.mxu0 0
        %3606 = vmatpush1.bf16.msra.mxu0 0
        %3607 = vmatprep.subr.bf16.mxu0 0
        %3608 = vmatpush1.bf16.msra.mxu0 0
        %3609 = vmatprep.subr.bf16.mxu0 0
        %3610 = vmatpush1.bf16.msra.mxu0 0
        %3611 = vmatprep.subr.bf16.mxu0 0
        %3612 = vmatpush1.bf16.msra.mxu0 0
        %3613 = vmatprep.subr.bf16.mxu0 0
        %3614 = vmatpush1.bf16.msra.mxu0 0
        %3615 = vmatprep.subr.bf16.mxu0 0
        %3616 = vmatpush1.bf16.msra.mxu0 0
        %3617 = vmatprep.mubr.bf16.mxu0 0
        %3618 = vmatmul.mubr.bf16.gmra.mrb[0].mxu0 %v3584
        %v3619 = vpop.f32.mrb[0].mxu0
        %v3620 = vadd.f32 0.0, %v3619
        %v3621 = vpop.f32.mrb[0].mxu0
        %v3622 = vadd.f32 0.0, %v3621
        %v3623 = vpop.f32.mrb[0].mxu0
        %v3624 = vpop.f32.mrb[0].mxu0
        %3625 = vdwg.mxu0
        %3626 = vmatprep.subr.bf16.mxu0 %v1875
        %3627 = vmatpush1.bf16.msra.mxu0 %v1874
        %3628 = vmatprep.subr.bf16.mxu0 %v1879
        %3629 = vmatpush1.bf16.msra.mxu0 %v1878
        %3630 = vmatprep.subr.bf16.mxu0 %v1883
        %3631 = vmatpush1.bf16.msra.mxu0 %v1882
        %3632 = vmatprep.subr.bf16.mxu0 %v1887
        %3633 = vmatpush1.bf16.msra.mxu0 %v1886
        %3634 = vmatprep.subr.bf16.mxu0 %v1891
        %3635 = vmatpush1.bf16.msra.mxu0 %v1890
        %3636 = vmatprep.subr.bf16.mxu0 %v1895
        %3637 = vmatpush1.bf16.msra.mxu0 %v1894
        %3638 = vmatprep.subr.bf16.mxu0 %v1899
        %3639 = vmatpush1.bf16.msra.mxu0 %v1898
        %3640 = vmatprep.subr.bf16.mxu0 %v1903
        %3641 = vmatpush1.bf16.msra.mxu0 %v1902
        %3642 = vmatprep.subr.bf16.mxu0 0
        %3643 = vmatpush1.bf16.msra.mxu0 0
        %3644 = vmatprep.subr.bf16.mxu0 0
        %3645 = vmatpush1.bf16.msra.mxu0 0
        %3646 = vmatprep.subr.bf16.mxu0 0
        %3647 = vmatpush1.bf16.msra.mxu0 0
        %3648 = vmatprep.subr.bf16.mxu0 0
        %3649 = vmatpush1.bf16.msra.mxu0 0
        %3650 = vmatprep.subr.bf16.mxu0 0
        %3651 = vmatpush1.bf16.msra.mxu0 0
        %3652 = vmatprep.subr.bf16.mxu0 0
        %3653 = vmatpush1.bf16.msra.mxu0 0
        %3654 = vmatprep.subr.bf16.mxu0 0
        %3655 = vmatpush1.bf16.msra.mxu0 0
        %3656 = vmatprep.subr.bf16.mxu0 0
        %3657 = vmatpush1.bf16.msra.mxu0 0
        %3658 = vmatprep.mubr.bf16.mxu0 0
        %3659 = vmatmul.mubr.bf16.gmra.mrb[0].mxu0 %v3584
        %v3660 = vpop.f32.mrb[0].mxu0
        %v3661 = vadd.f32 0.0, %v3660
        %v3662 = vpop.f32.mrb[0].mxu0
        %v3663 = vadd.f32 0.0, %v3662
        %v3664 = vpop.f32.mrb[0].mxu0
        %v3665 = vpop.f32.mrb[0].mxu0
        %3666 = vdwg.mxu0
        %v3667 = vadd.f32 %v3580, %v3620
        %v3668 = vadd.f32 %v3581, %v3622
        %v3669 = vadd.f32 %v3582, %v3661
        %v3670 = vadd.f32 %v3583, %v3663
        %v3671 = vmul.f32 %v3667, 0.2
        %v3672 = vmul.f32 %v3668, 0.2
        %v3673 = vmul.f32 %v3669, 0.2
        %v3674 = vadd.f32 %v3671, 0.5
        %v3675 = vadd.f32 %v3672, 0.5
        %v3676 = vadd.f32 %v3673, 0.5
        %v3677 = vmax.f32 %v3674, 0.0
        %v3678 = vmax.f32 %v3675, 0.0
        %v3679 = vmax.f32 %v3676, 0.0
        %v3680 = vmin.f32 %v3677, 1.0
        %v3681 = vmin.f32 %v3678, 1.0
        %v3682 = vmin.f32 %v3679, 1.0
        %v3683 = vtanh.pop %v3670
        %v3684 = vmul.f32 %v3681, %v3576
        %v3685 = vmul.f32 %v3680, %v3683
        %v3686 = vadd.f32 %v3684, %v3685
        %v3687 = vtanh.pop %v3686
        %v3688 = vmul.f32 %v3682, %v3687
        %v3689 = vmax.f32 %v3579, %v3688
        %v3690 = vld [vmem:[%s8] sm:$0xff]
        %v3691 = vld [vmem:[%s8 + $0x8] sm:$0xff]
        %v3692 = vld [vmem:[%s8 + $0x10] sm:$0xff]
        %v3693 = vld [vmem:[%s8 + $0x18] sm:$0xff]
        %v3694 = vld [vmem:[%s8 + $0x20] sm:$0xff]
        %v3695 = vld [vmem:[%s8 + $0x28] sm:$0xff]
        %v3696 = vld [vmem:[%s8 + $0x30] sm:$0xff]
        %v3697 = vld [vmem:[%s8 + $0x38] sm:$0xff]
        %v3698 = vld [vmem:[%s8 + $0x40] sm:$0xff]
        %v3699 = vld [vmem:[%s8 + $0x48] sm:$0xff]
        %v3700 = vld [vmem:[%s8 + $0x50] sm:$0xff]
        %v3701 = vld [vmem:[%s8 + $0x58] sm:$0xff]
        %v3702 = vld [vmem:[%s8 + $0x60] sm:$0xff]
        %v3703 = vld [vmem:[%s8 + $0x68] sm:$0xff]
        %v3704 = vld [vmem:[%s8 + $0x70] sm:$0xff]
        %v3705 = vld [vmem:[%s8 + $0x78] sm:$0xff]
        %v3706 = vld [vmem:[%s9] sm:$0x1]
        %v3708 = vlaneseq
        %v3709 = vshrl.u32 %v3708, 7
        %v3710 = vsub.s32 0, %v3709
        %v3711 = vrot.slane %v3706, %v3710
        %3713 = vmatprep.subr.mxu0 0.0
        %3714 = vmatpush1.msra.mxu0 %v3690
        %3715 = vmatprep.subr.mxu0 0.0
        %3716 = vmatpush1.msra.mxu0 %v3691
        %3717 = vmatprep.subr.mxu0 0.0
        %3718 = vmatpush1.msra.mxu0 %v3692
        %3719 = vmatprep.subr.mxu0 0.0
        %3720 = vmatpush1.msra.mxu0 %v3693
        %3721 = vmatprep.subr.mxu0 0.0
        %3722 = vmatpush1.msra.mxu0 %v3694
        %3723 = vmatprep.subr.mxu0 0.0
        %3724 = vmatpush1.msra.mxu0 %v3695
        %3725 = vmatprep.subr.mxu0 0.0
        %3726 = vmatpush1.msra.mxu0 %v3696
        %3727 = vmatprep.subr.mxu0 0.0
        %3728 = vmatpush1.msra.mxu0 %v3697
        %3729 = vmatprep.subr.mxu0 0.0
        %3730 = vmatpush1.msra.mxu0 %v3698
        %3731 = vmatprep.subr.mxu0 0.0
        %3732 = vmatpush1.msra.mxu0 %v3699
        %3733 = vmatprep.subr.mxu0 0.0
        %3734 = vmatpush1.msra.mxu0 %v3700
        %3735 = vmatprep.subr.mxu0 0.0
        %3736 = vmatpush1.msra.mxu0 %v3701
        %3737 = vmatprep.subr.mxu0 0.0
        %3738 = vmatpush1.msra.mxu0 %v3702
        %3739 = vmatprep.subr.mxu0 0.0
        %3740 = vmatpush1.msra.mxu0 %v3703
        %3741 = vmatprep.subr.mxu0 0.0
        %3742 = vmatpush1.msra.mxu0 %v3704
        %3743 = vmatprep.subr.mxu0 0.0
        %3744 = vmatpush1.msra.mxu0 %v3705
        %3745 = vmatprep.subr.mxu0 0.0
        %3746 = vmatpush1.msra.mxu0 0.0
        %3747 = vmatprep.subr.mxu0 0.0
        %3748 = vmatpush1.msra.mxu0 0.0
        %3749 = vmatprep.subr.mxu0 0.0
        %3750 = vmatpush1.msra.mxu0 0.0
        %3751 = vmatprep.subr.mxu0 0.0
        %3752 = vmatpush1.msra.mxu0 0.0
        %3753 = vmatprep.subr.mxu0 0.0
        %3754 = vmatpush1.msra.mxu0 0.0
        %3755 = vmatprep.subr.mxu0 0.0
        %3756 = vmatpush1.msra.mxu0 0.0
        %3757 = vmatprep.subr.mxu0 0.0
        %3758 = vmatpush1.msra.mxu0 0.0
        %3759 = vmatprep.subr.mxu0 0.0
        %3760 = vmatpush1.msra.mxu0 0.0
        %3761 = vmatprep.subr.mxu0 0.0
        %3762 = vmatpush1.msra.mxu0 0.0
        %3763 = vmatprep.subr.mxu0 0.0
        %3764 = vmatpush1.msra.mxu0 0.0
        %3765 = vmatprep.subr.mxu0 0.0
        %3766 = vmatpush1.msra.mxu0 0.0
        %3767 = vmatprep.subr.mxu0 0.0
        %3768 = vmatpush1.msra.mxu0 0.0
        %3769 = vmatprep.subr.mxu0 0.0
        %3770 = vmatpush1.msra.mxu0 0.0
        %3771 = vmatprep.subr.mxu0 0.0
        %3772 = vmatpush1.msra.mxu0 0.0
        %3773 = vmatprep.subr.mxu0 0.0
        %3774 = vmatpush1.msra.mxu0 0.0
        %3775 = vmatprep.subr.mxu0 0.0
        %3776 = vmatpush1.msra.mxu0 0.0
        %3777 = vmatprep.mubr.f32.mxu0 0.0
        %3778 = vmatmul.mubr.f32.gmra.mrb[0].mxu0 %v3689
        %v3779 = vpop.f32.mrb[0].mxu0
        %v3780 = vadd.f32 %v3711, %v3779
        %v3781 = vpop.f32.mrb[0].mxu0
        %3782 = vdwg.mxu0
        %v3783 = vmax.f32 %v3780, 0.0
        %v3784 = vld [vmem:[%s10] sm:$0xff]
        %v3785 = vld [vmem:[%s10 + $0x8] sm:$0xff]
        %v3786 = vld [vmem:[%s10 + $0x10] sm:$0xff]
        %v3787 = vld [vmem:[%s10 + $0x18] sm:$0xff]
        %v3788 = vld [vmem:[%s10 + $0x20] sm:$0xff]
        %v3789 = vld [vmem:[%s10 + $0x28] sm:$0xff]
        %v3790 = vld [vmem:[%s10 + $0x30] sm:$0x3]
        %v3791 = vld [vmem:[%s11] sm:$0x1]
        %v3793 = vlaneseq
        %v3794 = vshrl.u32 %v3793, 7
        %v3795 = vsub.s32 0, %v3794
        %v3796 = vrot.slane %v3791, %v3795
        %vm3798 = vcmask 408576
        %v3800 = vsel %vm3798, %v3783, 0
        %vm3802 = vcmask 1041408
        %v3804 = vsel %vm3802, %v3790, 0
        %3806 = vmatprep.subr.mxu0 0.0
        %3807 = vmatpush1.msra.mxu0 %v3784
        %3808 = vmatprep.subr.mxu0 0.0
        %3809 = vmatpush1.msra.mxu0 %v3785
        %3810 = vmatprep.subr.mxu0 0.0
        %3811 = vmatpush1.msra.mxu0 %v3786
        %3812 = vmatprep.subr.mxu0 0.0
        %3813 = vmatpush1.msra.mxu0 %v3787
        %3814 = vmatprep.subr.mxu0 0.0
        %3815 = vmatpush1.msra.mxu0 %v3788
        %3816 = vmatprep.subr.mxu0 0.0
        %3817 = vmatpush1.msra.mxu0 %v3789
        %3818 = vmatprep.subr.mxu0 0.0
        %3819 = vmatpush1.msra.mxu0 %v3804
        %3820 = vmatprep.subr.mxu0 0.0
        %3821 = vmatpush1.msra.mxu0 0.0
        %3822 = vmatprep.subr.mxu0 0.0
        %3823 = vmatpush1.msra.mxu0 0.0
        %3824 = vmatprep.subr.mxu0 0.0
        %3825 = vmatpush1.msra.mxu0 0.0
        %3826 = vmatprep.subr.mxu0 0.0
        %3827 = vmatpush1.msra.mxu0 0.0
        %3828 = vmatprep.subr.mxu0 0.0
        %3829 = vmatpush1.msra.mxu0 0.0
        %3830 = vmatprep.subr.mxu0 0.0
        %3831 = vmatpush1.msra.mxu0 0.0
        %3832 = vmatprep.subr.mxu0 0.0
        %3833 = vmatpush1.msra.mxu0 0.0
        %3834 = vmatprep.subr.mxu0 0.0
        %3835 = vmatpush1.msra.mxu0 0.0
        %3836 = vmatprep.subr.mxu0 0.0
        %3837 = vmatpush1.msra.mxu0 0.0
        %3838 = vmatprep.subr.mxu0 0.0
        %3839 = vmatpush1.msra.mxu0 0.0
        %3840 = vmatprep.subr.mxu0 0.0
        %3841 = vmatpush1.msra.mxu0 0.0
        %3842 = vmatprep.subr.mxu0 0.0
        %3843 = vmatpush1.msra.mxu0 0.0
        %3844 = vmatprep.subr.mxu0 0.0
        %3845 = vmatpush1.msra.mxu0 0.0
        %3846 = vmatprep.subr.mxu0 0.0
        %3847 = vmatpush1.msra.mxu0 0.0
        %3848 = vmatprep.subr.mxu0 0.0
        %3849 = vmatpush1.msra.mxu0 0.0
        %3850 = vmatprep.subr.mxu0 0.0
        %3851 = vmatpush1.msra.mxu0 0.0
        %3852 = vmatprep.subr.mxu0 0.0
        %3853 = vmatpush1.msra.mxu0 0.0
        %3854 = vmatprep.subr.mxu0 0.0
        %3855 = vmatpush1.msra.mxu0 0.0
        %3856 = vmatprep.subr.mxu0 0.0
        %3857 = vmatpush1.msra.mxu0 0.0
        %3858 = vmatprep.subr.mxu0 0.0
        %3859 = vmatpush1.msra.mxu0 0.0
        %3860 = vmatprep.subr.mxu0 0.0
        %3861 = vmatpush1.msra.mxu0 0.0
        %3862 = vmatprep.subr.mxu0 0.0
        %3863 = vmatpush1.msra.mxu0 0.0
        %3864 = vmatprep.subr.mxu0 0.0
        %3865 = vmatpush1.msra.mxu0 0.0
        %3866 = vmatprep.subr.mxu0 0.0
        %3867 = vmatpush1.msra.mxu0 0.0
        %3868 = vmatprep.subr.mxu0 0.0
        %3869 = vmatpush1.msra.mxu0 0.0
        %3870 = vmatprep.mubr.f32.mxu0 0.0
        %3871 = vmatmul.mubr.f32.gmra.mrb[0].mxu0 %v3800
        %v3872 = vpop.f32.mrb[0].mxu0
        %v3873 = vadd.f32 %v3796, %v3872
        %v3874 = vpop.f32.mrb[0].mxu0
        %3875 = vdwg.mxu0
        %3876 = vmax.xlane.f32.xlu0 %v3873
        %v3877 = vpop.xlane.xlu0 %3876
        %v3878 = vsub.f32 %v3873, %v3877
        %v3879 = vmul.f32 %v3878, 1.442695
        %v3880 = vpow.pop %v3879
        %3881 = vadd.xlane.f32.xlu0 %v3880
        %v3882 = vpop.xlane.xlu0 %3881
        %v3883 = vrcp.pop %v3882
        %v3884 = vmul.f32 %v3880, %v3883
        %3885 = vst [vmem:[%s421] sm:$0xff] %v3884
        %s3886 = sand.u32 %s296, 1
        %s3887 = scalar_lea.sflag [#allocation3], %s3886
        %s3888 = sand.u32 %s296, 1
        %s3889 = smul.addr %s3888, 8
        %s3890 = scalar_lea.vmem [#allocation2], %s3889
        // Predicated region
        $region69: #{cnnblstm_forward.1} parent=67 // pred_check
          %p3891 = pneg %p306
        $region70: #{cnnblstm_forward.1} parent=67 // pred_check_branch
          %3893 = sbr.rel (%p3891) target = $region72
        $region71: #{cnnblstm_forward.1} parent=67 // pred_region
          %s3895 = ssub.s32 128, 128
          %3896 = vsyncadd %s3887, %s3895
          %s3897 = smul.addr %s26, 128
          %s3898 = scalar_lea.hbm %s12, %s3897
          %s3900 = sshll.u32 %s3890, 4
          %s3901 = int_to_ptr.vmem [resolvable:$true] %s3900
          %3903 = dma.vmem_to_hbm [thread:$0]  %s3901, 128, %s3898, %s3887
        $region72: #{cnnblstm_forward.1} parent=67 // pred_fallthru
          _
      $region68: #{cnnblstm_forward.1} parent=5 // pred_fallthru
        _
      %p3904 = scmp.le.s32.totalorder 2, %s21
      // Predicated region
      $region73: #{cnnblstm_forward.1} parent=5 // pred_check
        %p3905 = pneg %p3904
      $region74: #{cnnblstm_forward.1} parent=5 // pred_check_branch
        %3907 = sbr.rel (%p3905) target = $region76
      $region75: #{cnnblstm_forward.1} parent=5 // pred_region
        %s3908 = ssub.s32 %s21, 2
        // Predicated region
        $region77: #{cnnblstm_forward.1} parent=75 // pred_check
          %p3909 = pneg %p312
        $region78: #{cnnblstm_forward.1} parent=75 // pred_check_branch
          %3911 = sbr.rel (%p3909) target = $region80
        $region79: #{cnnblstm_forward.1} parent=75 // pred_region
          %s3912 = sand.u32 %s297, 1
          %s3913 = scalar_lea.sflag [#allocation3], %s3912
          %s3914 = sand.u32 %s297, 1
          %s3915 = smul.addr %s3914, 8
          %s3916 = scalar_lea.vmem [#allocation2], %s3915
          %3917 = dma.done %s3913, 128
        $region80: #{cnnblstm_forward.1} parent=75 // pred_fallthru
          _
      $region76: #{cnnblstm_forward.1} parent=5 // pred_fallthru
        _
    $region6: #{cnnblstm_forward.1} parent=1 // loop_footer
      %s25 = sadd.s32 1, %s21
    $region7: #{cnnblstm_forward.1} parent=1 // loop_footer_branch
      %20 = sbr.rel target = $region3
    $region8: #{cnnblstm_forward.1} parent=1 // loop_exit
      _
    %3918 = vsyncpa [#allocation3], 1
    %s3919 = scalar_lea.sflag [#allocation3], 1
    %3920 = vsyncpa %s3919, 1

</llo_original>
